<compile_context>
chip_gen: v6e
topology: v6e:2x2x1
jax: 0.10.0
libtpu: 0.0.40
codegen_flags: <defaults>
</compile_context>

<pallas_src>
import jax
import jax.numpy as jnp
from jax.experimental import pallas as pl
from jax.experimental.pallas import tpu as pltpu


def _round_up(x, m):
    return ((x + m - 1) // m) * m


# ----------------------------------------------------------------------------
# One-time parameter packing (out of the hot path), feature-major layout.
# PyTorch nn.Linear stores W as (out, in); the kernel computes h^T = W @ x^T,
# so weights are used exactly as stored. Biases become (H, 1) columns.
# All row offsets are multiples of 8 (sublane alignment); width is a multiple
# of 128 (lane alignment).
# ----------------------------------------------------------------------------
def pack_params(params):
    w1 = params["w1"].astype(jnp.float32)   # (H1, S)
    w2 = params["w2"].astype(jnp.float32)   # (H2, H1)
    w3 = params["w3"].astype(jnp.float32)   # (A,  H2)
    b1 = params["b1"].astype(jnp.float32)
    b2 = params["b2"].astype(jnp.float32)
    b3 = params["b3"].astype(jnp.float32)

    H1, S = w1.shape
    H2, _ = w2.shape
    A, _ = w3.shape

    width = _round_up(max(S, H1, H2), 128)
    o_w1 = 0
    o_w2 = o_w1 + _round_up(H1, 8)
    o_w3 = o_w2 + _round_up(H2, 8)
    o_b1 = o_w3 + _round_up(A, 8)
    o_b2 = o_b1 + _round_up(H1, 8)
    o_b3 = o_b2 + _round_up(H2, 8)
    rows = o_b3 + _round_up(A, 8)

    buf = jnp.zeros((rows, width), jnp.float32)
    buf = buf.at[o_w1:o_w1 + H1, 0:S].set(w1)
    buf = buf.at[o_w2:o_w2 + H2, 0:H1].set(w2)
    buf = buf.at[o_w3:o_w3 + A, 0:H2].set(w3)
    buf = buf.at[o_b1:o_b1 + H1, 0].set(b1)    # bias columns (col 0)
    buf = buf.at[o_b2:o_b2 + H2, 0].set(b2)
    buf = buf.at[o_b3:o_b3 + A, 0].set(b3)

    meta = dict(S=S, H1=H1, H2=H2, A=A,
                o_w1=o_w1, o_w2=o_w2, o_w3=o_w3,
                o_b1=o_b1, o_b2=o_b2, o_b3=o_b3,
                rows=rows, width=width)
    return buf, meta


# ----------------------------------------------------------------------------
# Kernel: one lane-dense batch tile per grid step; params fully VMEM-resident.
# ----------------------------------------------------------------------------
def make_actor_kernel(meta):
    S, H1, H2, A = meta["S"], meta["H1"], meta["H2"], meta["A"]
    o_w1, o_w2, o_w3 = meta["o_w1"], meta["o_w2"], meta["o_w3"]
    o_b1, o_b2, o_b3 = meta["o_b1"], meta["o_b2"], meta["o_b3"]
    hp = jax.lax.Precision.HIGHEST    # f32 parity with the PyTorch reference

    def kernel(xt_ref, p_ref, out_ref):
        xt = xt_ref[...]                                   # (S, TB), batch on lanes

        w1 = p_ref[o_w1:o_w1 + H1, 0:S]                    # (H1, S)
        w2 = p_ref[o_w2:o_w2 + H2, 0:H1]                   # (H2, H1)
        w3 = p_ref[o_w3:o_w3 + A, 0:H2]                    # (A,  H2)
        b1 = p_ref[o_b1:o_b1 + H1, 0:1]                    # (H1, 1) column
        b2 = p_ref[o_b2:o_b2 + H2, 0:1]                    # (H2, 1)
        b3 = p_ref[o_b3:o_b3 + A, 0:1]                     # (A,  1)

        h1 = jnp.dot(w1, xt, preferred_element_type=jnp.float32,
                     precision=hp) + b1                    # (H1, TB)
        h1 = jnp.maximum(h1, 0.0)
        h2 = jnp.dot(w2, h1, preferred_element_type=jnp.float32,
                     precision=hp) + b2                    # (H2, TB)
        h2 = jnp.maximum(h2, 0.0)
        logits = jnp.dot(w3, h2, preferred_element_type=jnp.float32,
                         precision=hp) + b3                # (A, TB)

        # Numerically stable log_softmax over the action axis (sublanes here,
        # == torch dim=1). Strictly per-column -> safe with masked edge blocks.
        m = jnp.max(logits, axis=0, keepdims=True)         # (1, TB)
        shifted = logits - m
        lse = jnp.log(jnp.sum(jnp.exp(shifted), axis=0, keepdims=True))
        out_ref[...] = (shifted - lse).astype(out_ref.dtype)

    return kernel


# ----------------------------------------------------------------------------
# Wrapper: batch-tiled pallas_call, batch on the lane axis.
# ----------------------------------------------------------------------------
def _choose_tb(batch, max_tb):
    # Lane-aligned batch tile. Prefer >= 2 grid steps when the batch allows it
    # so the "parallel" grid axis shards across v7x's two TensorCores.
    if batch <= 128:
        return 128
    tb = _round_up(-(-batch // 2), 128)
    return max(128, min(tb, max_tb))


def actor_discrete_forward(state, packed_params, meta, *, max_block_b=2048):
    B, S = state.shape
    assert S == meta["S"]
    A = meta["A"]

    # Feature-major: batch rides the 128-lane axis (lane-dense loads/stores).
    xt = state.astype(jnp.float32).T                       # (S, B)

    TB = _choose_tb(B, max_block_b)
    grid = (pl.cdiv(B, TB),)    # partial tail block handled by Pallas masking

    out_t = pl.pallas_call(
        make_actor_kernel(meta),
        out_shape=jax.ShapeDtypeStruct((A, B), jnp.float32),
        grid=grid,
        in_specs=[
            # x^T: tiled along the batch (lane) axis.
            pl.BlockSpec((S, TB), lambda i: (0, i)),
            # Packed params: constant block index -> VMEM-resident across all
            # batch tiles (no per-step re-DMA).
            pl.BlockSpec((meta["rows"], meta["width"]), lambda i: (0, 0)),
        ],
        out_specs=pl.BlockSpec((A, TB), lambda i: (0, i)),
        compiler_params=pltpu.CompilerParams(
            dimension_semantics=("parallel",)),
    )(xt, packed_params)

    return out_t.T                                         # (B, A) torch layout


# ----------------------------------------------------------------------------
# Synthetic init (PyTorch nn.Linear layout: W is (out, in)) + JAX reference.
# ----------------------------------------------------------------------------
def init_params(key, state_size, action_size, hidden=(128, 128)):
    dims = [state_size] + list(hidden)
    layer_dims = list(zip(dims[:-1], dims[1:])) + [(dims[-1], action_size)]
    params = {}
    for n, (in_d, out_d), k in zip(("1", "2", "3"), layer_dims,
                                   jax.random.split(key, 3)):
        kw, kb = jax.random.split(k)
        bound = 1.0 / jnp.sqrt(in_d)
        params["w" + n] = jax.random.uniform(kw, (out_d, in_d), jnp.float32,
                                             -bound, bound)
        params["b" + n] = jax.random.uniform(kb, (out_d,), jnp.float32,
                                             -bound, bound)
    return params


def reference_forward(state, params):
    hp = jax.lax.Precision.HIGHEST
    h1 = jnp.maximum(
        jnp.dot(state, params["w1"].T, precision=hp) + params["b1"], 0.0)
    h2 = jnp.maximum(
        jnp.dot(h1, params["w2"].T, precision=hp) + params["b2"], 0.0)
    logits = jnp.dot(h2, params["w3"].T, precision=hp) + params["b3"]
    return jax.nn.log_softmax(logits, axis=1)


if __name__ == "__main__":
    key = jax.random.PRNGKey(0)
    k_state, k_params, k_big = jax.random.split(key, 3)

    batch, state_size, action_size = 8, 16, 8
    hidden = (128, 128)   # module default

    params = init_params(k_params, state_size, action_size, hidden)
    packed, meta = pack_params(params)          # one-time, out of hot path
    packed = jax.block_until_ready(packed)

    # Small single-tile case (partial lane block: B=8 < TB=128).
    state = jax.random.normal(k_state, (batch, state_size), jnp.float32)
    out = jax.block_until_ready(actor_discrete_forward(state, packed, meta))
    ref = reference_forward(state, params)
    assert out.shape == (batch, action_size)
    assert jnp.allclose(out, ref, atol=1e-4, rtol=1e-5)

    # Larger, non-divisible batch exercising the multi-step "parallel" grid
    # and the masked partial tail block (no pad/slice copies in the hot path).
    big_state = jax.random.normal(k_big, (300, state_size), jnp.float32)
    big_out = jax.block_until_ready(
        actor_discrete_forward(big_state, packed, meta))
    big_ref = reference_forward(big_state, params)
    assert big_out.shape == (300, action_size)
    assert jnp.allclose(big_out, big_ref, atol=1e-4, rtol=1e-5)

    print("KERNEL_OK")
</pallas_src>

<mosaic_0001>
module attributes {stable_mosaic.version = 11 : i64} {
  func.func @kernel(%arg0: i32, %arg1: memref<16x128xf32, #tpu.memory_space<vmem>>, %arg2: memref<528x128xf32, #tpu.memory_space<vmem>>, %arg3: memref<8x128xf32, #tpu.memory_space<vmem>>) attributes {dimension_semantics = [#tpu.dimension_semantics<parallel>], iteration_bounds = array<i64: 1>, scalar_prefetch = 0 : i64, scratch_operands = 0 : i64, tpu.core_type = #tpu.core_type<tc>, window_params = [{transform_indices = @transform_0, window_bounds = array<i64: 16, 128>}, {pipeline_mode = #tpu.pipeline_mode<synchronous>, transform_indices = @transform_1, window_bounds = array<i64: 528, 128>}, {transform_indices = @transform_2, window_bounds = array<i64: 8, 128>}]} {
    %c0 = arith.constant 0 : index
    %c0_0 = arith.constant 0 : index
    %0 = vector.load %arg1[%c0, %c0_0] : memref<16x128xf32, #tpu.memory_space<vmem>>, vector<16x128xf32>
    %c0_1 = arith.constant 0 : index
    %c0_2 = arith.constant 0 : index
    %1 = vector.load %arg2[%c0_1, %c0_2] : memref<528x128xf32, #tpu.memory_space<vmem>>, vector<128x16xf32>
    %c128 = arith.constant 128 : index
    %c0_3 = arith.constant 0 : index
    %2 = vector.load %arg2[%c128, %c0_3] : memref<528x128xf32, #tpu.memory_space<vmem>>, vector<128x128xf32>
    %c256 = arith.constant 256 : index
    %c0_4 = arith.constant 0 : index
    %3 = vector.load %arg2[%c256, %c0_4] : memref<528x128xf32, #tpu.memory_space<vmem>>, vector<8x128xf32>
    %c264 = arith.constant 264 : index
    %c0_5 = arith.constant 0 : index
    %4 = vector.load %arg2[%c264, %c0_5] : memref<528x128xf32, #tpu.memory_space<vmem>>, vector<128x1xf32>
    %c392 = arith.constant 392 : index
    %c0_6 = arith.constant 0 : index
    %5 = vector.load %arg2[%c392, %c0_6] : memref<528x128xf32, #tpu.memory_space<vmem>>, vector<128x1xf32>
    %c520 = arith.constant 520 : index
    %c0_7 = arith.constant 0 : index
    %6 = vector.load %arg2[%c520, %c0_7] : memref<528x128xf32, #tpu.memory_space<vmem>>, vector<8x1xf32>
    %cst = arith.constant dense<0.000000e+00> : vector<128x128xf32>
    %7 = tpu.matmul %1, %0, %cst {dimension_numbers = #tpu.dot_dimension_numbers<[1], [0], [0], [1], [0, 0, 1, 1], [], []>, precision = #tpu.contract_precision<fp32>} : vector<128x16xf32>, vector<16x128xf32>, vector<128x128xf32> -> vector<128x128xf32>
    %8 = vector.broadcast %4 : vector<128x1xf32> to vector<128x128xf32>
    %9 = arith.addf %7, %8 : vector<128x128xf32>
    %cst_8 = arith.constant 0.000000e+00 : f32
    %10 = vector.broadcast %cst_8 : f32 to vector<128x128xf32>
    %11 = arith.maximumf %9, %10 : vector<128x128xf32>
    %cst_9 = arith.constant dense<0.000000e+00> : vector<128x128xf32>
    %12 = tpu.matmul %2, %11, %cst_9 {dimension_numbers = #tpu.dot_dimension_numbers<[1], [0], [0], [1], [0, 0, 1, 1], [], []>, precision = #tpu.contract_precision<fp32>} : vector<128x128xf32>, vector<128x128xf32>, vector<128x128xf32> -> vector<128x128xf32>
    %13 = vector.broadcast %5 : vector<128x1xf32> to vector<128x128xf32>
    %14 = arith.addf %12, %13 : vector<128x128xf32>
    %cst_10 = arith.constant 0.000000e+00 : f32
    %15 = vector.broadcast %cst_10 : f32 to vector<128x128xf32>
    %16 = arith.maximumf %14, %15 : vector<128x128xf32>
    %cst_11 = arith.constant dense<0.000000e+00> : vector<8x128xf32>
    %17 = tpu.matmul %3, %16, %cst_11 {dimension_numbers = #tpu.dot_dimension_numbers<[1], [0], [0], [1], [0, 0, 1, 1], [], []>, precision = #tpu.contract_precision<fp32>} : vector<8x128xf32>, vector<128x128xf32>, vector<8x128xf32> -> vector<8x128xf32>
    %18 = vector.broadcast %6 : vector<8x1xf32> to vector<8x128xf32>
    %19 = arith.addf %17, %18 : vector<8x128xf32>
    %cst_12 = arith.constant dense<0xFF800000> : vector<128xf32>
    %20 = vector.multi_reduction <maximumf>, %19, %cst_12 [0] : vector<8x128xf32> to vector<128xf32>
    %21 = vector.shape_cast %20 : vector<128xf32> to vector<1x128xf32>
    %22 = vector.broadcast %21 : vector<1x128xf32> to vector<8x128xf32>
    %23 = arith.subf %19, %22 : vector<8x128xf32>
    %24 = math.exp %23 : vector<8x128xf32>
    %cst_13 = arith.constant dense<0.000000e+00> : vector<128xf32>
    %25 = vector.multi_reduction <add>, %24, %cst_13 [0] : vector<8x128xf32> to vector<128xf32>
    %26 = vector.shape_cast %25 : vector<128xf32> to vector<1x128xf32>
    %27 = math.log %26 : vector<1x128xf32>
    %28 = vector.broadcast %27 : vector<1x128xf32> to vector<8x128xf32>
    %29 = arith.subf %23, %28 : vector<8x128xf32>
    %c0_14 = arith.constant 0 : index
    %c0_15 = arith.constant 0 : index
    %30 = vector.load %arg3[%c0_14, %c0_15] : memref<8x128xf32, #tpu.memory_space<vmem>>, vector<8x128xf32>
    tpu.vector_store %arg3[%c0_14, %c0_15], %29 {strides = array<i32>} : memref<8x128xf32, #tpu.memory_space<vmem>>, vector<8x128xf32>,
    return
  }
  func.func @transform_0(%arg0: i32) -> (i32, i32) {
    %c0_i32 = arith.constant 0 : i32
    %c0_i32_0 = arith.constant 0 : i32
    return %c0_i32, %arg0 : i32, i32
  }
  func.func @transform_1(%arg0: i32) -> (i32, i32) {
    %c0_i32 = arith.constant 0 : i32
    %c0_i32_0 = arith.constant 0 : i32
    %c0_i32_1 = arith.constant 0 : i32
    return %c0_i32, %c0_i32_0 : i32, i32
  }
  func.func @transform_2(%arg0: i32) -> (i32, i32) {
    %c0_i32 = arith.constant 0 : i32
    %c0_i32_0 = arith.constant 0 : i32
    return %c0_i32, %arg0 : i32, i32
  }
}

</mosaic_0001>

<llo_original>
// kernel: tpu_custom_call.1
$region0: #{tpu_custom_call.1}
  #allocation0 [shape = 'u32[]', space=smem, size = 0x4, offset = 0x4, fixed_abs, tag = 'smem constant byte address 0x4 - core index']
  #allocation1 [shape = 'u32[144,128]{1,0:T(1,128)}', space=vmem, size = 0x12000, scoped, tag = 'internal scratch']
  %s0 = inlined_call_operand.vmem [shape: f32[16,8], index: 0, kind: input, shape index: {}]
  %s1 = inlined_call_operand.hbm [shape: f32[528,128], index: 1, kind: input, shape index: {}]
  %s2 = inlined_call_operand.hbm [shape: f32[8,8], index: 2, kind: output, shape index: {}]
  %s3 = sld [smem:[#allocation0]]
  $region22: #{tpu_custom_call.1} parent=0
    _
  %s5 = ssub.s32 1, %s3
  %s6 = scalar_select 0, %s5, %s3
  $region1: #{tpu_custom_call.1} parent=0
    #allocation2 [shape = 'u8[270336]{0}', space=vmem, size = 0x42000, scoped, tag = 'input window, operand 1, single buffered']
    #allocation3 [shape = 's32[1]{0}', space=sflag, size = 0x4, scoped, tag = 'scoped memory for tpu_custom_call.1']
    #allocation4 [shape = 's32[1]{0}', space=sflag, size = 0x4, scoped, tag = 'scoped memory for tpu_custom_call.1']
    #allocation5 [shape = 'u8[4096]{0}', space=vmem, size = 0x1000, scoped, tag = 'output window, operand 0, single buffered']
    %7 = vsyncpa [#allocation3], 0
    %8 = vsyncpa [#allocation4], 0
    // Predicated region
    $region2: #{tpu_custom_call.1} parent=1 // pred_check
      _
    $region3: #{tpu_custom_call.1} parent=1 // pred_check_branch
      %10 = sbr.rel (0) target = $region5
    $region4: #{tpu_custom_call.1} parent=1 // pred_region
      _
    $region5: #{tpu_custom_call.1} parent=1 // pred_fallthru
      _
    // Predicated region
    $region6: #{tpu_custom_call.1} parent=1 // pred_check
      _
    $region7: #{tpu_custom_call.1} parent=1 // pred_check_branch
      %12 = sbr.rel (0) target = $region9
    $region8: #{tpu_custom_call.1} parent=1 // pred_region
      %s14 = ssub.s32 8448, 8448
      %15 = vsyncadd [#allocation3], %s14
      %s16 = sshll.u32 [#allocation2], 4
      %s17 = int_to_ptr.vmem [resolvable:$true] %s16
      %22 = dma.hbm_to_vmem [thread:$0]  %s1, 8448, %s17, [#allocation3], 128, 128, 8
    $region9: #{tpu_custom_call.1} parent=1 // pred_fallthru
      _
    // Predicated region
    $region10: #{tpu_custom_call.1} parent=1 // pred_check
      _
    $region11: #{tpu_custom_call.1} parent=1 // pred_check_branch
      %24 = sbr.rel (0) target = $region13
    $region12: #{tpu_custom_call.1} parent=1 // pred_region
      %25 = dma.done [#allocation3], 8448
    $region13: #{tpu_custom_call.1} parent=1 // pred_fallthru
      _
    %v26 = vld [vmem:[%s0] sm:$0xff]
    %v27 = vld [vmem:[%s0 + $0x8] sm:$0xff]
    %v28 = vld [vmem:[#allocation2] sm:$0xff]
    %v29 = vld [vmem:[#allocation2 + $0x8] sm:$0xff]
    %v30 = vld [vmem:[#allocation2 + $0x10] sm:$0xff]
    %v31 = vld [vmem:[#allocation2 + $0x18] sm:$0xff]
    %v32 = vld [vmem:[#allocation2 + $0x20] sm:$0xff]
    %v33 = vld [vmem:[#allocation2 + $0x28] sm:$0xff]
    %v34 = vld [vmem:[#allocation2 + $0x30] sm:$0xff]
    %v35 = vld [vmem:[#allocation2 + $0x38] sm:$0xff]
    %v36 = vld [vmem:[#allocation2 + $0x40] sm:$0xff]
    %v37 = vld [vmem:[#allocation2 + $0x48] sm:$0xff]
    %v38 = vld [vmem:[#allocation2 + $0x50] sm:$0xff]
    %v39 = vld [vmem:[#allocation2 + $0x58] sm:$0xff]
    %v40 = vld [vmem:[#allocation2 + $0x60] sm:$0xff]
    %v41 = vld [vmem:[#allocation2 + $0x68] sm:$0xff]
    %v42 = vld [vmem:[#allocation2 + $0x70] sm:$0xff]
    %v43 = vld [vmem:[#allocation2 + $0x78] sm:$0xff]
    %v44 = vld [vmem:[#allocation2 + $0x80] sm:$0xff]
    %v45 = vld [vmem:[#allocation2 + $0x88] sm:$0xff]
    %v46 = vld [vmem:[#allocation2 + $0x90] sm:$0xff]
    %v47 = vld [vmem:[#allocation2 + $0x98] sm:$0xff]
    %v48 = vld [vmem:[#allocation2 + $0xa0] sm:$0xff]
    %v49 = vld [vmem:[#allocation2 + $0xa8] sm:$0xff]
    %v50 = vld [vmem:[#allocation2 + $0xb0] sm:$0xff]
    %v51 = vld [vmem:[#allocation2 + $0xb8] sm:$0xff]
    %v52 = vld [vmem:[#allocation2 + $0xc0] sm:$0xff]
    %v53 = vld [vmem:[#allocation2 + $0xc8] sm:$0xff]
    %v54 = vld [vmem:[#allocation2 + $0xd0] sm:$0xff]
    %v55 = vld [vmem:[#allocation2 + $0xd8] sm:$0xff]
    %v56 = vld [vmem:[#allocation2 + $0xe0] sm:$0xff]
    %v57 = vld [vmem:[#allocation2 + $0xe8] sm:$0xff]
    %v58 = vld [vmem:[#allocation2 + $0xf0] sm:$0xff]
    %v59 = vld [vmem:[#allocation2 + $0xf8] sm:$0xff]
    %v60 = vld [vmem:[#allocation2 + $0x100] sm:$0xff]
    %v61 = vld [vmem:[#allocation2 + $0x108] sm:$0xff]
    %v62 = vld [vmem:[#allocation2 + $0x110] sm:$0xff]
    %v63 = vld [vmem:[#allocation2 + $0x118] sm:$0xff]
    %v64 = vld [vmem:[#allocation2 + $0x120] sm:$0xff]
    %v65 = vld [vmem:[#allocation2 + $0x128] sm:$0xff]
    %v66 = vld [vmem:[#allocation2 + $0x130] sm:$0xff]
    %v67 = vld [vmem:[#allocation2 + $0x138] sm:$0xff]
    %v68 = vld [vmem:[#allocation2 + $0x140] sm:$0xff]
    %v69 = vld [vmem:[#allocation2 + $0x148] sm:$0xff]
    %v70 = vld [vmem:[#allocation2 + $0x150] sm:$0xff]
    %v71 = vld [vmem:[#allocation2 + $0x158] sm:$0xff]
    %v72 = vld [vmem:[#allocation2 + $0x160] sm:$0xff]
    %v73 = vld [vmem:[#allocation2 + $0x168] sm:$0xff]
    %v74 = vld [vmem:[#allocation2 + $0x170] sm:$0xff]
    %v75 = vld [vmem:[#allocation2 + $0x178] sm:$0xff]
    %v76 = vld [vmem:[#allocation2 + $0x180] sm:$0xff]
    %v77 = vld [vmem:[#allocation2 + $0x188] sm:$0xff]
    %v78 = vld [vmem:[#allocation2 + $0x190] sm:$0xff]
    %v79 = vld [vmem:[#allocation2 + $0x198] sm:$0xff]
    %v80 = vld [vmem:[#allocation2 + $0x1a0] sm:$0xff]
    %v81 = vld [vmem:[#allocation2 + $0x1a8] sm:$0xff]
    %v82 = vld [vmem:[#allocation2 + $0x1b0] sm:$0xff]
    %v83 = vld [vmem:[#allocation2 + $0x1b8] sm:$0xff]
    %v84 = vld [vmem:[#allocation2 + $0x1c0] sm:$0xff]
    %v85 = vld [vmem:[#allocation2 + $0x1c8] sm:$0xff]
    %v86 = vld [vmem:[#allocation2 + $0x1d0] sm:$0xff]
    %v87 = vld [vmem:[#allocation2 + $0x1d8] sm:$0xff]
    %v88 = vld [vmem:[#allocation2 + $0x1e0] sm:$0xff]
    %v89 = vld [vmem:[#allocation2 + $0x1e8] sm:$0xff]
    %v90 = vld [vmem:[#allocation2 + $0x1f0] sm:$0xff]
    %v91 = vld [vmem:[#allocation2 + $0x1f8] sm:$0xff]
    %v92 = vld [vmem:[#allocation2 + $0x200] sm:$0xff]
    %v93 = vld [vmem:[#allocation2 + $0x208] sm:$0xff]
    %95 = vset.pattern.permute.xlu0 0
    %96 = vperm.xlu0 %95, %v61
    %v97 = vpop.permute.xlu0 %96
    %100 = vset.pattern.permute.xlu0 0
    %101 = vperm.xlu0 %100, %v62
    %v102 = vpop.permute.xlu0 %101
    %105 = vset.pattern.permute.xlu0 0
    %106 = vperm.xlu0 %105, %v63
    %v107 = vpop.permute.xlu0 %106
    %110 = vset.pattern.permute.xlu0 0
    %111 = vperm.xlu0 %110, %v64
    %v112 = vpop.permute.xlu0 %111
    %115 = vset.pattern.permute.xlu0 0
    %116 = vperm.xlu0 %115, %v65
    %v117 = vpop.permute.xlu0 %116
    %120 = vset.pattern.permute.xlu0 0
    %121 = vperm.xlu0 %120, %v66
    %v122 = vpop.permute.xlu0 %121
    %125 = vset.pattern.permute.xlu0 0
    %126 = vperm.xlu0 %125, %v67
    %v127 = vpop.permute.xlu0 %126
    %130 = vset.pattern.permute.xlu0 0
    %131 = vperm.xlu0 %130, %v68
    %v132 = vpop.permute.xlu0 %131
    %135 = vset.pattern.permute.xlu0 0
    %136 = vperm.xlu0 %135, %v69
    %v137 = vpop.permute.xlu0 %136
    %140 = vset.pattern.permute.xlu0 0
    %141 = vperm.xlu0 %140, %v70
    %v142 = vpop.permute.xlu0 %141
    %145 = vset.pattern.permute.xlu0 0
    %146 = vperm.xlu0 %145, %v71
    %v147 = vpop.permute.xlu0 %146
    %150 = vset.pattern.permute.xlu0 0
    %151 = vperm.xlu0 %150, %v72
    %v152 = vpop.permute.xlu0 %151
    %155 = vset.pattern.permute.xlu0 0
    %156 = vperm.xlu0 %155, %v73
    %v157 = vpop.permute.xlu0 %156
    %160 = vset.pattern.permute.xlu0 0
    %161 = vperm.xlu0 %160, %v74
    %v162 = vpop.permute.xlu0 %161
    %165 = vset.pattern.permute.xlu0 0
    %166 = vperm.xlu0 %165, %v75
    %v167 = vpop.permute.xlu0 %166
    %170 = vset.pattern.permute.xlu0 0
    %171 = vperm.xlu0 %170, %v76
    %v172 = vpop.permute.xlu0 %171
    %vm174 = vcmask 130048
    %v176 = vsel %vm174, %v28, 0
    %v179 = vsel %vm174, %v29, 0
    %v182 = vsel %vm174, %v30, 0
    %v185 = vsel %vm174, %v31, 0
    %v188 = vsel %vm174, %v32, 0
    %v191 = vsel %vm174, %v33, 0
    %v194 = vsel %vm174, %v34, 0
    %v197 = vsel %vm174, %v35, 0
    %v200 = vsel %vm174, %v36, 0
    %v203 = vsel %vm174, %v37, 0
    %v206 = vsel %vm174, %v38, 0
    %v209 = vsel %vm174, %v39, 0
    %v212 = vsel %vm174, %v40, 0
    %v215 = vsel %vm174, %v41, 0
    %v218 = vsel %vm174, %v42, 0
    %v221 = vsel %vm174, %v43, 0
    %223 = vmatprep.subr.mxu0 0.0
    %224 = vmatpush1.msra.mxu0 0.0
    %225 = vmatprep.subr.mxu0 0.0
    %226 = vmatpush1.msra.mxu0 0.0
    %227 = vmatprep.subr.mxu0 0.0
    %228 = vmatpush1.msra.mxu0 0.0
    %229 = vmatprep.subr.mxu0 0.0
    %230 = vmatpush1.msra.mxu0 0.0
    %231 = vmatprep.subr.mxu0 0.0
    %232 = vmatpush1.msra.mxu0 0.0
    %233 = vmatprep.subr.mxu0 0.0
    %234 = vmatpush1.msra.mxu0 0.0
    %235 = vmatprep.subr.mxu0 0.0
    %236 = vmatpush1.msra.mxu0 0.0
    %237 = vmatprep.subr.mxu0 0.0
    %238 = vmatpush1.msra.mxu0 0.0
    %239 = vmatprep.subr.mxu0 0.0
    %240 = vmatpush1.msra.mxu0 0.0
    %241 = vmatprep.subr.mxu0 0.0
    %242 = vmatpush1.msra.mxu0 0.0
    %243 = vmatprep.subr.mxu0 0.0
    %244 = vmatpush1.msra.mxu0 0.0
    %245 = vmatprep.subr.mxu0 0.0
    %246 = vmatpush1.msra.mxu0 0.0
    %247 = vmatprep.subr.mxu0 0.0
    %248 = vmatpush1.msra.mxu0 0.0
    %249 = vmatprep.subr.mxu0 0.0
    %250 = vmatpush1.msra.mxu0 0.0
    %251 = vmatprep.subr.mxu0 0.0
    %v252 = vand.u32 %v27, 4294901760
    %253 = vmatpush1.msra.mxu0 %v252
    %254 = vmatprep.subr.mxu0 0.0
    %v255 = vand.u32 %v26, 4294901760
    %256 = vmatpush1.msra.mxu0 %v255
    %257 = vmatprep.subr.mxu0 0.0
    %258 = vmatpush2.msra.mxu0 0.0
    %259 = vmatprep.subr.mxu0 0.0
    %260 = vmatpush2.msra.mxu0 0.0
    %261 = vmatprep.subr.mxu0 0.0
    %262 = vmatpush2.msra.mxu0 0.0
    %263 = vmatprep.subr.mxu0 0.0
    %264 = vmatpush2.msra.mxu0 0.0
    %265 = vmatprep.subr.mxu0 0.0
    %266 = vmatpush2.msra.mxu0 0.0
    %267 = vmatprep.subr.mxu0 0.0
    %268 = vmatpush2.msra.mxu0 0.0
    %269 = vmatprep.subr.mxu0 0.0
    %270 = vmatpush2.msra.mxu0 0.0
    %271 = vmatprep.subr.mxu0 0.0
    %272 = vmatpush2.msra.mxu0 0.0
    %273 = vmatprep.subr.mxu0 0.0
    %274 = vmatpush2.msra.mxu0 0.0
    %275 = vmatprep.subr.mxu0 0.0
    %276 = vmatpush2.msra.mxu0 0.0
    %277 = vmatprep.subr.mxu0 0.0
    %278 = vmatpush2.msra.mxu0 0.0
    %279 = vmatprep.subr.mxu0 0.0
    %280 = vmatpush2.msra.mxu0 0.0
    %281 = vmatprep.subr.mxu0 0.0
    %282 = vmatpush2.msra.mxu0 0.0
    %283 = vmatprep.subr.mxu0 0.0
    %284 = vmatpush2.msra.mxu0 0.0
    %285 = vmatprep.subr.mxu0 0.0
    %286 = vmatpush2.msra.mxu0 0.0
    %287 = vmatprep.subr.mxu0 0.0
    %288 = vmatpush2.msra.mxu0 0.0
    %289 = vmatprep.mubr.f32.mxu0 0.0
    %v290 = vand.u32 %v176, 4294901760
    %v291 = vsub.f32 %v176, %v290
    %v292 = vand.u32 %v291, 4294901760
    %v293 = vsub.f32 %v291, %v292
    %v294 = vand.u32 %v293, 4294901760
    %295 = vmatmul.mubr.f32.gmra.mxu0 %v294
    %v296 = vpop.f32.mrf.mxu0
    %v297 = vadd.f32 %v97, %v296
    %v298 = vpop.f32.mrf.mxu0
    %299 = vmatprep.mubr.f32.mxu0 0.0
    %v300 = vand.u32 %v179, 4294901760
    %v301 = vsub.f32 %v179, %v300
    %v302 = vand.u32 %v301, 4294901760
    %v303 = vsub.f32 %v301, %v302
    %v304 = vand.u32 %v303, 4294901760
    %305 = vmatmul.mubr.f32.gmra.mxu0 %v304
    %v306 = vpop.f32.mrf.mxu0
    %v307 = vadd.f32 %v102, %v306
    %v308 = vpop.f32.mrf.mxu0
    %309 = vmatprep.mubr.f32.mxu0 0.0
    %v310 = vand.u32 %v182, 4294901760
    %v311 = vsub.f32 %v182, %v310
    %v312 = vand.u32 %v311, 4294901760
    %v313 = vsub.f32 %v311, %v312
    %v314 = vand.u32 %v313, 4294901760
    %315 = vmatmul.mubr.f32.gmra.mxu0 %v314
    %v316 = vpop.f32.mrf.mxu0
    %v317 = vadd.f32 %v107, %v316
    %v318 = vpop.f32.mrf.mxu0
    %319 = vmatprep.mubr.f32.mxu0 0.0
    %v320 = vand.u32 %v185, 4294901760
    %v321 = vsub.f32 %v185, %v320
    %v322 = vand.u32 %v321, 4294901760
    %v323 = vsub.f32 %v321, %v322
    %v324 = vand.u32 %v323, 4294901760
    %325 = vmatmul.mubr.f32.gmra.mxu0 %v324
    %v326 = vpop.f32.mrf.mxu0
    %v327 = vadd.f32 %v112, %v326
    %v328 = vpop.f32.mrf.mxu0
    %329 = vmatprep.mubr.f32.mxu0 0.0
    %v330 = vand.u32 %v188, 4294901760
    %v331 = vsub.f32 %v188, %v330
    %v332 = vand.u32 %v331, 4294901760
    %v333 = vsub.f32 %v331, %v332
    %v334 = vand.u32 %v333, 4294901760
    %335 = vmatmul.mubr.f32.gmra.mxu0 %v334
    %v336 = vpop.f32.mrf.mxu0
    %v337 = vadd.f32 %v117, %v336
    %v338 = vpop.f32.mrf.mxu0
    %339 = vmatprep.mubr.f32.mxu0 0.0
    %v340 = vand.u32 %v191, 4294901760
    %v341 = vsub.f32 %v191, %v340
    %v342 = vand.u32 %v341, 4294901760
    %v343 = vsub.f32 %v341, %v342
    %v344 = vand.u32 %v343, 4294901760
    %345 = vmatmul.mubr.f32.gmra.mxu0 %v344
    %v346 = vpop.f32.mrf.mxu0
    %v347 = vadd.f32 %v122, %v346
    %v348 = vpop.f32.mrf.mxu0
    %349 = vmatprep.mubr.f32.mxu0 0.0
    %v350 = vand.u32 %v194, 4294901760
    %v351 = vsub.f32 %v194, %v350
    %v352 = vand.u32 %v351, 4294901760
    %v353 = vsub.f32 %v351, %v352
    %v354 = vand.u32 %v353, 4294901760
    %355 = vmatmul.mubr.f32.gmra.mxu0 %v354
    %v356 = vpop.f32.mrf.mxu0
    %v357 = vadd.f32 %v127, %v356
    %v358 = vpop.f32.mrf.mxu0
    %359 = vmatprep.mubr.f32.mxu0 0.0
    %v360 = vand.u32 %v197, 4294901760
    %v361 = vsub.f32 %v197, %v360
    %v362 = vand.u32 %v361, 4294901760
    %v363 = vsub.f32 %v361, %v362
    %v364 = vand.u32 %v363, 4294901760
    %365 = vmatmul.mubr.f32.gmra.mxu0 %v364
    %v366 = vpop.f32.mrf.mxu0
    %v367 = vadd.f32 %v132, %v366
    %v368 = vpop.f32.mrf.mxu0
    %369 = vmatprep.mubr.f32.mxu0 0.0
    %v370 = vand.u32 %v200, 4294901760
    %v371 = vsub.f32 %v200, %v370
    %v372 = vand.u32 %v371, 4294901760
    %v373 = vsub.f32 %v371, %v372
    %v374 = vand.u32 %v373, 4294901760
    %375 = vmatmul.mubr.f32.gmra.mxu0 %v374
    %v376 = vpop.f32.mrf.mxu0
    %v377 = vadd.f32 %v137, %v376
    %v378 = vpop.f32.mrf.mxu0
    %379 = vmatprep.mubr.f32.mxu0 0.0
    %v380 = vand.u32 %v203, 4294901760
    %v381 = vsub.f32 %v203, %v380
    %v382 = vand.u32 %v381, 4294901760
    %v383 = vsub.f32 %v381, %v382
    %v384 = vand.u32 %v383, 4294901760
    %385 = vmatmul.mubr.f32.gmra.mxu0 %v384
    %v386 = vpop.f32.mrf.mxu0
    %v387 = vadd.f32 %v142, %v386
    %v388 = vpop.f32.mrf.mxu0
    %389 = vmatprep.mubr.f32.mxu0 0.0
    %v390 = vand.u32 %v206, 4294901760
    %v391 = vsub.f32 %v206, %v390
    %v392 = vand.u32 %v391, 4294901760
    %v393 = vsub.f32 %v391, %v392
    %v394 = vand.u32 %v393, 4294901760
    %395 = vmatmul.mubr.f32.gmra.mxu0 %v394
    %v396 = vpop.f32.mrf.mxu0
    %v397 = vadd.f32 %v147, %v396
    %v398 = vpop.f32.mrf.mxu0
    %399 = vmatprep.mubr.f32.mxu0 0.0
    %v400 = vand.u32 %v209, 4294901760
    %v401 = vsub.f32 %v209, %v400
    %v402 = vand.u32 %v401, 4294901760
    %v403 = vsub.f32 %v401, %v402
    %v404 = vand.u32 %v403, 4294901760
    %405 = vmatmul.mubr.f32.gmra.mxu0 %v404
    %v406 = vpop.f32.mrf.mxu0
    %v407 = vadd.f32 %v152, %v406
    %v408 = vpop.f32.mrf.mxu0
    %409 = vmatprep.mubr.f32.mxu0 0.0
    %v410 = vand.u32 %v212, 4294901760
    %v411 = vsub.f32 %v212, %v410
    %v412 = vand.u32 %v411, 4294901760
    %v413 = vsub.f32 %v411, %v412
    %v414 = vand.u32 %v413, 4294901760
    %415 = vmatmul.mubr.f32.gmra.mxu0 %v414
    %v416 = vpop.f32.mrf.mxu0
    %v417 = vadd.f32 %v157, %v416
    %v418 = vpop.f32.mrf.mxu0
    %419 = vmatprep.mubr.f32.mxu0 0.0
    %v420 = vand.u32 %v215, 4294901760
    %v421 = vsub.f32 %v215, %v420
    %v422 = vand.u32 %v421, 4294901760
    %v423 = vsub.f32 %v421, %v422
    %v424 = vand.u32 %v423, 4294901760
    %425 = vmatmul.mubr.f32.gmra.mxu0 %v424
    %v426 = vpop.f32.mrf.mxu0
    %v427 = vadd.f32 %v162, %v426
    %v428 = vpop.f32.mrf.mxu0
    %429 = vmatprep.mubr.f32.mxu0 0.0
    %v430 = vand.u32 %v218, 4294901760
    %v431 = vsub.f32 %v218, %v430
    %v432 = vand.u32 %v431, 4294901760
    %v433 = vsub.f32 %v431, %v432
    %v434 = vand.u32 %v433, 4294901760
    %435 = vmatmul.mubr.f32.gmra.mxu0 %v434
    %v436 = vpop.f32.mrf.mxu0
    %v437 = vadd.f32 %v167, %v436
    %v438 = vpop.f32.mrf.mxu0
    %439 = vmatprep.mubr.f32.mxu0 0.0
    %v440 = vand.u32 %v221, 4294901760
    %v441 = vsub.f32 %v221, %v440
    %v442 = vand.u32 %v441, 4294901760
    %v443 = vsub.f32 %v441, %v442
    %v444 = vand.u32 %v443, 4294901760
    %445 = vmatmul.mubr.f32.gmra.mxu0 %v444
    %v446 = vpop.f32.mrf.mxu0
    %v447 = vadd.f32 %v172, %v446
    %v448 = vpop.f32.mrf.mxu0
    %449 = vdwg.mxu0
    %450 = vmatprep.subr.mxu0 0.0
    %451 = vmatpush1.msra.mxu0 0.0
    %452 = vmatprep.subr.mxu0 0.0
    %453 = vmatpush1.msra.mxu0 0.0
    %454 = vmatprep.subr.mxu0 0.0
    %455 = vmatpush1.msra.mxu0 0.0
    %456 = vmatprep.subr.mxu0 0.0
    %457 = vmatpush1.msra.mxu0 0.0
    %458 = vmatprep.subr.mxu0 0.0
    %459 = vmatpush1.msra.mxu0 0.0
    %460 = vmatprep.subr.mxu0 0.0
    %461 = vmatpush1.msra.mxu0 0.0
    %462 = vmatprep.subr.mxu0 0.0
    %463 = vmatpush1.msra.mxu0 0.0
    %464 = vmatprep.subr.mxu0 0.0
    %465 = vmatpush1.msra.mxu0 0.0
    %466 = vmatprep.subr.mxu0 0.0
    %467 = vmatpush1.msra.mxu0 0.0
    %468 = vmatprep.subr.mxu0 0.0
    %469 = vmatpush1.msra.mxu0 0.0
    %470 = vmatprep.subr.mxu0 0.0
    %471 = vmatpush1.msra.mxu0 0.0
    %472 = vmatprep.subr.mxu0 0.0
    %473 = vmatpush1.msra.mxu0 0.0
    %474 = vmatprep.subr.mxu0 0.0
    %475 = vmatpush1.msra.mxu0 0.0
    %476 = vmatprep.subr.mxu0 0.0
    %477 = vmatpush1.msra.mxu0 0.0
    %478 = vmatprep.subr.mxu0 0.0
    %v479 = vand.u32 %v27, 4294901760
    %v480 = vsub.f32 %v27, %v479
    %v481 = vand.u32 %v480, 4294901760
    %v482 = vsub.f32 %v480, %v481
    %v483 = vand.u32 %v482, 4294901760
    %484 = vmatpush1.msra.mxu0 %v483
    %485 = vmatprep.subr.mxu0 0.0
    %v486 = vand.u32 %v26, 4294901760
    %v487 = vsub.f32 %v26, %v486
    %v488 = vand.u32 %v487, 4294901760
    %v489 = vsub.f32 %v487, %v488
    %v490 = vand.u32 %v489, 4294901760
    %491 = vmatpush1.msra.mxu0 %v490
    %492 = vmatprep.subr.mxu0 0.0
    %493 = vmatpush2.msra.mxu0 0.0
    %494 = vmatprep.subr.mxu0 0.0
    %495 = vmatpush2.msra.mxu0 0.0
    %496 = vmatprep.subr.mxu0 0.0
    %497 = vmatpush2.msra.mxu0 0.0
    %498 = vmatprep.subr.mxu0 0.0
    %499 = vmatpush2.msra.mxu0 0.0
    %500 = vmatprep.subr.mxu0 0.0
    %501 = vmatpush2.msra.mxu0 0.0
    %502 = vmatprep.subr.mxu0 0.0
    %503 = vmatpush2.msra.mxu0 0.0
    %504 = vmatprep.subr.mxu0 0.0
    %505 = vmatpush2.msra.mxu0 0.0
    %506 = vmatprep.subr.mxu0 0.0
    %507 = vmatpush2.msra.mxu0 0.0
    %508 = vmatprep.subr.mxu0 0.0
    %509 = vmatpush2.msra.mxu0 0.0
    %510 = vmatprep.subr.mxu0 0.0
    %511 = vmatpush2.msra.mxu0 0.0
    %512 = vmatprep.subr.mxu0 0.0
    %513 = vmatpush2.msra.mxu0 0.0
    %514 = vmatprep.subr.mxu0 0.0
    %515 = vmatpush2.msra.mxu0 0.0
    %516 = vmatprep.subr.mxu0 0.0
    %517 = vmatpush2.msra.mxu0 0.0
    %518 = vmatprep.subr.mxu0 0.0
    %519 = vmatpush2.msra.mxu0 0.0
    %520 = vmatprep.subr.mxu0 0.0
    %521 = vmatpush2.msra.mxu0 0.0
    %522 = vmatprep.subr.mxu0 0.0
    %523 = vmatpush2.msra.mxu0 0.0
    %524 = vmatprep.mubr.f32.mxu0 0.0
    %v525 = vand.u32 %v176, 4294901760
    %526 = vmatmul.mubr.f32.gmra.mxu0 %v525
    %v527 = vpop.f32.mrf.mxu0
    %v528 = vadd.f32 %v297, %v527
    %v529 = vpop.f32.mrf.mxu0
    %530 = vmatprep.mubr.f32.mxu0 0.0
    %v531 = vand.u32 %v179, 4294901760
    %532 = vmatmul.mubr.f32.gmra.mxu0 %v531
    %v533 = vpop.f32.mrf.mxu0
    %v534 = vadd.f32 %v307, %v533
    %v535 = vpop.f32.mrf.mxu0
    %536 = vmatprep.mubr.f32.mxu0 0.0
    %v537 = vand.u32 %v182, 4294901760
    %538 = vmatmul.mubr.f32.gmra.mxu0 %v537
    %v539 = vpop.f32.mrf.mxu0
    %v540 = vadd.f32 %v317, %v539
    %v541 = vpop.f32.mrf.mxu0
    %542 = vmatprep.mubr.f32.mxu0 0.0
    %v543 = vand.u32 %v185, 4294901760
    %544 = vmatmul.mubr.f32.gmra.mxu0 %v543
    %v545 = vpop.f32.mrf.mxu0
    %v546 = vadd.f32 %v327, %v545
    %v547 = vpop.f32.mrf.mxu0
    %548 = vmatprep.mubr.f32.mxu0 0.0
    %v549 = vand.u32 %v188, 4294901760
    %550 = vmatmul.mubr.f32.gmra.mxu0 %v549
    %v551 = vpop.f32.mrf.mxu0
    %v552 = vadd.f32 %v337, %v551
    %v553 = vpop.f32.mrf.mxu0
    %554 = vmatprep.mubr.f32.mxu0 0.0
    %v555 = vand.u32 %v191, 4294901760
    %556 = vmatmul.mubr.f32.gmra.mxu0 %v555
    %v557 = vpop.f32.mrf.mxu0
    %v558 = vadd.f32 %v347, %v557
    %v559 = vpop.f32.mrf.mxu0
    %560 = vmatprep.mubr.f32.mxu0 0.0
    %v561 = vand.u32 %v194, 4294901760
    %562 = vmatmul.mubr.f32.gmra.mxu0 %v561
    %v563 = vpop.f32.mrf.mxu0
    %v564 = vadd.f32 %v357, %v563
    %v565 = vpop.f32.mrf.mxu0
    %566 = vmatprep.mubr.f32.mxu0 0.0
    %v567 = vand.u32 %v197, 4294901760
    %568 = vmatmul.mubr.f32.gmra.mxu0 %v567
    %v569 = vpop.f32.mrf.mxu0
    %v570 = vadd.f32 %v367, %v569
    %v571 = vpop.f32.mrf.mxu0
    %572 = vmatprep.mubr.f32.mxu0 0.0
    %v573 = vand.u32 %v200, 4294901760
    %574 = vmatmul.mubr.f32.gmra.mxu0 %v573
    %v575 = vpop.f32.mrf.mxu0
    %v576 = vadd.f32 %v377, %v575
    %v577 = vpop.f32.mrf.mxu0
    %578 = vmatprep.mubr.f32.mxu0 0.0
    %v579 = vand.u32 %v203, 4294901760
    %580 = vmatmul.mubr.f32.gmra.mxu0 %v579
    %v581 = vpop.f32.mrf.mxu0
    %v582 = vadd.f32 %v387, %v581
    %v583 = vpop.f32.mrf.mxu0
    %584 = vmatprep.mubr.f32.mxu0 0.0
    %v585 = vand.u32 %v206, 4294901760
    %586 = vmatmul.mubr.f32.gmra.mxu0 %v585
    %v587 = vpop.f32.mrf.mxu0
    %v588 = vadd.f32 %v397, %v587
    %v589 = vpop.f32.mrf.mxu0
    %590 = vmatprep.mubr.f32.mxu0 0.0
    %v591 = vand.u32 %v209, 4294901760
    %592 = vmatmul.mubr.f32.gmra.mxu0 %v591
    %v593 = vpop.f32.mrf.mxu0
    %v594 = vadd.f32 %v407, %v593
    %v595 = vpop.f32.mrf.mxu0
    %596 = vmatprep.mubr.f32.mxu0 0.0
    %v597 = vand.u32 %v212, 4294901760
    %598 = vmatmul.mubr.f32.gmra.mxu0 %v597
    %v599 = vpop.f32.mrf.mxu0
    %v600 = vadd.f32 %v417, %v599
    %v601 = vpop.f32.mrf.mxu0
    %602 = vmatprep.mubr.f32.mxu0 0.0
    %v603 = vand.u32 %v215, 4294901760
    %604 = vmatmul.mubr.f32.gmra.mxu0 %v603
    %v605 = vpop.f32.mrf.mxu0
    %v606 = vadd.f32 %v427, %v605
    %v607 = vpop.f32.mrf.mxu0
    %608 = vmatprep.mubr.f32.mxu0 0.0
    %v609 = vand.u32 %v218, 4294901760
    %610 = vmatmul.mubr.f32.gmra.mxu0 %v609
    %v611 = vpop.f32.mrf.mxu0
    %v612 = vadd.f32 %v437, %v611
    %v613 = vpop.f32.mrf.mxu0
    %614 = vmatprep.mubr.f32.mxu0 0.0
    %v615 = vand.u32 %v221, 4294901760
    %616 = vmatmul.mubr.f32.gmra.mxu0 %v615
    %v617 = vpop.f32.mrf.mxu0
    %v618 = vadd.f32 %v447, %v617
    %v619 = vpop.f32.mrf.mxu0
    %620 = vdwg.mxu0
    %621 = vmatprep.subr.mxu0 0.0
    %622 = vmatpush1.msra.mxu0 0.0
    %623 = vmatprep.subr.mxu0 0.0
    %624 = vmatpush1.msra.mxu0 0.0
    %625 = vmatprep.subr.mxu0 0.0
    %626 = vmatpush1.msra.mxu0 0.0
    %627 = vmatprep.subr.mxu0 0.0
    %628 = vmatpush1.msra.mxu0 0.0
    %629 = vmatprep.subr.mxu0 0.0
    %630 = vmatpush1.msra.mxu0 0.0
    %631 = vmatprep.subr.mxu0 0.0
    %632 = vmatpush1.msra.mxu0 0.0
    %633 = vmatprep.subr.mxu0 0.0
    %634 = vmatpush1.msra.mxu0 0.0
    %635 = vmatprep.subr.mxu0 0.0
    %636 = vmatpush1.msra.mxu0 0.0
    %637 = vmatprep.subr.mxu0 0.0
    %638 = vmatpush1.msra.mxu0 0.0
    %639 = vmatprep.subr.mxu0 0.0
    %640 = vmatpush1.msra.mxu0 0.0
    %641 = vmatprep.subr.mxu0 0.0
    %642 = vmatpush1.msra.mxu0 0.0
    %643 = vmatprep.subr.mxu0 0.0
    %644 = vmatpush1.msra.mxu0 0.0
    %645 = vmatprep.subr.mxu0 0.0
    %646 = vmatpush1.msra.mxu0 0.0
    %647 = vmatprep.subr.mxu0 0.0
    %648 = vmatpush1.msra.mxu0 0.0
    %649 = vmatprep.subr.mxu0 0.0
    %v650 = vand.u32 %v27, 4294901760
    %v651 = vsub.f32 %v27, %v650
    %652 = vmatpush1.msra.mxu0 %v651
    %653 = vmatprep.subr.mxu0 0.0
    %v654 = vand.u32 %v26, 4294901760
    %v655 = vsub.f32 %v26, %v654
    %656 = vmatpush1.msra.mxu0 %v655
    %657 = vmatprep.subr.mxu0 0.0
    %658 = vmatpush2.msra.mxu0 0.0
    %659 = vmatprep.subr.mxu0 0.0
    %660 = vmatpush2.msra.mxu0 0.0
    %661 = vmatprep.subr.mxu0 0.0
    %662 = vmatpush2.msra.mxu0 0.0
    %663 = vmatprep.subr.mxu0 0.0
    %664 = vmatpush2.msra.mxu0 0.0
    %665 = vmatprep.subr.mxu0 0.0
    %666 = vmatpush2.msra.mxu0 0.0
    %667 = vmatprep.subr.mxu0 0.0
    %668 = vmatpush2.msra.mxu0 0.0
    %669 = vmatprep.subr.mxu0 0.0
    %670 = vmatpush2.msra.mxu0 0.0
    %671 = vmatprep.subr.mxu0 0.0
    %672 = vmatpush2.msra.mxu0 0.0
    %673 = vmatprep.subr.mxu0 0.0
    %674 = vmatpush2.msra.mxu0 0.0
    %675 = vmatprep.subr.mxu0 0.0
    %676 = vmatpush2.msra.mxu0 0.0
    %677 = vmatprep.subr.mxu0 0.0
    %678 = vmatpush2.msra.mxu0 0.0
    %679 = vmatprep.subr.mxu0 0.0
    %680 = vmatpush2.msra.mxu0 0.0
    %681 = vmatprep.subr.mxu0 0.0
    %682 = vmatpush2.msra.mxu0 0.0
    %683 = vmatprep.subr.mxu0 0.0
    %684 = vmatpush2.msra.mxu0 0.0
    %685 = vmatprep.subr.mxu0 0.0
    %686 = vmatpush2.msra.mxu0 0.0
    %687 = vmatprep.subr.mxu0 0.0
    %688 = vmatpush2.msra.mxu0 0.0
    %689 = vmatprep.mubr.f32.mxu0 0.0
    %v690 = vand.u32 %v176, 4294901760
    %v691 = vsub.f32 %v176, %v690
    %692 = vmatmul.mubr.f32.gmra.mxu0 %v691
    %v693 = vpop.f32.mrf.mxu0
    %v694 = vadd.f32 %v528, %v693
    %v695 = vpop.f32.mrf.mxu0
    %696 = vmatprep.mubr.f32.mxu0 0.0
    %v697 = vand.u32 %v179, 4294901760
    %v698 = vsub.f32 %v179, %v697
    %699 = vmatmul.mubr.f32.gmra.mxu0 %v698
    %v700 = vpop.f32.mrf.mxu0
    %v701 = vadd.f32 %v534, %v700
    %v702 = vpop.f32.mrf.mxu0
    %703 = vmatprep.mubr.f32.mxu0 0.0
    %v704 = vand.u32 %v182, 4294901760
    %v705 = vsub.f32 %v182, %v704
    %706 = vmatmul.mubr.f32.gmra.mxu0 %v705
    %v707 = vpop.f32.mrf.mxu0
    %v708 = vadd.f32 %v540, %v707
    %v709 = vpop.f32.mrf.mxu0
    %710 = vmatprep.mubr.f32.mxu0 0.0
    %v711 = vand.u32 %v185, 4294901760
    %v712 = vsub.f32 %v185, %v711
    %713 = vmatmul.mubr.f32.gmra.mxu0 %v712
    %v714 = vpop.f32.mrf.mxu0
    %v715 = vadd.f32 %v546, %v714
    %v716 = vpop.f32.mrf.mxu0
    %717 = vmatprep.mubr.f32.mxu0 0.0
    %v718 = vand.u32 %v188, 4294901760
    %v719 = vsub.f32 %v188, %v718
    %720 = vmatmul.mubr.f32.gmra.mxu0 %v719
    %v721 = vpop.f32.mrf.mxu0
    %v722 = vadd.f32 %v552, %v721
    %v723 = vpop.f32.mrf.mxu0
    %724 = vmatprep.mubr.f32.mxu0 0.0
    %v725 = vand.u32 %v191, 4294901760
    %v726 = vsub.f32 %v191, %v725
    %727 = vmatmul.mubr.f32.gmra.mxu0 %v726
    %v728 = vpop.f32.mrf.mxu0
    %v729 = vadd.f32 %v558, %v728
    %v730 = vpop.f32.mrf.mxu0
    %731 = vmatprep.mubr.f32.mxu0 0.0
    %v732 = vand.u32 %v194, 4294901760
    %v733 = vsub.f32 %v194, %v732
    %734 = vmatmul.mubr.f32.gmra.mxu0 %v733
    %v735 = vpop.f32.mrf.mxu0
    %v736 = vadd.f32 %v564, %v735
    %v737 = vpop.f32.mrf.mxu0
    %738 = vmatprep.mubr.f32.mxu0 0.0
    %v739 = vand.u32 %v197, 4294901760
    %v740 = vsub.f32 %v197, %v739
    %741 = vmatmul.mubr.f32.gmra.mxu0 %v740
    %v742 = vpop.f32.mrf.mxu0
    %v743 = vadd.f32 %v570, %v742
    %v744 = vpop.f32.mrf.mxu0
    %745 = vmatprep.mubr.f32.mxu0 0.0
    %v746 = vand.u32 %v200, 4294901760
    %v747 = vsub.f32 %v200, %v746
    %748 = vmatmul.mubr.f32.gmra.mxu0 %v747
    %v749 = vpop.f32.mrf.mxu0
    %v750 = vadd.f32 %v576, %v749
    %v751 = vpop.f32.mrf.mxu0
    %752 = vmatprep.mubr.f32.mxu0 0.0
    %v753 = vand.u32 %v203, 4294901760
    %v754 = vsub.f32 %v203, %v753
    %755 = vmatmul.mubr.f32.gmra.mxu0 %v754
    %v756 = vpop.f32.mrf.mxu0
    %v757 = vadd.f32 %v582, %v756
    %v758 = vpop.f32.mrf.mxu0
    %759 = vmatprep.mubr.f32.mxu0 0.0
    %v760 = vand.u32 %v206, 4294901760
    %v761 = vsub.f32 %v206, %v760
    %762 = vmatmul.mubr.f32.gmra.mxu0 %v761
    %v763 = vpop.f32.mrf.mxu0
    %v764 = vadd.f32 %v588, %v763
    %v765 = vpop.f32.mrf.mxu0
    %766 = vmatprep.mubr.f32.mxu0 0.0
    %v767 = vand.u32 %v209, 4294901760
    %v768 = vsub.f32 %v209, %v767
    %769 = vmatmul.mubr.f32.gmra.mxu0 %v768
    %v770 = vpop.f32.mrf.mxu0
    %v771 = vadd.f32 %v594, %v770
    %v772 = vpop.f32.mrf.mxu0
    %773 = vmatprep.mubr.f32.mxu0 0.0
    %v774 = vand.u32 %v212, 4294901760
    %v775 = vsub.f32 %v212, %v774
    %776 = vmatmul.mubr.f32.gmra.mxu0 %v775
    %v777 = vpop.f32.mrf.mxu0
    %v778 = vadd.f32 %v600, %v777
    %v779 = vpop.f32.mrf.mxu0
    %780 = vmatprep.mubr.f32.mxu0 0.0
    %v781 = vand.u32 %v215, 4294901760
    %v782 = vsub.f32 %v215, %v781
    %783 = vmatmul.mubr.f32.gmra.mxu0 %v782
    %v784 = vpop.f32.mrf.mxu0
    %v785 = vadd.f32 %v606, %v784
    %v786 = vpop.f32.mrf.mxu0
    %787 = vmatprep.mubr.f32.mxu0 0.0
    %v788 = vand.u32 %v218, 4294901760
    %v789 = vsub.f32 %v218, %v788
    %790 = vmatmul.mubr.f32.gmra.mxu0 %v789
    %v791 = vpop.f32.mrf.mxu0
    %v792 = vadd.f32 %v612, %v791
    %v793 = vpop.f32.mrf.mxu0
    %794 = vmatprep.mubr.f32.mxu0 0.0
    %v795 = vand.u32 %v221, 4294901760
    %v796 = vsub.f32 %v221, %v795
    %797 = vmatmul.mubr.f32.gmra.mxu0 %v796
    %v798 = vpop.f32.mrf.mxu0
    %v799 = vadd.f32 %v618, %v798
    %v800 = vpop.f32.mrf.mxu0
    %801 = vdwg.mxu0
    %802 = vmatprep.subr.mxu0 0.0
    %803 = vmatpush1.msra.mxu0 0.0
    %804 = vmatprep.subr.mxu0 0.0
    %805 = vmatpush1.msra.mxu0 0.0
    %806 = vmatprep.subr.mxu0 0.0
    %807 = vmatpush1.msra.mxu0 0.0
    %808 = vmatprep.subr.mxu0 0.0
    %809 = vmatpush1.msra.mxu0 0.0
    %810 = vmatprep.subr.mxu0 0.0
    %811 = vmatpush1.msra.mxu0 0.0
    %812 = vmatprep.subr.mxu0 0.0
    %813 = vmatpush1.msra.mxu0 0.0
    %814 = vmatprep.subr.mxu0 0.0
    %815 = vmatpush1.msra.mxu0 0.0
    %816 = vmatprep.subr.mxu0 0.0
    %817 = vmatpush1.msra.mxu0 0.0
    %818 = vmatprep.subr.mxu0 0.0
    %819 = vmatpush1.msra.mxu0 0.0
    %820 = vmatprep.subr.mxu0 0.0
    %821 = vmatpush1.msra.mxu0 0.0
    %822 = vmatprep.subr.mxu0 0.0
    %823 = vmatpush1.msra.mxu0 0.0
    %824 = vmatprep.subr.mxu0 0.0
    %825 = vmatpush1.msra.mxu0 0.0
    %826 = vmatprep.subr.mxu0 0.0
    %827 = vmatpush1.msra.mxu0 0.0
    %828 = vmatprep.subr.mxu0 0.0
    %829 = vmatpush1.msra.mxu0 0.0
    %830 = vmatprep.subr.mxu0 0.0
    %v831 = vand.u32 %v27, 4294901760
    %832 = vmatpush1.msra.mxu0 %v831
    %833 = vmatprep.subr.mxu0 0.0
    %v834 = vand.u32 %v26, 4294901760
    %835 = vmatpush1.msra.mxu0 %v834
    %836 = vmatprep.subr.mxu0 0.0
    %837 = vmatpush2.msra.mxu0 0.0
    %838 = vmatprep.subr.mxu0 0.0
    %839 = vmatpush2.msra.mxu0 0.0
    %840 = vmatprep.subr.mxu0 0.0
    %841 = vmatpush2.msra.mxu0 0.0
    %842 = vmatprep.subr.mxu0 0.0
    %843 = vmatpush2.msra.mxu0 0.0
    %844 = vmatprep.subr.mxu0 0.0
    %845 = vmatpush2.msra.mxu0 0.0
    %846 = vmatprep.subr.mxu0 0.0
    %847 = vmatpush2.msra.mxu0 0.0
    %848 = vmatprep.subr.mxu0 0.0
    %849 = vmatpush2.msra.mxu0 0.0
    %850 = vmatprep.subr.mxu0 0.0
    %851 = vmatpush2.msra.mxu0 0.0
    %852 = vmatprep.subr.mxu0 0.0
    %853 = vmatpush2.msra.mxu0 0.0
    %854 = vmatprep.subr.mxu0 0.0
    %855 = vmatpush2.msra.mxu0 0.0
    %856 = vmatprep.subr.mxu0 0.0
    %857 = vmatpush2.msra.mxu0 0.0
    %858 = vmatprep.subr.mxu0 0.0
    %859 = vmatpush2.msra.mxu0 0.0
    %860 = vmatprep.subr.mxu0 0.0
    %861 = vmatpush2.msra.mxu0 0.0
    %862 = vmatprep.subr.mxu0 0.0
    %863 = vmatpush2.msra.mxu0 0.0
    %864 = vmatprep.subr.mxu0 0.0
    %865 = vmatpush2.msra.mxu0 0.0
    %866 = vmatprep.subr.mxu0 0.0
    %867 = vmatpush2.msra.mxu0 0.0
    %868 = vmatprep.mubr.f32.mxu0 0.0
    %v869 = vand.u32 %v176, 4294901760
    %v870 = vsub.f32 %v176, %v869
    %v871 = vand.u32 %v870, 4294901760
    %872 = vmatmul.mubr.f32.gmra.mxu0 %v871
    %v873 = vpop.f32.mrf.mxu0
    %v874 = vadd.f32 %v694, %v873
    %v875 = vpop.f32.mrf.mxu0
    %876 = vmatprep.mubr.f32.mxu0 0.0
    %v877 = vand.u32 %v179, 4294901760
    %v878 = vsub.f32 %v179, %v877
    %v879 = vand.u32 %v878, 4294901760
    %880 = vmatmul.mubr.f32.gmra.mxu0 %v879
    %v881 = vpop.f32.mrf.mxu0
    %v882 = vadd.f32 %v701, %v881
    %v883 = vpop.f32.mrf.mxu0
    %884 = vmatprep.mubr.f32.mxu0 0.0
    %v885 = vand.u32 %v182, 4294901760
    %v886 = vsub.f32 %v182, %v885
    %v887 = vand.u32 %v886, 4294901760
    %888 = vmatmul.mubr.f32.gmra.mxu0 %v887
    %v889 = vpop.f32.mrf.mxu0
    %v890 = vadd.f32 %v708, %v889
    %v891 = vpop.f32.mrf.mxu0
    %892 = vmatprep.mubr.f32.mxu0 0.0
    %v893 = vand.u32 %v185, 4294901760
    %v894 = vsub.f32 %v185, %v893
    %v895 = vand.u32 %v894, 4294901760
    %896 = vmatmul.mubr.f32.gmra.mxu0 %v895
    %v897 = vpop.f32.mrf.mxu0
    %v898 = vadd.f32 %v715, %v897
    %v899 = vpop.f32.mrf.mxu0
    %900 = vmatprep.mubr.f32.mxu0 0.0
    %v901 = vand.u32 %v188, 4294901760
    %v902 = vsub.f32 %v188, %v901
    %v903 = vand.u32 %v902, 4294901760
    %904 = vmatmul.mubr.f32.gmra.mxu0 %v903
    %v905 = vpop.f32.mrf.mxu0
    %v906 = vadd.f32 %v722, %v905
    %v907 = vpop.f32.mrf.mxu0
    %908 = vmatprep.mubr.f32.mxu0 0.0
    %v909 = vand.u32 %v191, 4294901760
    %v910 = vsub.f32 %v191, %v909
    %v911 = vand.u32 %v910, 4294901760
    %912 = vmatmul.mubr.f32.gmra.mxu0 %v911
    %v913 = vpop.f32.mrf.mxu0
    %v914 = vadd.f32 %v729, %v913
    %v915 = vpop.f32.mrf.mxu0
    %916 = vmatprep.mubr.f32.mxu0 0.0
    %v917 = vand.u32 %v194, 4294901760
    %v918 = vsub.f32 %v194, %v917
    %v919 = vand.u32 %v918, 4294901760
    %920 = vmatmul.mubr.f32.gmra.mxu0 %v919
    %v921 = vpop.f32.mrf.mxu0
    %v922 = vadd.f32 %v736, %v921
    %v923 = vpop.f32.mrf.mxu0
    %924 = vmatprep.mubr.f32.mxu0 0.0
    %v925 = vand.u32 %v197, 4294901760
    %v926 = vsub.f32 %v197, %v925
    %v927 = vand.u32 %v926, 4294901760
    %928 = vmatmul.mubr.f32.gmra.mxu0 %v927
    %v929 = vpop.f32.mrf.mxu0
    %v930 = vadd.f32 %v743, %v929
    %v931 = vpop.f32.mrf.mxu0
    %932 = vmatprep.mubr.f32.mxu0 0.0
    %v933 = vand.u32 %v200, 4294901760
    %v934 = vsub.f32 %v200, %v933
    %v935 = vand.u32 %v934, 4294901760
    %936 = vmatmul.mubr.f32.gmra.mxu0 %v935
    %v937 = vpop.f32.mrf.mxu0
    %v938 = vadd.f32 %v750, %v937
    %v939 = vpop.f32.mrf.mxu0
    %940 = vmatprep.mubr.f32.mxu0 0.0
    %v941 = vand.u32 %v203, 4294901760
    %v942 = vsub.f32 %v203, %v941
    %v943 = vand.u32 %v942, 4294901760
    %944 = vmatmul.mubr.f32.gmra.mxu0 %v943
    %v945 = vpop.f32.mrf.mxu0
    %v946 = vadd.f32 %v757, %v945
    %v947 = vpop.f32.mrf.mxu0
    %948 = vmatprep.mubr.f32.mxu0 0.0
    %v949 = vand.u32 %v206, 4294901760
    %v950 = vsub.f32 %v206, %v949
    %v951 = vand.u32 %v950, 4294901760
    %952 = vmatmul.mubr.f32.gmra.mxu0 %v951
    %v953 = vpop.f32.mrf.mxu0
    %v954 = vadd.f32 %v764, %v953
    %v955 = vpop.f32.mrf.mxu0
    %956 = vmatprep.mubr.f32.mxu0 0.0
    %v957 = vand.u32 %v209, 4294901760
    %v958 = vsub.f32 %v209, %v957
    %v959 = vand.u32 %v958, 4294901760
    %960 = vmatmul.mubr.f32.gmra.mxu0 %v959
    %v961 = vpop.f32.mrf.mxu0
    %v962 = vadd.f32 %v771, %v961
    %v963 = vpop.f32.mrf.mxu0
    %964 = vmatprep.mubr.f32.mxu0 0.0
    %v965 = vand.u32 %v212, 4294901760
    %v966 = vsub.f32 %v212, %v965
    %v967 = vand.u32 %v966, 4294901760
    %968 = vmatmul.mubr.f32.gmra.mxu0 %v967
    %v969 = vpop.f32.mrf.mxu0
    %v970 = vadd.f32 %v778, %v969
    %v971 = vpop.f32.mrf.mxu0
    %972 = vmatprep.mubr.f32.mxu0 0.0
    %v973 = vand.u32 %v215, 4294901760
    %v974 = vsub.f32 %v215, %v973
    %v975 = vand.u32 %v974, 4294901760
    %976 = vmatmul.mubr.f32.gmra.mxu0 %v975
    %v977 = vpop.f32.mrf.mxu0
    %v978 = vadd.f32 %v785, %v977
    %v979 = vpop.f32.mrf.mxu0
    %980 = vmatprep.mubr.f32.mxu0 0.0
    %v981 = vand.u32 %v218, 4294901760
    %v982 = vsub.f32 %v218, %v981
    %v983 = vand.u32 %v982, 4294901760
    %984 = vmatmul.mubr.f32.gmra.mxu0 %v983
    %v985 = vpop.f32.mrf.mxu0
    %v986 = vadd.f32 %v792, %v985
    %v987 = vpop.f32.mrf.mxu0
    %988 = vmatprep.mubr.f32.mxu0 0.0
    %v989 = vand.u32 %v221, 4294901760
    %v990 = vsub.f32 %v221, %v989
    %v991 = vand.u32 %v990, 4294901760
    %992 = vmatmul.mubr.f32.gmra.mxu0 %v991
    %v993 = vpop.f32.mrf.mxu0
    %v994 = vadd.f32 %v799, %v993
    %v995 = vpop.f32.mrf.mxu0
    %996 = vdwg.mxu0
    %997 = vmatprep.subr.mxu0 0.0
    %998 = vmatpush1.msra.mxu0 0.0
    %999 = vmatprep.subr.mxu0 0.0
    %1000 = vmatpush1.msra.mxu0 0.0
    %1001 = vmatprep.subr.mxu0 0.0
    %1002 = vmatpush1.msra.mxu0 0.0
    %1003 = vmatprep.subr.mxu0 0.0
    %1004 = vmatpush1.msra.mxu0 0.0
    %1005 = vmatprep.subr.mxu0 0.0
    %1006 = vmatpush1.msra.mxu0 0.0
    %1007 = vmatprep.subr.mxu0 0.0
    %1008 = vmatpush1.msra.mxu0 0.0
    %1009 = vmatprep.subr.mxu0 0.0
    %1010 = vmatpush1.msra.mxu0 0.0
    %1011 = vmatprep.subr.mxu0 0.0
    %1012 = vmatpush1.msra.mxu0 0.0
    %1013 = vmatprep.subr.mxu0 0.0
    %1014 = vmatpush1.msra.mxu0 0.0
    %1015 = vmatprep.subr.mxu0 0.0
    %1016 = vmatpush1.msra.mxu0 0.0
    %1017 = vmatprep.subr.mxu0 0.0
    %1018 = vmatpush1.msra.mxu0 0.0
    %1019 = vmatprep.subr.mxu0 0.0
    %1020 = vmatpush1.msra.mxu0 0.0
    %1021 = vmatprep.subr.mxu0 0.0
    %1022 = vmatpush1.msra.mxu0 0.0
    %1023 = vmatprep.subr.mxu0 0.0
    %1024 = vmatpush1.msra.mxu0 0.0
    %1025 = vmatprep.subr.mxu0 0.0
    %v1026 = vand.u32 %v27, 4294901760
    %v1027 = vsub.f32 %v27, %v1026
    %v1028 = vand.u32 %v1027, 4294901760
    %1029 = vmatpush1.msra.mxu0 %v1028
    %1030 = vmatprep.subr.mxu0 0.0
    %v1031 = vand.u32 %v26, 4294901760
    %v1032 = vsub.f32 %v26, %v1031
    %v1033 = vand.u32 %v1032, 4294901760
    %1034 = vmatpush1.msra.mxu0 %v1033
    %1035 = vmatprep.subr.mxu0 0.0
    %1036 = vmatpush2.msra.mxu0 0.0
    %1037 = vmatprep.subr.mxu0 0.0
    %1038 = vmatpush2.msra.mxu0 0.0
    %1039 = vmatprep.subr.mxu0 0.0
    %1040 = vmatpush2.msra.mxu0 0.0
    %1041 = vmatprep.subr.mxu0 0.0
    %1042 = vmatpush2.msra.mxu0 0.0
    %1043 = vmatprep.subr.mxu0 0.0
    %1044 = vmatpush2.msra.mxu0 0.0
    %1045 = vmatprep.subr.mxu0 0.0
    %1046 = vmatpush2.msra.mxu0 0.0
    %1047 = vmatprep.subr.mxu0 0.0
    %1048 = vmatpush2.msra.mxu0 0.0
    %1049 = vmatprep.subr.mxu0 0.0
    %1050 = vmatpush2.msra.mxu0 0.0
    %1051 = vmatprep.subr.mxu0 0.0
    %1052 = vmatpush2.msra.mxu0 0.0
    %1053 = vmatprep.subr.mxu0 0.0
    %1054 = vmatpush2.msra.mxu0 0.0
    %1055 = vmatprep.subr.mxu0 0.0
    %1056 = vmatpush2.msra.mxu0 0.0
    %1057 = vmatprep.subr.mxu0 0.0
    %1058 = vmatpush2.msra.mxu0 0.0
    %1059 = vmatprep.subr.mxu0 0.0
    %1060 = vmatpush2.msra.mxu0 0.0
    %1061 = vmatprep.subr.mxu0 0.0
    %1062 = vmatpush2.msra.mxu0 0.0
    %1063 = vmatprep.subr.mxu0 0.0
    %1064 = vmatpush2.msra.mxu0 0.0
    %1065 = vmatprep.subr.mxu0 0.0
    %1066 = vmatpush2.msra.mxu0 0.0
    %1067 = vmatprep.mubr.f32.mxu0 0.0
    %v1068 = vand.u32 %v176, 4294901760
    %1069 = vmatmul.mubr.f32.gmra.mxu0 %v1068
    %v1070 = vpop.f32.mrf.mxu0
    %v1071 = vadd.f32 %v874, %v1070
    %v1072 = vpop.f32.mrf.mxu0
    %1073 = vmatprep.mubr.f32.mxu0 0.0
    %v1074 = vand.u32 %v179, 4294901760
    %1075 = vmatmul.mubr.f32.gmra.mxu0 %v1074
    %v1076 = vpop.f32.mrf.mxu0
    %v1077 = vadd.f32 %v882, %v1076
    %v1078 = vpop.f32.mrf.mxu0
    %1079 = vmatprep.mubr.f32.mxu0 0.0
    %v1080 = vand.u32 %v182, 4294901760
    %1081 = vmatmul.mubr.f32.gmra.mxu0 %v1080
    %v1082 = vpop.f32.mrf.mxu0
    %v1083 = vadd.f32 %v890, %v1082
    %v1084 = vpop.f32.mrf.mxu0
    %1085 = vmatprep.mubr.f32.mxu0 0.0
    %v1086 = vand.u32 %v185, 4294901760
    %1087 = vmatmul.mubr.f32.gmra.mxu0 %v1086
    %v1088 = vpop.f32.mrf.mxu0
    %v1089 = vadd.f32 %v898, %v1088
    %v1090 = vpop.f32.mrf.mxu0
    %1091 = vmatprep.mubr.f32.mxu0 0.0
    %v1092 = vand.u32 %v188, 4294901760
    %1093 = vmatmul.mubr.f32.gmra.mxu0 %v1092
    %v1094 = vpop.f32.mrf.mxu0
    %v1095 = vadd.f32 %v906, %v1094
    %v1096 = vpop.f32.mrf.mxu0
    %1097 = vmatprep.mubr.f32.mxu0 0.0
    %v1098 = vand.u32 %v191, 4294901760
    %1099 = vmatmul.mubr.f32.gmra.mxu0 %v1098
    %v1100 = vpop.f32.mrf.mxu0
    %v1101 = vadd.f32 %v914, %v1100
    %v1102 = vpop.f32.mrf.mxu0
    %1103 = vmatprep.mubr.f32.mxu0 0.0
    %v1104 = vand.u32 %v194, 4294901760
    %1105 = vmatmul.mubr.f32.gmra.mxu0 %v1104
    %v1106 = vpop.f32.mrf.mxu0
    %v1107 = vadd.f32 %v922, %v1106
    %v1108 = vpop.f32.mrf.mxu0
    %1109 = vmatprep.mubr.f32.mxu0 0.0
    %v1110 = vand.u32 %v197, 4294901760
    %1111 = vmatmul.mubr.f32.gmra.mxu0 %v1110
    %v1112 = vpop.f32.mrf.mxu0
    %v1113 = vadd.f32 %v930, %v1112
    %v1114 = vpop.f32.mrf.mxu0
    %1115 = vmatprep.mubr.f32.mxu0 0.0
    %v1116 = vand.u32 %v200, 4294901760
    %1117 = vmatmul.mubr.f32.gmra.mxu0 %v1116
    %v1118 = vpop.f32.mrf.mxu0
    %v1119 = vadd.f32 %v938, %v1118
    %v1120 = vpop.f32.mrf.mxu0
    %1121 = vmatprep.mubr.f32.mxu0 0.0
    %v1122 = vand.u32 %v203, 4294901760
    %1123 = vmatmul.mubr.f32.gmra.mxu0 %v1122
    %v1124 = vpop.f32.mrf.mxu0
    %v1125 = vadd.f32 %v946, %v1124
    %v1126 = vpop.f32.mrf.mxu0
    %1127 = vmatprep.mubr.f32.mxu0 0.0
    %v1128 = vand.u32 %v206, 4294901760
    %1129 = vmatmul.mubr.f32.gmra.mxu0 %v1128
    %v1130 = vpop.f32.mrf.mxu0
    %v1131 = vadd.f32 %v954, %v1130
    %v1132 = vpop.f32.mrf.mxu0
    %1133 = vmatprep.mubr.f32.mxu0 0.0
    %v1134 = vand.u32 %v209, 4294901760
    %1135 = vmatmul.mubr.f32.gmra.mxu0 %v1134
    %v1136 = vpop.f32.mrf.mxu0
    %v1137 = vadd.f32 %v962, %v1136
    %v1138 = vpop.f32.mrf.mxu0
    %1139 = vmatprep.mubr.f32.mxu0 0.0
    %v1140 = vand.u32 %v212, 4294901760
    %1141 = vmatmul.mubr.f32.gmra.mxu0 %v1140
    %v1142 = vpop.f32.mrf.mxu0
    %v1143 = vadd.f32 %v970, %v1142
    %v1144 = vpop.f32.mrf.mxu0
    %1145 = vmatprep.mubr.f32.mxu0 0.0
    %v1146 = vand.u32 %v215, 4294901760
    %1147 = vmatmul.mubr.f32.gmra.mxu0 %v1146
    %v1148 = vpop.f32.mrf.mxu0
    %v1149 = vadd.f32 %v978, %v1148
    %v1150 = vpop.f32.mrf.mxu0
    %1151 = vmatprep.mubr.f32.mxu0 0.0
    %v1152 = vand.u32 %v218, 4294901760
    %1153 = vmatmul.mubr.f32.gmra.mxu0 %v1152
    %v1154 = vpop.f32.mrf.mxu0
    %v1155 = vadd.f32 %v986, %v1154
    %v1156 = vpop.f32.mrf.mxu0
    %1157 = vmatprep.mubr.f32.mxu0 0.0
    %v1158 = vand.u32 %v221, 4294901760
    %1159 = vmatmul.mubr.f32.gmra.mxu0 %v1158
    %v1160 = vpop.f32.mrf.mxu0
    %v1161 = vadd.f32 %v994, %v1160
    %v1162 = vpop.f32.mrf.mxu0
    %1163 = vdwg.mxu0
    %1164 = vmatprep.subr.mxu0 0.0
    %1165 = vmatpush1.msra.mxu0 0.0
    %1166 = vmatprep.subr.mxu0 0.0
    %1167 = vmatpush1.msra.mxu0 0.0
    %1168 = vmatprep.subr.mxu0 0.0
    %1169 = vmatpush1.msra.mxu0 0.0
    %1170 = vmatprep.subr.mxu0 0.0
    %1171 = vmatpush1.msra.mxu0 0.0
    %1172 = vmatprep.subr.mxu0 0.0
    %1173 = vmatpush1.msra.mxu0 0.0
    %1174 = vmatprep.subr.mxu0 0.0
    %1175 = vmatpush1.msra.mxu0 0.0
    %1176 = vmatprep.subr.mxu0 0.0
    %1177 = vmatpush1.msra.mxu0 0.0
    %1178 = vmatprep.subr.mxu0 0.0
    %1179 = vmatpush1.msra.mxu0 0.0
    %1180 = vmatprep.subr.mxu0 0.0
    %1181 = vmatpush1.msra.mxu0 0.0
    %1182 = vmatprep.subr.mxu0 0.0
    %1183 = vmatpush1.msra.mxu0 0.0
    %1184 = vmatprep.subr.mxu0 0.0
    %1185 = vmatpush1.msra.mxu0 0.0
    %1186 = vmatprep.subr.mxu0 0.0
    %1187 = vmatpush1.msra.mxu0 0.0
    %1188 = vmatprep.subr.mxu0 0.0
    %1189 = vmatpush1.msra.mxu0 0.0
    %1190 = vmatprep.subr.mxu0 0.0
    %1191 = vmatpush1.msra.mxu0 0.0
    %1192 = vmatprep.subr.mxu0 0.0
    %v1193 = vand.u32 %v27, 4294901760
    %1194 = vmatpush1.msra.mxu0 %v1193
    %1195 = vmatprep.subr.mxu0 0.0
    %v1196 = vand.u32 %v26, 4294901760
    %1197 = vmatpush1.msra.mxu0 %v1196
    %1198 = vmatprep.subr.mxu0 0.0
    %1199 = vmatpush2.msra.mxu0 0.0
    %1200 = vmatprep.subr.mxu0 0.0
    %1201 = vmatpush2.msra.mxu0 0.0
    %1202 = vmatprep.subr.mxu0 0.0
    %1203 = vmatpush2.msra.mxu0 0.0
    %1204 = vmatprep.subr.mxu0 0.0
    %1205 = vmatpush2.msra.mxu0 0.0
    %1206 = vmatprep.subr.mxu0 0.0
    %1207 = vmatpush2.msra.mxu0 0.0
    %1208 = vmatprep.subr.mxu0 0.0
    %1209 = vmatpush2.msra.mxu0 0.0
    %1210 = vmatprep.subr.mxu0 0.0
    %1211 = vmatpush2.msra.mxu0 0.0
    %1212 = vmatprep.subr.mxu0 0.0
    %1213 = vmatpush2.msra.mxu0 0.0
    %1214 = vmatprep.subr.mxu0 0.0
    %1215 = vmatpush2.msra.mxu0 0.0
    %1216 = vmatprep.subr.mxu0 0.0
    %1217 = vmatpush2.msra.mxu0 0.0
    %1218 = vmatprep.subr.mxu0 0.0
    %1219 = vmatpush2.msra.mxu0 0.0
    %1220 = vmatprep.subr.mxu0 0.0
    %1221 = vmatpush2.msra.mxu0 0.0
    %1222 = vmatprep.subr.mxu0 0.0
    %1223 = vmatpush2.msra.mxu0 0.0
    %1224 = vmatprep.subr.mxu0 0.0
    %1225 = vmatpush2.msra.mxu0 0.0
    %1226 = vmatprep.subr.mxu0 0.0
    %1227 = vmatpush2.msra.mxu0 0.0
    %1228 = vmatprep.subr.mxu0 0.0
    %1229 = vmatpush2.msra.mxu0 0.0
    %1230 = vmatprep.mubr.f32.mxu0 0.0
    %v1231 = vand.u32 %v176, 4294901760
    %1232 = vmatmul.mubr.f32.gmra.mxu0 %v1231
    %v1233 = vpop.f32.mrf.mxu0
    %v1234 = vadd.f32 %v1071, %v1233
    %v1235 = vpop.f32.mrf.mxu0
    %1236 = vmatprep.mubr.f32.mxu0 0.0
    %v1237 = vand.u32 %v179, 4294901760
    %1238 = vmatmul.mubr.f32.gmra.mxu0 %v1237
    %v1239 = vpop.f32.mrf.mxu0
    %v1240 = vadd.f32 %v1077, %v1239
    %v1241 = vpop.f32.mrf.mxu0
    %1242 = vmatprep.mubr.f32.mxu0 0.0
    %v1243 = vand.u32 %v182, 4294901760
    %1244 = vmatmul.mubr.f32.gmra.mxu0 %v1243
    %v1245 = vpop.f32.mrf.mxu0
    %v1246 = vadd.f32 %v1083, %v1245
    %v1247 = vpop.f32.mrf.mxu0
    %1248 = vmatprep.mubr.f32.mxu0 0.0
    %v1249 = vand.u32 %v185, 4294901760
    %1250 = vmatmul.mubr.f32.gmra.mxu0 %v1249
    %v1251 = vpop.f32.mrf.mxu0
    %v1252 = vadd.f32 %v1089, %v1251
    %v1253 = vpop.f32.mrf.mxu0
    %1254 = vmatprep.mubr.f32.mxu0 0.0
    %v1255 = vand.u32 %v188, 4294901760
    %1256 = vmatmul.mubr.f32.gmra.mxu0 %v1255
    %v1257 = vpop.f32.mrf.mxu0
    %v1258 = vadd.f32 %v1095, %v1257
    %v1259 = vpop.f32.mrf.mxu0
    %1260 = vmatprep.mubr.f32.mxu0 0.0
    %v1261 = vand.u32 %v191, 4294901760
    %1262 = vmatmul.mubr.f32.gmra.mxu0 %v1261
    %v1263 = vpop.f32.mrf.mxu0
    %v1264 = vadd.f32 %v1101, %v1263
    %v1265 = vpop.f32.mrf.mxu0
    %1266 = vmatprep.mubr.f32.mxu0 0.0
    %v1267 = vand.u32 %v194, 4294901760
    %1268 = vmatmul.mubr.f32.gmra.mxu0 %v1267
    %v1269 = vpop.f32.mrf.mxu0
    %v1270 = vadd.f32 %v1107, %v1269
    %v1271 = vpop.f32.mrf.mxu0
    %1272 = vmatprep.mubr.f32.mxu0 0.0
    %v1273 = vand.u32 %v197, 4294901760
    %1274 = vmatmul.mubr.f32.gmra.mxu0 %v1273
    %v1275 = vpop.f32.mrf.mxu0
    %v1276 = vadd.f32 %v1113, %v1275
    %v1277 = vpop.f32.mrf.mxu0
    %1278 = vmatprep.mubr.f32.mxu0 0.0
    %v1279 = vand.u32 %v200, 4294901760
    %1280 = vmatmul.mubr.f32.gmra.mxu0 %v1279
    %v1281 = vpop.f32.mrf.mxu0
    %v1282 = vadd.f32 %v1119, %v1281
    %v1283 = vpop.f32.mrf.mxu0
    %1284 = vmatprep.mubr.f32.mxu0 0.0
    %v1285 = vand.u32 %v203, 4294901760
    %1286 = vmatmul.mubr.f32.gmra.mxu0 %v1285
    %v1287 = vpop.f32.mrf.mxu0
    %v1288 = vadd.f32 %v1125, %v1287
    %v1289 = vpop.f32.mrf.mxu0
    %1290 = vmatprep.mubr.f32.mxu0 0.0
    %v1291 = vand.u32 %v206, 4294901760
    %1292 = vmatmul.mubr.f32.gmra.mxu0 %v1291
    %v1293 = vpop.f32.mrf.mxu0
    %v1294 = vadd.f32 %v1131, %v1293
    %v1295 = vpop.f32.mrf.mxu0
    %1296 = vmatprep.mubr.f32.mxu0 0.0
    %v1297 = vand.u32 %v209, 4294901760
    %1298 = vmatmul.mubr.f32.gmra.mxu0 %v1297
    %v1299 = vpop.f32.mrf.mxu0
    %v1300 = vadd.f32 %v1137, %v1299
    %v1301 = vpop.f32.mrf.mxu0
    %1302 = vmatprep.mubr.f32.mxu0 0.0
    %v1303 = vand.u32 %v212, 4294901760
    %1304 = vmatmul.mubr.f32.gmra.mxu0 %v1303
    %v1305 = vpop.f32.mrf.mxu0
    %v1306 = vadd.f32 %v1143, %v1305
    %v1307 = vpop.f32.mrf.mxu0
    %1308 = vmatprep.mubr.f32.mxu0 0.0
    %v1309 = vand.u32 %v215, 4294901760
    %1310 = vmatmul.mubr.f32.gmra.mxu0 %v1309
    %v1311 = vpop.f32.mrf.mxu0
    %v1312 = vadd.f32 %v1149, %v1311
    %v1313 = vpop.f32.mrf.mxu0
    %1314 = vmatprep.mubr.f32.mxu0 0.0
    %v1315 = vand.u32 %v218, 4294901760
    %1316 = vmatmul.mubr.f32.gmra.mxu0 %v1315
    %v1317 = vpop.f32.mrf.mxu0
    %v1318 = vadd.f32 %v1155, %v1317
    %v1319 = vpop.f32.mrf.mxu0
    %1320 = vmatprep.mubr.f32.mxu0 0.0
    %v1321 = vand.u32 %v221, 4294901760
    %1322 = vmatmul.mubr.f32.gmra.mxu0 %v1321
    %v1323 = vpop.f32.mrf.mxu0
    %v1324 = vadd.f32 %v1161, %v1323
    %v1325 = vpop.f32.mrf.mxu0
    %1326 = vdwg.mxu0
    %v1327 = vmax.f32 %v1234, 0.0
    %v1328 = vmax.f32 %v1240, 0.0
    %v1329 = vmax.f32 %v1246, 0.0
    %v1330 = vmax.f32 %v1252, 0.0
    %v1331 = vmax.f32 %v1258, 0.0
    %v1332 = vmax.f32 %v1264, 0.0
    %v1333 = vmax.f32 %v1270, 0.0
    %v1334 = vmax.f32 %v1276, 0.0
    %v1335 = vmax.f32 %v1282, 0.0
    %v1336 = vmax.f32 %v1288, 0.0
    %v1337 = vmax.f32 %v1294, 0.0
    %v1338 = vmax.f32 %v1300, 0.0
    %v1339 = vmax.f32 %v1306, 0.0
    %v1340 = vmax.f32 %v1312, 0.0
    %v1341 = vmax.f32 %v1318, 0.0
    %v1342 = vmax.f32 %v1324, 0.0
    %1344 = vset.pattern.permute.xlu0 0
    %1345 = vperm.xlu0 %1344, %v77
    %v1346 = vpop.permute.xlu0 %1345
    %1349 = vset.pattern.permute.xlu0 0
    %1350 = vperm.xlu0 %1349, %v78
    %v1351 = vpop.permute.xlu0 %1350
    %1354 = vset.pattern.permute.xlu0 0
    %1355 = vperm.xlu0 %1354, %v79
    %v1356 = vpop.permute.xlu0 %1355
    %1359 = vset.pattern.permute.xlu0 0
    %1360 = vperm.xlu0 %1359, %v80
    %v1361 = vpop.permute.xlu0 %1360
    %1364 = vset.pattern.permute.xlu0 0
    %1365 = vperm.xlu0 %1364, %v81
    %v1366 = vpop.permute.xlu0 %1365
    %1369 = vset.pattern.permute.xlu0 0
    %1370 = vperm.xlu0 %1369, %v82
    %v1371 = vpop.permute.xlu0 %1370
    %1374 = vset.pattern.permute.xlu0 0
    %1375 = vperm.xlu0 %1374, %v83
    %v1376 = vpop.permute.xlu0 %1375
    %1379 = vset.pattern.permute.xlu0 0
    %1380 = vperm.xlu0 %1379, %v84
    %v1381 = vpop.permute.xlu0 %1380
    %1384 = vset.pattern.permute.xlu0 0
    %1385 = vperm.xlu0 %1384, %v85
    %v1386 = vpop.permute.xlu0 %1385
    %1389 = vset.pattern.permute.xlu0 0
    %1390 = vperm.xlu0 %1389, %v86
    %v1391 = vpop.permute.xlu0 %1390
    %1394 = vset.pattern.permute.xlu0 0
    %1395 = vperm.xlu0 %1394, %v87
    %v1396 = vpop.permute.xlu0 %1395
    %1399 = vset.pattern.permute.xlu0 0
    %1400 = vperm.xlu0 %1399, %v88
    %v1401 = vpop.permute.xlu0 %1400
    %1404 = vset.pattern.permute.xlu0 0
    %1405 = vperm.xlu0 %1404, %v89
    %v1406 = vpop.permute.xlu0 %1405
    %1409 = vset.pattern.permute.xlu0 0
    %1410 = vperm.xlu0 %1409, %v90
    %v1411 = vpop.permute.xlu0 %1410
    %1414 = vset.pattern.permute.xlu0 0
    %1415 = vperm.xlu0 %1414, %v91
    %v1416 = vpop.permute.xlu0 %1415
    %1419 = vset.pattern.permute.xlu0 0
    %1420 = vperm.xlu0 %1419, %v92
    %v1421 = vpop.permute.xlu0 %1420
    %1423 = vmatprep.subr.mxu0 0.0
    %v1424 = vand.u32 %v1342, 4294901760
    %1425 = vmatpush1.msra.mxu0 %v1424
    %1426 = vmatprep.subr.mxu0 0.0
    %v1427 = vand.u32 %v1341, 4294901760
    %1428 = vmatpush1.msra.mxu0 %v1427
    %1429 = vmatprep.subr.mxu0 0.0
    %v1430 = vand.u32 %v1340, 4294901760
    %1431 = vmatpush1.msra.mxu0 %v1430
    %1432 = vmatprep.subr.mxu0 0.0
    %v1433 = vand.u32 %v1339, 4294901760
    %1434 = vmatpush1.msra.mxu0 %v1433
    %1435 = vmatprep.subr.mxu0 0.0
    %v1436 = vand.u32 %v1338, 4294901760
    %1437 = vmatpush1.msra.mxu0 %v1436
    %1438 = vmatprep.subr.mxu0 0.0
    %v1439 = vand.u32 %v1337, 4294901760
    %1440 = vmatpush1.msra.mxu0 %v1439
    %1441 = vmatprep.subr.mxu0 0.0
    %v1442 = vand.u32 %v1336, 4294901760
    %1443 = vmatpush1.msra.mxu0 %v1442
    %1444 = vmatprep.subr.mxu0 0.0
    %v1445 = vand.u32 %v1335, 4294901760
    %1446 = vmatpush1.msra.mxu0 %v1445
    %1447 = vmatprep.subr.mxu0 0.0
    %v1448 = vand.u32 %v1334, 4294901760
    %1449 = vmatpush1.msra.mxu0 %v1448
    %1450 = vmatprep.subr.mxu0 0.0
    %v1451 = vand.u32 %v1333, 4294901760
    %1452 = vmatpush1.msra.mxu0 %v1451
    %1453 = vmatprep.subr.mxu0 0.0
    %v1454 = vand.u32 %v1332, 4294901760
    %1455 = vmatpush1.msra.mxu0 %v1454
    %1456 = vmatprep.subr.mxu0 0.0
    %v1457 = vand.u32 %v1331, 4294901760
    %1458 = vmatpush1.msra.mxu0 %v1457
    %1459 = vmatprep.subr.mxu0 0.0
    %v1460 = vand.u32 %v1330, 4294901760
    %1461 = vmatpush1.msra.mxu0 %v1460
    %1462 = vmatprep.subr.mxu0 0.0
    %v1463 = vand.u32 %v1329, 4294901760
    %1464 = vmatpush1.msra.mxu0 %v1463
    %1465 = vmatprep.subr.mxu0 0.0
    %v1466 = vand.u32 %v1328, 4294901760
    %1467 = vmatpush1.msra.mxu0 %v1466
    %1468 = vmatprep.subr.mxu0 0.0
    %v1469 = vand.u32 %v1327, 4294901760
    %1470 = vmatpush1.msra.mxu0 %v1469
    %1471 = vmatprep.subr.mxu0 0.0
    %1472 = vmatpush2.msra.mxu0 0.0
    %1473 = vmatprep.subr.mxu0 0.0
    %1474 = vmatpush2.msra.mxu0 0.0
    %1475 = vmatprep.subr.mxu0 0.0
    %1476 = vmatpush2.msra.mxu0 0.0
    %1477 = vmatprep.subr.mxu0 0.0
    %1478 = vmatpush2.msra.mxu0 0.0
    %1479 = vmatprep.subr.mxu0 0.0
    %1480 = vmatpush2.msra.mxu0 0.0
    %1481 = vmatprep.subr.mxu0 0.0
    %1482 = vmatpush2.msra.mxu0 0.0
    %1483 = vmatprep.subr.mxu0 0.0
    %1484 = vmatpush2.msra.mxu0 0.0
    %1485 = vmatprep.subr.mxu0 0.0
    %1486 = vmatpush2.msra.mxu0 0.0
    %1487 = vmatprep.subr.mxu0 0.0
    %1488 = vmatpush2.msra.mxu0 0.0
    %1489 = vmatprep.subr.mxu0 0.0
    %1490 = vmatpush2.msra.mxu0 0.0
    %1491 = vmatprep.subr.mxu0 0.0
    %1492 = vmatpush2.msra.mxu0 0.0
    %1493 = vmatprep.subr.mxu0 0.0
    %1494 = vmatpush2.msra.mxu0 0.0
    %1495 = vmatprep.subr.mxu0 0.0
    %1496 = vmatpush2.msra.mxu0 0.0
    %1497 = vmatprep.subr.mxu0 0.0
    %1498 = vmatpush2.msra.mxu0 0.0
    %1499 = vmatprep.subr.mxu0 0.0
    %1500 = vmatpush2.msra.mxu0 0.0
    %1501 = vmatprep.subr.mxu0 0.0
    %1502 = vmatpush2.msra.mxu0 0.0
    %1503 = vmatprep.mubr.f32.mxu0 0.0
    %v1504 = vand.u32 %v44, 4294901760
    %v1505 = vsub.f32 %v44, %v1504
    %v1506 = vand.u32 %v1505, 4294901760
    %v1507 = vsub.f32 %v1505, %v1506
    %v1508 = vand.u32 %v1507, 4294901760
    %1509 = vmatmul.mubr.f32.gmra.mxu0 %v1508
    %v1510 = vpop.f32.mrf.mxu0
    %v1511 = vadd.f32 %v1346, %v1510
    %v1512 = vpop.f32.mrf.mxu0
    %1513 = vmatprep.mubr.f32.mxu0 0.0
    %v1514 = vand.u32 %v45, 4294901760
    %v1515 = vsub.f32 %v45, %v1514
    %v1516 = vand.u32 %v1515, 4294901760
    %v1517 = vsub.f32 %v1515, %v1516
    %v1518 = vand.u32 %v1517, 4294901760
    %1519 = vmatmul.mubr.f32.gmra.mxu0 %v1518
    %v1520 = vpop.f32.mrf.mxu0
    %v1521 = vadd.f32 %v1351, %v1520
    %v1522 = vpop.f32.mrf.mxu0
    %1523 = vmatprep.mubr.f32.mxu0 0.0
    %v1524 = vand.u32 %v46, 4294901760
    %v1525 = vsub.f32 %v46, %v1524
    %v1526 = vand.u32 %v1525, 4294901760
    %v1527 = vsub.f32 %v1525, %v1526
    %v1528 = vand.u32 %v1527, 4294901760
    %1529 = vmatmul.mubr.f32.gmra.mxu0 %v1528
    %v1530 = vpop.f32.mrf.mxu0
    %v1531 = vadd.f32 %v1356, %v1530
    %v1532 = vpop.f32.mrf.mxu0
    %1533 = vmatprep.mubr.f32.mxu0 0.0
    %v1534 = vand.u32 %v47, 4294901760
    %v1535 = vsub.f32 %v47, %v1534
    %v1536 = vand.u32 %v1535, 4294901760
    %v1537 = vsub.f32 %v1535, %v1536
    %v1538 = vand.u32 %v1537, 4294901760
    %1539 = vmatmul.mubr.f32.gmra.mxu0 %v1538
    %v1540 = vpop.f32.mrf.mxu0
    %v1541 = vadd.f32 %v1361, %v1540
    %v1542 = vpop.f32.mrf.mxu0
    %1543 = vmatprep.mubr.f32.mxu0 0.0
    %v1544 = vand.u32 %v48, 4294901760
    %v1545 = vsub.f32 %v48, %v1544
    %v1546 = vand.u32 %v1545, 4294901760
    %v1547 = vsub.f32 %v1545, %v1546
    %v1548 = vand.u32 %v1547, 4294901760
    %1549 = vmatmul.mubr.f32.gmra.mxu0 %v1548
    %v1550 = vpop.f32.mrf.mxu0
    %v1551 = vadd.f32 %v1366, %v1550
    %v1552 = vpop.f32.mrf.mxu0
    %1553 = vmatprep.mubr.f32.mxu0 0.0
    %v1554 = vand.u32 %v49, 4294901760
    %v1555 = vsub.f32 %v49, %v1554
    %v1556 = vand.u32 %v1555, 4294901760
    %v1557 = vsub.f32 %v1555, %v1556
    %v1558 = vand.u32 %v1557, 4294901760
    %1559 = vmatmul.mubr.f32.gmra.mxu0 %v1558
    %v1560 = vpop.f32.mrf.mxu0
    %v1561 = vadd.f32 %v1371, %v1560
    %v1562 = vpop.f32.mrf.mxu0
    %1563 = vmatprep.mubr.f32.mxu0 0.0
    %v1564 = vand.u32 %v50, 4294901760
    %v1565 = vsub.f32 %v50, %v1564
    %v1566 = vand.u32 %v1565, 4294901760
    %v1567 = vsub.f32 %v1565, %v1566
    %v1568 = vand.u32 %v1567, 4294901760
    %1569 = vmatmul.mubr.f32.gmra.mxu0 %v1568
    %v1570 = vpop.f32.mrf.mxu0
    %v1571 = vadd.f32 %v1376, %v1570
    %v1572 = vpop.f32.mrf.mxu0
    %1573 = vmatprep.mubr.f32.mxu0 0.0
    %v1574 = vand.u32 %v51, 4294901760
    %v1575 = vsub.f32 %v51, %v1574
    %v1576 = vand.u32 %v1575, 4294901760
    %v1577 = vsub.f32 %v1575, %v1576
    %v1578 = vand.u32 %v1577, 4294901760
    %1579 = vmatmul.mubr.f32.gmra.mxu0 %v1578
    %v1580 = vpop.f32.mrf.mxu0
    %v1581 = vadd.f32 %v1381, %v1580
    %v1582 = vpop.f32.mrf.mxu0
    %1583 = vmatprep.mubr.f32.mxu0 0.0
    %v1584 = vand.u32 %v52, 4294901760
    %v1585 = vsub.f32 %v52, %v1584
    %v1586 = vand.u32 %v1585, 4294901760
    %v1587 = vsub.f32 %v1585, %v1586
    %v1588 = vand.u32 %v1587, 4294901760
    %1589 = vmatmul.mubr.f32.gmra.mxu0 %v1588
    %v1590 = vpop.f32.mrf.mxu0
    %v1591 = vadd.f32 %v1386, %v1590
    %v1592 = vpop.f32.mrf.mxu0
    %1593 = vmatprep.mubr.f32.mxu0 0.0
    %v1594 = vand.u32 %v53, 4294901760
    %v1595 = vsub.f32 %v53, %v1594
    %v1596 = vand.u32 %v1595, 4294901760
    %v1597 = vsub.f32 %v1595, %v1596
    %v1598 = vand.u32 %v1597, 4294901760
    %1599 = vmatmul.mubr.f32.gmra.mxu0 %v1598
    %v1600 = vpop.f32.mrf.mxu0
    %v1601 = vadd.f32 %v1391, %v1600
    %v1602 = vpop.f32.mrf.mxu0
    %1603 = vmatprep.mubr.f32.mxu0 0.0
    %v1604 = vand.u32 %v54, 4294901760
    %v1605 = vsub.f32 %v54, %v1604
    %v1606 = vand.u32 %v1605, 4294901760
    %v1607 = vsub.f32 %v1605, %v1606
    %v1608 = vand.u32 %v1607, 4294901760
    %1609 = vmatmul.mubr.f32.gmra.mxu0 %v1608
    %v1610 = vpop.f32.mrf.mxu0
    %v1611 = vadd.f32 %v1396, %v1610
    %v1612 = vpop.f32.mrf.mxu0
    %1613 = vmatprep.mubr.f32.mxu0 0.0
    %v1614 = vand.u32 %v55, 4294901760
    %v1615 = vsub.f32 %v55, %v1614
    %v1616 = vand.u32 %v1615, 4294901760
    %v1617 = vsub.f32 %v1615, %v1616
    %v1618 = vand.u32 %v1617, 4294901760
    %1619 = vmatmul.mubr.f32.gmra.mxu0 %v1618
    %v1620 = vpop.f32.mrf.mxu0
    %v1621 = vadd.f32 %v1401, %v1620
    %v1622 = vpop.f32.mrf.mxu0
    %1623 = vmatprep.mubr.f32.mxu0 0.0
    %v1624 = vand.u32 %v56, 4294901760
    %v1625 = vsub.f32 %v56, %v1624
    %v1626 = vand.u32 %v1625, 4294901760
    %v1627 = vsub.f32 %v1625, %v1626
    %v1628 = vand.u32 %v1627, 4294901760
    %1629 = vmatmul.mubr.f32.gmra.mxu0 %v1628
    %v1630 = vpop.f32.mrf.mxu0
    %v1631 = vadd.f32 %v1406, %v1630
    %v1632 = vpop.f32.mrf.mxu0
    %1633 = vmatprep.mubr.f32.mxu0 0.0
    %v1634 = vand.u32 %v57, 4294901760
    %v1635 = vsub.f32 %v57, %v1634
    %v1636 = vand.u32 %v1635, 4294901760
    %v1637 = vsub.f32 %v1635, %v1636
    %v1638 = vand.u32 %v1637, 4294901760
    %1639 = vmatmul.mubr.f32.gmra.mxu0 %v1638
    %v1640 = vpop.f32.mrf.mxu0
    %v1641 = vadd.f32 %v1411, %v1640
    %v1642 = vpop.f32.mrf.mxu0
    %1643 = vmatprep.mubr.f32.mxu0 0.0
    %v1644 = vand.u32 %v58, 4294901760
    %v1645 = vsub.f32 %v58, %v1644
    %v1646 = vand.u32 %v1645, 4294901760
    %v1647 = vsub.f32 %v1645, %v1646
    %v1648 = vand.u32 %v1647, 4294901760
    %1649 = vmatmul.mubr.f32.gmra.mxu0 %v1648
    %v1650 = vpop.f32.mrf.mxu0
    %v1651 = vadd.f32 %v1416, %v1650
    %v1652 = vpop.f32.mrf.mxu0
    %1653 = vmatprep.mubr.f32.mxu0 0.0
    %v1654 = vand.u32 %v59, 4294901760
    %v1655 = vsub.f32 %v59, %v1654
    %v1656 = vand.u32 %v1655, 4294901760
    %v1657 = vsub.f32 %v1655, %v1656
    %v1658 = vand.u32 %v1657, 4294901760
    %1659 = vmatmul.mubr.f32.gmra.mxu0 %v1658
    %v1660 = vpop.f32.mrf.mxu0
    %v1661 = vadd.f32 %v1421, %v1660
    %v1662 = vpop.f32.mrf.mxu0
    %1663 = vdwg.mxu0
    %1664 = vmatprep.subr.mxu0 0.0
    %v1665 = vand.u32 %v1342, 4294901760
    %v1666 = vsub.f32 %v1342, %v1665
    %v1667 = vand.u32 %v1666, 4294901760
    %v1668 = vsub.f32 %v1666, %v1667
    %v1669 = vand.u32 %v1668, 4294901760
    %1670 = vmatpush1.msra.mxu0 %v1669
    %1671 = vmatprep.subr.mxu0 0.0
    %v1672 = vand.u32 %v1341, 4294901760
    %v1673 = vsub.f32 %v1341, %v1672
    %v1674 = vand.u32 %v1673, 4294901760
    %v1675 = vsub.f32 %v1673, %v1674
    %v1676 = vand.u32 %v1675, 4294901760
    %1677 = vmatpush1.msra.mxu0 %v1676
    %1678 = vmatprep.subr.mxu0 0.0
    %v1679 = vand.u32 %v1340, 4294901760
    %v1680 = vsub.f32 %v1340, %v1679
    %v1681 = vand.u32 %v1680, 4294901760
    %v1682 = vsub.f32 %v1680, %v1681
    %v1683 = vand.u32 %v1682, 4294901760
    %1684 = vmatpush1.msra.mxu0 %v1683
    %1685 = vmatprep.subr.mxu0 0.0
    %v1686 = vand.u32 %v1339, 4294901760
    %v1687 = vsub.f32 %v1339, %v1686
    %v1688 = vand.u32 %v1687, 4294901760
    %v1689 = vsub.f32 %v1687, %v1688
    %v1690 = vand.u32 %v1689, 4294901760
    %1691 = vmatpush1.msra.mxu0 %v1690
    %1692 = vmatprep.subr.mxu0 0.0
    %v1693 = vand.u32 %v1338, 4294901760
    %v1694 = vsub.f32 %v1338, %v1693
    %v1695 = vand.u32 %v1694, 4294901760
    %v1696 = vsub.f32 %v1694, %v1695
    %v1697 = vand.u32 %v1696, 4294901760
    %1698 = vmatpush1.msra.mxu0 %v1697
    %1699 = vmatprep.subr.mxu0 0.0
    %v1700 = vand.u32 %v1337, 4294901760
    %v1701 = vsub.f32 %v1337, %v1700
    %v1702 = vand.u32 %v1701, 4294901760
    %v1703 = vsub.f32 %v1701, %v1702
    %v1704 = vand.u32 %v1703, 4294901760
    %1705 = vmatpush1.msra.mxu0 %v1704
    %1706 = vmatprep.subr.mxu0 0.0
    %v1707 = vand.u32 %v1336, 4294901760
    %v1708 = vsub.f32 %v1336, %v1707
    %v1709 = vand.u32 %v1708, 4294901760
    %v1710 = vsub.f32 %v1708, %v1709
    %v1711 = vand.u32 %v1710, 4294901760
    %1712 = vmatpush1.msra.mxu0 %v1711
    %1713 = vmatprep.subr.mxu0 0.0
    %v1714 = vand.u32 %v1335, 4294901760
    %v1715 = vsub.f32 %v1335, %v1714
    %v1716 = vand.u32 %v1715, 4294901760
    %v1717 = vsub.f32 %v1715, %v1716
    %v1718 = vand.u32 %v1717, 4294901760
    %1719 = vmatpush1.msra.mxu0 %v1718
    %1720 = vmatprep.subr.mxu0 0.0
    %v1721 = vand.u32 %v1334, 4294901760
    %v1722 = vsub.f32 %v1334, %v1721
    %v1723 = vand.u32 %v1722, 4294901760
    %v1724 = vsub.f32 %v1722, %v1723
    %v1725 = vand.u32 %v1724, 4294901760
    %1726 = vmatpush1.msra.mxu0 %v1725
    %1727 = vmatprep.subr.mxu0 0.0
    %v1728 = vand.u32 %v1333, 4294901760
    %v1729 = vsub.f32 %v1333, %v1728
    %v1730 = vand.u32 %v1729, 4294901760
    %v1731 = vsub.f32 %v1729, %v1730
    %v1732 = vand.u32 %v1731, 4294901760
    %1733 = vmatpush1.msra.mxu0 %v1732
    %1734 = vmatprep.subr.mxu0 0.0
    %v1735 = vand.u32 %v1332, 4294901760
    %v1736 = vsub.f32 %v1332, %v1735
    %v1737 = vand.u32 %v1736, 4294901760
    %v1738 = vsub.f32 %v1736, %v1737
    %v1739 = vand.u32 %v1738, 4294901760
    %1740 = vmatpush1.msra.mxu0 %v1739
    %1741 = vmatprep.subr.mxu0 0.0
    %v1742 = vand.u32 %v1331, 4294901760
    %v1743 = vsub.f32 %v1331, %v1742
    %v1744 = vand.u32 %v1743, 4294901760
    %v1745 = vsub.f32 %v1743, %v1744
    %v1746 = vand.u32 %v1745, 4294901760
    %1747 = vmatpush1.msra.mxu0 %v1746
    %1748 = vmatprep.subr.mxu0 0.0
    %v1749 = vand.u32 %v1330, 4294901760
    %v1750 = vsub.f32 %v1330, %v1749
    %v1751 = vand.u32 %v1750, 4294901760
    %v1752 = vsub.f32 %v1750, %v1751
    %v1753 = vand.u32 %v1752, 4294901760
    %1754 = vmatpush1.msra.mxu0 %v1753
    %1755 = vmatprep.subr.mxu0 0.0
    %v1756 = vand.u32 %v1329, 4294901760
    %v1757 = vsub.f32 %v1329, %v1756
    %v1758 = vand.u32 %v1757, 4294901760
    %v1759 = vsub.f32 %v1757, %v1758
    %v1760 = vand.u32 %v1759, 4294901760
    %1761 = vmatpush1.msra.mxu0 %v1760
    %1762 = vmatprep.subr.mxu0 0.0
    %v1763 = vand.u32 %v1328, 4294901760
    %v1764 = vsub.f32 %v1328, %v1763
    %v1765 = vand.u32 %v1764, 4294901760
    %v1766 = vsub.f32 %v1764, %v1765
    %v1767 = vand.u32 %v1766, 4294901760
    %1768 = vmatpush1.msra.mxu0 %v1767
    %1769 = vmatprep.subr.mxu0 0.0
    %v1770 = vand.u32 %v1327, 4294901760
    %v1771 = vsub.f32 %v1327, %v1770
    %v1772 = vand.u32 %v1771, 4294901760
    %v1773 = vsub.f32 %v1771, %v1772
    %v1774 = vand.u32 %v1773, 4294901760
    %1775 = vmatpush1.msra.mxu0 %v1774
    %1776 = vmatprep.subr.mxu0 0.0
    %1777 = vmatpush2.msra.mxu0 0.0
    %1778 = vmatprep.subr.mxu0 0.0
    %1779 = vmatpush2.msra.mxu0 0.0
    %1780 = vmatprep.subr.mxu0 0.0
    %1781 = vmatpush2.msra.mxu0 0.0
    %1782 = vmatprep.subr.mxu0 0.0
    %1783 = vmatpush2.msra.mxu0 0.0
    %1784 = vmatprep.subr.mxu0 0.0
    %1785 = vmatpush2.msra.mxu0 0.0
    %1786 = vmatprep.subr.mxu0 0.0
    %1787 = vmatpush2.msra.mxu0 0.0
    %1788 = vmatprep.subr.mxu0 0.0
    %1789 = vmatpush2.msra.mxu0 0.0
    %1790 = vmatprep.subr.mxu0 0.0
    %1791 = vmatpush2.msra.mxu0 0.0
    %1792 = vmatprep.subr.mxu0 0.0
    %1793 = vmatpush2.msra.mxu0 0.0
    %1794 = vmatprep.subr.mxu0 0.0
    %1795 = vmatpush2.msra.mxu0 0.0
    %1796 = vmatprep.subr.mxu0 0.0
    %1797 = vmatpush2.msra.mxu0 0.0
    %1798 = vmatprep.subr.mxu0 0.0
    %1799 = vmatpush2.msra.mxu0 0.0
    %1800 = vmatprep.subr.mxu0 0.0
    %1801 = vmatpush2.msra.mxu0 0.0
    %1802 = vmatprep.subr.mxu0 0.0
    %1803 = vmatpush2.msra.mxu0 0.0
    %1804 = vmatprep.subr.mxu0 0.0
    %1805 = vmatpush2.msra.mxu0 0.0
    %1806 = vmatprep.subr.mxu0 0.0
    %1807 = vmatpush2.msra.mxu0 0.0
    %1808 = vmatprep.mubr.f32.mxu0 0.0
    %v1809 = vand.u32 %v44, 4294901760
    %1810 = vmatmul.mubr.f32.gmra.mxu0 %v1809
    %v1811 = vpop.f32.mrf.mxu0
    %v1812 = vadd.f32 %v1511, %v1811
    %v1813 = vpop.f32.mrf.mxu0
    %1814 = vmatprep.mubr.f32.mxu0 0.0
    %v1815 = vand.u32 %v45, 4294901760
    %1816 = vmatmul.mubr.f32.gmra.mxu0 %v1815
    %v1817 = vpop.f32.mrf.mxu0
    %v1818 = vadd.f32 %v1521, %v1817
    %v1819 = vpop.f32.mrf.mxu0
    %1820 = vmatprep.mubr.f32.mxu0 0.0
    %v1821 = vand.u32 %v46, 4294901760
    %1822 = vmatmul.mubr.f32.gmra.mxu0 %v1821
    %v1823 = vpop.f32.mrf.mxu0
    %v1824 = vadd.f32 %v1531, %v1823
    %v1825 = vpop.f32.mrf.mxu0
    %1826 = vmatprep.mubr.f32.mxu0 0.0
    %v1827 = vand.u32 %v47, 4294901760
    %1828 = vmatmul.mubr.f32.gmra.mxu0 %v1827
    %v1829 = vpop.f32.mrf.mxu0
    %v1830 = vadd.f32 %v1541, %v1829
    %v1831 = vpop.f32.mrf.mxu0
    %1832 = vmatprep.mubr.f32.mxu0 0.0
    %v1833 = vand.u32 %v48, 4294901760
    %1834 = vmatmul.mubr.f32.gmra.mxu0 %v1833
    %v1835 = vpop.f32.mrf.mxu0
    %v1836 = vadd.f32 %v1551, %v1835
    %v1837 = vpop.f32.mrf.mxu0
    %1838 = vmatprep.mubr.f32.mxu0 0.0
    %v1839 = vand.u32 %v49, 4294901760
    %1840 = vmatmul.mubr.f32.gmra.mxu0 %v1839
    %v1841 = vpop.f32.mrf.mxu0
    %v1842 = vadd.f32 %v1561, %v1841
    %v1843 = vpop.f32.mrf.mxu0
    %1844 = vmatprep.mubr.f32.mxu0 0.0
    %v1845 = vand.u32 %v50, 4294901760
    %1846 = vmatmul.mubr.f32.gmra.mxu0 %v1845
    %v1847 = vpop.f32.mrf.mxu0
    %v1848 = vadd.f32 %v1571, %v1847
    %v1849 = vpop.f32.mrf.mxu0
    %1850 = vmatprep.mubr.f32.mxu0 0.0
    %v1851 = vand.u32 %v51, 4294901760
    %1852 = vmatmul.mubr.f32.gmra.mxu0 %v1851
    %v1853 = vpop.f32.mrf.mxu0
    %v1854 = vadd.f32 %v1581, %v1853
    %v1855 = vpop.f32.mrf.mxu0
    %1856 = vmatprep.mubr.f32.mxu0 0.0
    %v1857 = vand.u32 %v52, 4294901760
    %1858 = vmatmul.mubr.f32.gmra.mxu0 %v1857
    %v1859 = vpop.f32.mrf.mxu0
    %v1860 = vadd.f32 %v1591, %v1859
    %v1861 = vpop.f32.mrf.mxu0
    %1862 = vmatprep.mubr.f32.mxu0 0.0
    %v1863 = vand.u32 %v53, 4294901760
    %1864 = vmatmul.mubr.f32.gmra.mxu0 %v1863
    %v1865 = vpop.f32.mrf.mxu0
    %v1866 = vadd.f32 %v1601, %v1865
    %v1867 = vpop.f32.mrf.mxu0
    %1868 = vmatprep.mubr.f32.mxu0 0.0
    %v1869 = vand.u32 %v54, 4294901760
    %1870 = vmatmul.mubr.f32.gmra.mxu0 %v1869
    %v1871 = vpop.f32.mrf.mxu0
    %v1872 = vadd.f32 %v1611, %v1871
    %v1873 = vpop.f32.mrf.mxu0
    %1874 = vmatprep.mubr.f32.mxu0 0.0
    %v1875 = vand.u32 %v55, 4294901760
    %1876 = vmatmul.mubr.f32.gmra.mxu0 %v1875
    %v1877 = vpop.f32.mrf.mxu0
    %v1878 = vadd.f32 %v1621, %v1877
    %v1879 = vpop.f32.mrf.mxu0
    %1880 = vmatprep.mubr.f32.mxu0 0.0
    %v1881 = vand.u32 %v56, 4294901760
    %1882 = vmatmul.mubr.f32.gmra.mxu0 %v1881
    %v1883 = vpop.f32.mrf.mxu0
    %v1884 = vadd.f32 %v1631, %v1883
    %v1885 = vpop.f32.mrf.mxu0
    %1886 = vmatprep.mubr.f32.mxu0 0.0
    %v1887 = vand.u32 %v57, 4294901760
    %1888 = vmatmul.mubr.f32.gmra.mxu0 %v1887
    %v1889 = vpop.f32.mrf.mxu0
    %v1890 = vadd.f32 %v1641, %v1889
    %v1891 = vpop.f32.mrf.mxu0
    %1892 = vmatprep.mubr.f32.mxu0 0.0
    %v1893 = vand.u32 %v58, 4294901760
    %1894 = vmatmul.mubr.f32.gmra.mxu0 %v1893
    %v1895 = vpop.f32.mrf.mxu0
    %v1896 = vadd.f32 %v1651, %v1895
    %v1897 = vpop.f32.mrf.mxu0
    %1898 = vmatprep.mubr.f32.mxu0 0.0
    %v1899 = vand.u32 %v59, 4294901760
    %1900 = vmatmul.mubr.f32.gmra.mxu0 %v1899
    %v1901 = vpop.f32.mrf.mxu0
    %v1902 = vadd.f32 %v1661, %v1901
    %v1903 = vpop.f32.mrf.mxu0
    %1904 = vdwg.mxu0
    %1905 = vmatprep.subr.mxu0 0.0
    %v1906 = vand.u32 %v1342, 4294901760
    %v1907 = vsub.f32 %v1342, %v1906
    %1908 = vmatpush1.msra.mxu0 %v1907
    %1909 = vmatprep.subr.mxu0 0.0
    %v1910 = vand.u32 %v1341, 4294901760
    %v1911 = vsub.f32 %v1341, %v1910
    %1912 = vmatpush1.msra.mxu0 %v1911
    %1913 = vmatprep.subr.mxu0 0.0
    %v1914 = vand.u32 %v1340, 4294901760
    %v1915 = vsub.f32 %v1340, %v1914
    %1916 = vmatpush1.msra.mxu0 %v1915
    %1917 = vmatprep.subr.mxu0 0.0
    %v1918 = vand.u32 %v1339, 4294901760
    %v1919 = vsub.f32 %v1339, %v1918
    %1920 = vmatpush1.msra.mxu0 %v1919
    %1921 = vmatprep.subr.mxu0 0.0
    %v1922 = vand.u32 %v1338, 4294901760
    %v1923 = vsub.f32 %v1338, %v1922
    %1924 = vmatpush1.msra.mxu0 %v1923
    %1925 = vmatprep.subr.mxu0 0.0
    %v1926 = vand.u32 %v1337, 4294901760
    %v1927 = vsub.f32 %v1337, %v1926
    %1928 = vmatpush1.msra.mxu0 %v1927
    %1929 = vmatprep.subr.mxu0 0.0
    %v1930 = vand.u32 %v1336, 4294901760
    %v1931 = vsub.f32 %v1336, %v1930
    %1932 = vmatpush1.msra.mxu0 %v1931
    %1933 = vmatprep.subr.mxu0 0.0
    %v1934 = vand.u32 %v1335, 4294901760
    %v1935 = vsub.f32 %v1335, %v1934
    %1936 = vmatpush1.msra.mxu0 %v1935
    %1937 = vmatprep.subr.mxu0 0.0
    %v1938 = vand.u32 %v1334, 4294901760
    %v1939 = vsub.f32 %v1334, %v1938
    %1940 = vmatpush1.msra.mxu0 %v1939
    %1941 = vmatprep.subr.mxu0 0.0
    %v1942 = vand.u32 %v1333, 4294901760
    %v1943 = vsub.f32 %v1333, %v1942
    %1944 = vmatpush1.msra.mxu0 %v1943
    %1945 = vmatprep.subr.mxu0 0.0
    %v1946 = vand.u32 %v1332, 4294901760
    %v1947 = vsub.f32 %v1332, %v1946
    %1948 = vmatpush1.msra.mxu0 %v1947
    %1949 = vmatprep.subr.mxu0 0.0
    %v1950 = vand.u32 %v1331, 4294901760
    %v1951 = vsub.f32 %v1331, %v1950
    %1952 = vmatpush1.msra.mxu0 %v1951
    %1953 = vmatprep.subr.mxu0 0.0
    %v1954 = vand.u32 %v1330, 4294901760
    %v1955 = vsub.f32 %v1330, %v1954
    %1956 = vmatpush1.msra.mxu0 %v1955
    %1957 = vmatprep.subr.mxu0 0.0
    %v1958 = vand.u32 %v1329, 4294901760
    %v1959 = vsub.f32 %v1329, %v1958
    %1960 = vmatpush1.msra.mxu0 %v1959
    %1961 = vmatprep.subr.mxu0 0.0
    %v1962 = vand.u32 %v1328, 4294901760
    %v1963 = vsub.f32 %v1328, %v1962
    %1964 = vmatpush1.msra.mxu0 %v1963
    %1965 = vmatprep.subr.mxu0 0.0
    %v1966 = vand.u32 %v1327, 4294901760
    %v1967 = vsub.f32 %v1327, %v1966
    %1968 = vmatpush1.msra.mxu0 %v1967
    %1969 = vmatprep.subr.mxu0 0.0
    %1970 = vmatpush2.msra.mxu0 0.0
    %1971 = vmatprep.subr.mxu0 0.0
    %1972 = vmatpush2.msra.mxu0 0.0
    %1973 = vmatprep.subr.mxu0 0.0
    %1974 = vmatpush2.msra.mxu0 0.0
    %1975 = vmatprep.subr.mxu0 0.0
    %1976 = vmatpush2.msra.mxu0 0.0
    %1977 = vmatprep.subr.mxu0 0.0
    %1978 = vmatpush2.msra.mxu0 0.0
    %1979 = vmatprep.subr.mxu0 0.0
    %1980 = vmatpush2.msra.mxu0 0.0
    %1981 = vmatprep.subr.mxu0 0.0
    %1982 = vmatpush2.msra.mxu0 0.0
    %1983 = vmatprep.subr.mxu0 0.0
    %1984 = vmatpush2.msra.mxu0 0.0
    %1985 = vmatprep.subr.mxu0 0.0
    %1986 = vmatpush2.msra.mxu0 0.0
    %1987 = vmatprep.subr.mxu0 0.0
    %1988 = vmatpush2.msra.mxu0 0.0
    %1989 = vmatprep.subr.mxu0 0.0
    %1990 = vmatpush2.msra.mxu0 0.0
    %1991 = vmatprep.subr.mxu0 0.0
    %1992 = vmatpush2.msra.mxu0 0.0
    %1993 = vmatprep.subr.mxu0 0.0
    %1994 = vmatpush2.msra.mxu0 0.0
    %1995 = vmatprep.subr.mxu0 0.0
    %1996 = vmatpush2.msra.mxu0 0.0
    %1997 = vmatprep.subr.mxu0 0.0
    %1998 = vmatpush2.msra.mxu0 0.0
    %1999 = vmatprep.subr.mxu0 0.0
    %2000 = vmatpush2.msra.mxu0 0.0
    %2001 = vmatprep.mubr.f32.mxu0 0.0
    %v2002 = vand.u32 %v44, 4294901760
    %v2003 = vsub.f32 %v44, %v2002
    %2004 = vmatmul.mubr.f32.gmra.mxu0 %v2003
    %v2005 = vpop.f32.mrf.mxu0
    %v2006 = vadd.f32 %v1812, %v2005
    %v2007 = vpop.f32.mrf.mxu0
    %2008 = vmatprep.mubr.f32.mxu0 0.0
    %v2009 = vand.u32 %v45, 4294901760
    %v2010 = vsub.f32 %v45, %v2009
    %2011 = vmatmul.mubr.f32.gmra.mxu0 %v2010
    %v2012 = vpop.f32.mrf.mxu0
    %v2013 = vadd.f32 %v1818, %v2012
    %v2014 = vpop.f32.mrf.mxu0
    %2015 = vmatprep.mubr.f32.mxu0 0.0
    %v2016 = vand.u32 %v46, 4294901760
    %v2017 = vsub.f32 %v46, %v2016
    %2018 = vmatmul.mubr.f32.gmra.mxu0 %v2017
    %v2019 = vpop.f32.mrf.mxu0
    %v2020 = vadd.f32 %v1824, %v2019
    %v2021 = vpop.f32.mrf.mxu0
    %2022 = vmatprep.mubr.f32.mxu0 0.0
    %v2023 = vand.u32 %v47, 4294901760
    %v2024 = vsub.f32 %v47, %v2023
    %2025 = vmatmul.mubr.f32.gmra.mxu0 %v2024
    %v2026 = vpop.f32.mrf.mxu0
    %v2027 = vadd.f32 %v1830, %v2026
    %v2028 = vpop.f32.mrf.mxu0
    %2029 = vmatprep.mubr.f32.mxu0 0.0
    %v2030 = vand.u32 %v48, 4294901760
    %v2031 = vsub.f32 %v48, %v2030
    %2032 = vmatmul.mubr.f32.gmra.mxu0 %v2031
    %v2033 = vpop.f32.mrf.mxu0
    %v2034 = vadd.f32 %v1836, %v2033
    %v2035 = vpop.f32.mrf.mxu0
    %2036 = vmatprep.mubr.f32.mxu0 0.0
    %v2037 = vand.u32 %v49, 4294901760
    %v2038 = vsub.f32 %v49, %v2037
    %2039 = vmatmul.mubr.f32.gmra.mxu0 %v2038
    %v2040 = vpop.f32.mrf.mxu0
    %v2041 = vadd.f32 %v1842, %v2040
    %v2042 = vpop.f32.mrf.mxu0
    %2043 = vmatprep.mubr.f32.mxu0 0.0
    %v2044 = vand.u32 %v50, 4294901760
    %v2045 = vsub.f32 %v50, %v2044
    %2046 = vmatmul.mubr.f32.gmra.mxu0 %v2045
    %v2047 = vpop.f32.mrf.mxu0
    %v2048 = vadd.f32 %v1848, %v2047
    %v2049 = vpop.f32.mrf.mxu0
    %2050 = vmatprep.mubr.f32.mxu0 0.0
    %v2051 = vand.u32 %v51, 4294901760
    %v2052 = vsub.f32 %v51, %v2051
    %2053 = vmatmul.mubr.f32.gmra.mxu0 %v2052
    %v2054 = vpop.f32.mrf.mxu0
    %v2055 = vadd.f32 %v1854, %v2054
    %v2056 = vpop.f32.mrf.mxu0
    %2057 = vmatprep.mubr.f32.mxu0 0.0
    %v2058 = vand.u32 %v52, 4294901760
    %v2059 = vsub.f32 %v52, %v2058
    %2060 = vmatmul.mubr.f32.gmra.mxu0 %v2059
    %v2061 = vpop.f32.mrf.mxu0
    %v2062 = vadd.f32 %v1860, %v2061
    %v2063 = vpop.f32.mrf.mxu0
    %2064 = vmatprep.mubr.f32.mxu0 0.0
    %v2065 = vand.u32 %v53, 4294901760
    %v2066 = vsub.f32 %v53, %v2065
    %2067 = vmatmul.mubr.f32.gmra.mxu0 %v2066
    %v2068 = vpop.f32.mrf.mxu0
    %v2069 = vadd.f32 %v1866, %v2068
    %v2070 = vpop.f32.mrf.mxu0
    %2071 = vmatprep.mubr.f32.mxu0 0.0
    %v2072 = vand.u32 %v54, 4294901760
    %v2073 = vsub.f32 %v54, %v2072
    %2074 = vmatmul.mubr.f32.gmra.mxu0 %v2073
    %v2075 = vpop.f32.mrf.mxu0
    %v2076 = vadd.f32 %v1872, %v2075
    %v2077 = vpop.f32.mrf.mxu0
    %2078 = vmatprep.mubr.f32.mxu0 0.0
    %v2079 = vand.u32 %v55, 4294901760
    %v2080 = vsub.f32 %v55, %v2079
    %2081 = vmatmul.mubr.f32.gmra.mxu0 %v2080
    %v2082 = vpop.f32.mrf.mxu0
    %v2083 = vadd.f32 %v1878, %v2082
    %v2084 = vpop.f32.mrf.mxu0
    %2085 = vmatprep.mubr.f32.mxu0 0.0
    %v2086 = vand.u32 %v56, 4294901760
    %v2087 = vsub.f32 %v56, %v2086
    %2088 = vmatmul.mubr.f32.gmra.mxu0 %v2087
    %v2089 = vpop.f32.mrf.mxu0
    %v2090 = vadd.f32 %v1884, %v2089
    %v2091 = vpop.f32.mrf.mxu0
    %2092 = vmatprep.mubr.f32.mxu0 0.0
    %v2093 = vand.u32 %v57, 4294901760
    %v2094 = vsub.f32 %v57, %v2093
    %2095 = vmatmul.mubr.f32.gmra.mxu0 %v2094
    %v2096 = vpop.f32.mrf.mxu0
    %v2097 = vadd.f32 %v1890, %v2096
    %v2098 = vpop.f32.mrf.mxu0
    %2099 = vmatprep.mubr.f32.mxu0 0.0
    %v2100 = vand.u32 %v58, 4294901760
    %v2101 = vsub.f32 %v58, %v2100
    %2102 = vmatmul.mubr.f32.gmra.mxu0 %v2101
    %v2103 = vpop.f32.mrf.mxu0
    %v2104 = vadd.f32 %v1896, %v2103
    %v2105 = vpop.f32.mrf.mxu0
    %2106 = vmatprep.mubr.f32.mxu0 0.0
    %v2107 = vand.u32 %v59, 4294901760
    %v2108 = vsub.f32 %v59, %v2107
    %2109 = vmatmul.mubr.f32.gmra.mxu0 %v2108
    %v2110 = vpop.f32.mrf.mxu0
    %v2111 = vadd.f32 %v1902, %v2110
    %v2112 = vpop.f32.mrf.mxu0
    %2113 = vdwg.mxu0
    %2114 = vmatprep.subr.mxu0 0.0
    %v2115 = vand.u32 %v1342, 4294901760
    %2116 = vmatpush1.msra.mxu0 %v2115
    %2117 = vmatprep.subr.mxu0 0.0
    %v2118 = vand.u32 %v1341, 4294901760
    %2119 = vmatpush1.msra.mxu0 %v2118
    %2120 = vmatprep.subr.mxu0 0.0
    %v2121 = vand.u32 %v1340, 4294901760
    %2122 = vmatpush1.msra.mxu0 %v2121
    %2123 = vmatprep.subr.mxu0 0.0
    %v2124 = vand.u32 %v1339, 4294901760
    %2125 = vmatpush1.msra.mxu0 %v2124
    %2126 = vmatprep.subr.mxu0 0.0
    %v2127 = vand.u32 %v1338, 4294901760
    %2128 = vmatpush1.msra.mxu0 %v2127
    %2129 = vmatprep.subr.mxu0 0.0
    %v2130 = vand.u32 %v1337, 4294901760
    %2131 = vmatpush1.msra.mxu0 %v2130
    %2132 = vmatprep.subr.mxu0 0.0
    %v2133 = vand.u32 %v1336, 4294901760
    %2134 = vmatpush1.msra.mxu0 %v2133
    %2135 = vmatprep.subr.mxu0 0.0
    %v2136 = vand.u32 %v1335, 4294901760
    %2137 = vmatpush1.msra.mxu0 %v2136
    %2138 = vmatprep.subr.mxu0 0.0
    %v2139 = vand.u32 %v1334, 4294901760
    %2140 = vmatpush1.msra.mxu0 %v2139
    %2141 = vmatprep.subr.mxu0 0.0
    %v2142 = vand.u32 %v1333, 4294901760
    %2143 = vmatpush1.msra.mxu0 %v2142
    %2144 = vmatprep.subr.mxu0 0.0
    %v2145 = vand.u32 %v1332, 4294901760
    %2146 = vmatpush1.msra.mxu0 %v2145
    %2147 = vmatprep.subr.mxu0 0.0
    %v2148 = vand.u32 %v1331, 4294901760
    %2149 = vmatpush1.msra.mxu0 %v2148
    %2150 = vmatprep.subr.mxu0 0.0
    %v2151 = vand.u32 %v1330, 4294901760
    %2152 = vmatpush1.msra.mxu0 %v2151
    %2153 = vmatprep.subr.mxu0 0.0
    %v2154 = vand.u32 %v1329, 4294901760
    %2155 = vmatpush1.msra.mxu0 %v2154
    %2156 = vmatprep.subr.mxu0 0.0
    %v2157 = vand.u32 %v1328, 4294901760
    %2158 = vmatpush1.msra.mxu0 %v2157
    %2159 = vmatprep.subr.mxu0 0.0
    %v2160 = vand.u32 %v1327, 4294901760
    %2161 = vmatpush1.msra.mxu0 %v2160
    %2162 = vmatprep.subr.mxu0 0.0
    %2163 = vmatpush2.msra.mxu0 0.0
    %2164 = vmatprep.subr.mxu0 0.0
    %2165 = vmatpush2.msra.mxu0 0.0
    %2166 = vmatprep.subr.mxu0 0.0
    %2167 = vmatpush2.msra.mxu0 0.0
    %2168 = vmatprep.subr.mxu0 0.0
    %2169 = vmatpush2.msra.mxu0 0.0
    %2170 = vmatprep.subr.mxu0 0.0
    %2171 = vmatpush2.msra.mxu0 0.0
    %2172 = vmatprep.subr.mxu0 0.0
    %2173 = vmatpush2.msra.mxu0 0.0
    %2174 = vmatprep.subr.mxu0 0.0
    %2175 = vmatpush2.msra.mxu0 0.0
    %2176 = vmatprep.subr.mxu0 0.0
    %2177 = vmatpush2.msra.mxu0 0.0
    %2178 = vmatprep.subr.mxu0 0.0
    %2179 = vmatpush2.msra.mxu0 0.0
    %2180 = vmatprep.subr.mxu0 0.0
    %2181 = vmatpush2.msra.mxu0 0.0
    %2182 = vmatprep.subr.mxu0 0.0
    %2183 = vmatpush2.msra.mxu0 0.0
    %2184 = vmatprep.subr.mxu0 0.0
    %2185 = vmatpush2.msra.mxu0 0.0
    %2186 = vmatprep.subr.mxu0 0.0
    %2187 = vmatpush2.msra.mxu0 0.0
    %2188 = vmatprep.subr.mxu0 0.0
    %2189 = vmatpush2.msra.mxu0 0.0
    %2190 = vmatprep.subr.mxu0 0.0
    %2191 = vmatpush2.msra.mxu0 0.0
    %2192 = vmatprep.subr.mxu0 0.0
    %2193 = vmatpush2.msra.mxu0 0.0
    %2194 = vmatprep.mubr.f32.mxu0 0.0
    %v2195 = vand.u32 %v44, 4294901760
    %v2196 = vsub.f32 %v44, %v2195
    %v2197 = vand.u32 %v2196, 4294901760
    %2198 = vmatmul.mubr.f32.gmra.mxu0 %v2197
    %v2199 = vpop.f32.mrf.mxu0
    %v2200 = vadd.f32 %v2006, %v2199
    %v2201 = vpop.f32.mrf.mxu0
    %2202 = vmatprep.mubr.f32.mxu0 0.0
    %v2203 = vand.u32 %v45, 4294901760
    %v2204 = vsub.f32 %v45, %v2203
    %v2205 = vand.u32 %v2204, 4294901760
    %2206 = vmatmul.mubr.f32.gmra.mxu0 %v2205
    %v2207 = vpop.f32.mrf.mxu0
    %v2208 = vadd.f32 %v2013, %v2207
    %v2209 = vpop.f32.mrf.mxu0
    %2210 = vmatprep.mubr.f32.mxu0 0.0
    %v2211 = vand.u32 %v46, 4294901760
    %v2212 = vsub.f32 %v46, %v2211
    %v2213 = vand.u32 %v2212, 4294901760
    %2214 = vmatmul.mubr.f32.gmra.mxu0 %v2213
    %v2215 = vpop.f32.mrf.mxu0
    %v2216 = vadd.f32 %v2020, %v2215
    %v2217 = vpop.f32.mrf.mxu0
    %2218 = vmatprep.mubr.f32.mxu0 0.0
    %v2219 = vand.u32 %v47, 4294901760
    %v2220 = vsub.f32 %v47, %v2219
    %v2221 = vand.u32 %v2220, 4294901760
    %2222 = vmatmul.mubr.f32.gmra.mxu0 %v2221
    %v2223 = vpop.f32.mrf.mxu0
    %v2224 = vadd.f32 %v2027, %v2223
    %v2225 = vpop.f32.mrf.mxu0
    %2226 = vmatprep.mubr.f32.mxu0 0.0
    %v2227 = vand.u32 %v48, 4294901760
    %v2228 = vsub.f32 %v48, %v2227
    %v2229 = vand.u32 %v2228, 4294901760
    %2230 = vmatmul.mubr.f32.gmra.mxu0 %v2229
    %v2231 = vpop.f32.mrf.mxu0
    %v2232 = vadd.f32 %v2034, %v2231
    %v2233 = vpop.f32.mrf.mxu0
    %2234 = vmatprep.mubr.f32.mxu0 0.0
    %v2235 = vand.u32 %v49, 4294901760
    %v2236 = vsub.f32 %v49, %v2235
    %v2237 = vand.u32 %v2236, 4294901760
    %2238 = vmatmul.mubr.f32.gmra.mxu0 %v2237
    %v2239 = vpop.f32.mrf.mxu0
    %v2240 = vadd.f32 %v2041, %v2239
    %v2241 = vpop.f32.mrf.mxu0
    %2242 = vmatprep.mubr.f32.mxu0 0.0
    %v2243 = vand.u32 %v50, 4294901760
    %v2244 = vsub.f32 %v50, %v2243
    %v2245 = vand.u32 %v2244, 4294901760
    %2246 = vmatmul.mubr.f32.gmra.mxu0 %v2245
    %v2247 = vpop.f32.mrf.mxu0
    %v2248 = vadd.f32 %v2048, %v2247
    %v2249 = vpop.f32.mrf.mxu0
    %2250 = vmatprep.mubr.f32.mxu0 0.0
    %v2251 = vand.u32 %v51, 4294901760
    %v2252 = vsub.f32 %v51, %v2251
    %v2253 = vand.u32 %v2252, 4294901760
    %2254 = vmatmul.mubr.f32.gmra.mxu0 %v2253
    %v2255 = vpop.f32.mrf.mxu0
    %v2256 = vadd.f32 %v2055, %v2255
    %v2257 = vpop.f32.mrf.mxu0
    %2258 = vmatprep.mubr.f32.mxu0 0.0
    %v2259 = vand.u32 %v52, 4294901760
    %v2260 = vsub.f32 %v52, %v2259
    %v2261 = vand.u32 %v2260, 4294901760
    %2262 = vmatmul.mubr.f32.gmra.mxu0 %v2261
    %v2263 = vpop.f32.mrf.mxu0
    %v2264 = vadd.f32 %v2062, %v2263
    %v2265 = vpop.f32.mrf.mxu0
    %2266 = vmatprep.mubr.f32.mxu0 0.0
    %v2267 = vand.u32 %v53, 4294901760
    %v2268 = vsub.f32 %v53, %v2267
    %v2269 = vand.u32 %v2268, 4294901760
    %2270 = vmatmul.mubr.f32.gmra.mxu0 %v2269
    %v2271 = vpop.f32.mrf.mxu0
    %v2272 = vadd.f32 %v2069, %v2271
    %v2273 = vpop.f32.mrf.mxu0
    %2274 = vmatprep.mubr.f32.mxu0 0.0
    %v2275 = vand.u32 %v54, 4294901760
    %v2276 = vsub.f32 %v54, %v2275
    %v2277 = vand.u32 %v2276, 4294901760
    %2278 = vmatmul.mubr.f32.gmra.mxu0 %v2277
    %v2279 = vpop.f32.mrf.mxu0
    %v2280 = vadd.f32 %v2076, %v2279
    %v2281 = vpop.f32.mrf.mxu0
    %2282 = vmatprep.mubr.f32.mxu0 0.0
    %v2283 = vand.u32 %v55, 4294901760
    %v2284 = vsub.f32 %v55, %v2283
    %v2285 = vand.u32 %v2284, 4294901760
    %2286 = vmatmul.mubr.f32.gmra.mxu0 %v2285
    %v2287 = vpop.f32.mrf.mxu0
    %v2288 = vadd.f32 %v2083, %v2287
    %v2289 = vpop.f32.mrf.mxu0
    %2290 = vmatprep.mubr.f32.mxu0 0.0
    %v2291 = vand.u32 %v56, 4294901760
    %v2292 = vsub.f32 %v56, %v2291
    %v2293 = vand.u32 %v2292, 4294901760
    %2294 = vmatmul.mubr.f32.gmra.mxu0 %v2293
    %v2295 = vpop.f32.mrf.mxu0
    %v2296 = vadd.f32 %v2090, %v2295
    %v2297 = vpop.f32.mrf.mxu0
    %2298 = vmatprep.mubr.f32.mxu0 0.0
    %v2299 = vand.u32 %v57, 4294901760
    %v2300 = vsub.f32 %v57, %v2299
    %v2301 = vand.u32 %v2300, 4294901760
    %2302 = vmatmul.mubr.f32.gmra.mxu0 %v2301
    %v2303 = vpop.f32.mrf.mxu0
    %v2304 = vadd.f32 %v2097, %v2303
    %v2305 = vpop.f32.mrf.mxu0
    %2306 = vmatprep.mubr.f32.mxu0 0.0
    %v2307 = vand.u32 %v58, 4294901760
    %v2308 = vsub.f32 %v58, %v2307
    %v2309 = vand.u32 %v2308, 4294901760
    %2310 = vmatmul.mubr.f32.gmra.mxu0 %v2309
    %v2311 = vpop.f32.mrf.mxu0
    %v2312 = vadd.f32 %v2104, %v2311
    %v2313 = vpop.f32.mrf.mxu0
    %2314 = vmatprep.mubr.f32.mxu0 0.0
    %v2315 = vand.u32 %v59, 4294901760
    %v2316 = vsub.f32 %v59, %v2315
    %v2317 = vand.u32 %v2316, 4294901760
    %2318 = vmatmul.mubr.f32.gmra.mxu0 %v2317
    %v2319 = vpop.f32.mrf.mxu0
    %v2320 = vadd.f32 %v2111, %v2319
    %v2321 = vpop.f32.mrf.mxu0
    %2322 = vdwg.mxu0
    %2323 = vmatprep.subr.mxu0 0.0
    %v2324 = vand.u32 %v1342, 4294901760
    %v2325 = vsub.f32 %v1342, %v2324
    %v2326 = vand.u32 %v2325, 4294901760
    %2327 = vmatpush1.msra.mxu0 %v2326
    %2328 = vmatprep.subr.mxu0 0.0
    %v2329 = vand.u32 %v1341, 4294901760
    %v2330 = vsub.f32 %v1341, %v2329
    %v2331 = vand.u32 %v2330, 4294901760
    %2332 = vmatpush1.msra.mxu0 %v2331
    %2333 = vmatprep.subr.mxu0 0.0
    %v2334 = vand.u32 %v1340, 4294901760
    %v2335 = vsub.f32 %v1340, %v2334
    %v2336 = vand.u32 %v2335, 4294901760
    %2337 = vmatpush1.msra.mxu0 %v2336
    %2338 = vmatprep.subr.mxu0 0.0
    %v2339 = vand.u32 %v1339, 4294901760
    %v2340 = vsub.f32 %v1339, %v2339
    %v2341 = vand.u32 %v2340, 4294901760
    %2342 = vmatpush1.msra.mxu0 %v2341
    %2343 = vmatprep.subr.mxu0 0.0
    %v2344 = vand.u32 %v1338, 4294901760
    %v2345 = vsub.f32 %v1338, %v2344
    %v2346 = vand.u32 %v2345, 4294901760
    %2347 = vmatpush1.msra.mxu0 %v2346
    %2348 = vmatprep.subr.mxu0 0.0
    %v2349 = vand.u32 %v1337, 4294901760
    %v2350 = vsub.f32 %v1337, %v2349
    %v2351 = vand.u32 %v2350, 4294901760
    %2352 = vmatpush1.msra.mxu0 %v2351
    %2353 = vmatprep.subr.mxu0 0.0
    %v2354 = vand.u32 %v1336, 4294901760
    %v2355 = vsub.f32 %v1336, %v2354
    %v2356 = vand.u32 %v2355, 4294901760
    %2357 = vmatpush1.msra.mxu0 %v2356
    %2358 = vmatprep.subr.mxu0 0.0
    %v2359 = vand.u32 %v1335, 4294901760
    %v2360 = vsub.f32 %v1335, %v2359
    %v2361 = vand.u32 %v2360, 4294901760
    %2362 = vmatpush1.msra.mxu0 %v2361
    %2363 = vmatprep.subr.mxu0 0.0
    %v2364 = vand.u32 %v1334, 4294901760
    %v2365 = vsub.f32 %v1334, %v2364
    %v2366 = vand.u32 %v2365, 4294901760
    %2367 = vmatpush1.msra.mxu0 %v2366
    %2368 = vmatprep.subr.mxu0 0.0
    %v2369 = vand.u32 %v1333, 4294901760
    %v2370 = vsub.f32 %v1333, %v2369
    %v2371 = vand.u32 %v2370, 4294901760
    %2372 = vmatpush1.msra.mxu0 %v2371
    %2373 = vmatprep.subr.mxu0 0.0
    %v2374 = vand.u32 %v1332, 4294901760
    %v2375 = vsub.f32 %v1332, %v2374
    %v2376 = vand.u32 %v2375, 4294901760
    %2377 = vmatpush1.msra.mxu0 %v2376
    %2378 = vmatprep.subr.mxu0 0.0
    %v2379 = vand.u32 %v1331, 4294901760
    %v2380 = vsub.f32 %v1331, %v2379
    %v2381 = vand.u32 %v2380, 4294901760
    %2382 = vmatpush1.msra.mxu0 %v2381
    %2383 = vmatprep.subr.mxu0 0.0
    %v2384 = vand.u32 %v1330, 4294901760
    %v2385 = vsub.f32 %v1330, %v2384
    %v2386 = vand.u32 %v2385, 4294901760
    %2387 = vmatpush1.msra.mxu0 %v2386
    %2388 = vmatprep.subr.mxu0 0.0
    %v2389 = vand.u32 %v1329, 4294901760
    %v2390 = vsub.f32 %v1329, %v2389
    %v2391 = vand.u32 %v2390, 4294901760
    %2392 = vmatpush1.msra.mxu0 %v2391
    %2393 = vmatprep.subr.mxu0 0.0
    %v2394 = vand.u32 %v1328, 4294901760
    %v2395 = vsub.f32 %v1328, %v2394
    %v2396 = vand.u32 %v2395, 4294901760
    %2397 = vmatpush1.msra.mxu0 %v2396
    %2398 = vmatprep.subr.mxu0 0.0
    %v2399 = vand.u32 %v1327, 4294901760
    %v2400 = vsub.f32 %v1327, %v2399
    %v2401 = vand.u32 %v2400, 4294901760
    %2402 = vmatpush1.msra.mxu0 %v2401
    %2403 = vmatprep.subr.mxu0 0.0
    %2404 = vmatpush2.msra.mxu0 0.0
    %2405 = vmatprep.subr.mxu0 0.0
    %2406 = vmatpush2.msra.mxu0 0.0
    %2407 = vmatprep.subr.mxu0 0.0
    %2408 = vmatpush2.msra.mxu0 0.0
    %2409 = vmatprep.subr.mxu0 0.0
    %2410 = vmatpush2.msra.mxu0 0.0
    %2411 = vmatprep.subr.mxu0 0.0
    %2412 = vmatpush2.msra.mxu0 0.0
    %2413 = vmatprep.subr.mxu0 0.0
    %2414 = vmatpush2.msra.mxu0 0.0
    %2415 = vmatprep.subr.mxu0 0.0
    %2416 = vmatpush2.msra.mxu0 0.0
    %2417 = vmatprep.subr.mxu0 0.0
    %2418 = vmatpush2.msra.mxu0 0.0
    %2419 = vmatprep.subr.mxu0 0.0
    %2420 = vmatpush2.msra.mxu0 0.0
    %2421 = vmatprep.subr.mxu0 0.0
    %2422 = vmatpush2.msra.mxu0 0.0
    %2423 = vmatprep.subr.mxu0 0.0
    %2424 = vmatpush2.msra.mxu0 0.0
    %2425 = vmatprep.subr.mxu0 0.0
    %2426 = vmatpush2.msra.mxu0 0.0
    %2427 = vmatprep.subr.mxu0 0.0
    %2428 = vmatpush2.msra.mxu0 0.0
    %2429 = vmatprep.subr.mxu0 0.0
    %2430 = vmatpush2.msra.mxu0 0.0
    %2431 = vmatprep.subr.mxu0 0.0
    %2432 = vmatpush2.msra.mxu0 0.0
    %2433 = vmatprep.subr.mxu0 0.0
    %2434 = vmatpush2.msra.mxu0 0.0
    %2435 = vmatprep.mubr.f32.mxu0 0.0
    %v2436 = vand.u32 %v44, 4294901760
    %2437 = vmatmul.mubr.f32.gmra.mxu0 %v2436
    %v2438 = vpop.f32.mrf.mxu0
    %v2439 = vadd.f32 %v2200, %v2438
    %v2440 = vpop.f32.mrf.mxu0
    %2441 = vmatprep.mubr.f32.mxu0 0.0
    %v2442 = vand.u32 %v45, 4294901760
    %2443 = vmatmul.mubr.f32.gmra.mxu0 %v2442
    %v2444 = vpop.f32.mrf.mxu0
    %v2445 = vadd.f32 %v2208, %v2444
    %v2446 = vpop.f32.mrf.mxu0
    %2447 = vmatprep.mubr.f32.mxu0 0.0
    %v2448 = vand.u32 %v46, 4294901760
    %2449 = vmatmul.mubr.f32.gmra.mxu0 %v2448
    %v2450 = vpop.f32.mrf.mxu0
    %v2451 = vadd.f32 %v2216, %v2450
    %v2452 = vpop.f32.mrf.mxu0
    %2453 = vmatprep.mubr.f32.mxu0 0.0
    %v2454 = vand.u32 %v47, 4294901760
    %2455 = vmatmul.mubr.f32.gmra.mxu0 %v2454
    %v2456 = vpop.f32.mrf.mxu0
    %v2457 = vadd.f32 %v2224, %v2456
    %v2458 = vpop.f32.mrf.mxu0
    %2459 = vmatprep.mubr.f32.mxu0 0.0
    %v2460 = vand.u32 %v48, 4294901760
    %2461 = vmatmul.mubr.f32.gmra.mxu0 %v2460
    %v2462 = vpop.f32.mrf.mxu0
    %v2463 = vadd.f32 %v2232, %v2462
    %v2464 = vpop.f32.mrf.mxu0
    %2465 = vmatprep.mubr.f32.mxu0 0.0
    %v2466 = vand.u32 %v49, 4294901760
    %2467 = vmatmul.mubr.f32.gmra.mxu0 %v2466
    %v2468 = vpop.f32.mrf.mxu0
    %v2469 = vadd.f32 %v2240, %v2468
    %v2470 = vpop.f32.mrf.mxu0
    %2471 = vmatprep.mubr.f32.mxu0 0.0
    %v2472 = vand.u32 %v50, 4294901760
    %2473 = vmatmul.mubr.f32.gmra.mxu0 %v2472
    %v2474 = vpop.f32.mrf.mxu0
    %v2475 = vadd.f32 %v2248, %v2474
    %v2476 = vpop.f32.mrf.mxu0
    %2477 = vmatprep.mubr.f32.mxu0 0.0
    %v2478 = vand.u32 %v51, 4294901760
    %2479 = vmatmul.mubr.f32.gmra.mxu0 %v2478
    %v2480 = vpop.f32.mrf.mxu0
    %v2481 = vadd.f32 %v2256, %v2480
    %v2482 = vpop.f32.mrf.mxu0
    %2483 = vmatprep.mubr.f32.mxu0 0.0
    %v2484 = vand.u32 %v52, 4294901760
    %2485 = vmatmul.mubr.f32.gmra.mxu0 %v2484
    %v2486 = vpop.f32.mrf.mxu0
    %v2487 = vadd.f32 %v2264, %v2486
    %v2488 = vpop.f32.mrf.mxu0
    %2489 = vmatprep.mubr.f32.mxu0 0.0
    %v2490 = vand.u32 %v53, 4294901760
    %2491 = vmatmul.mubr.f32.gmra.mxu0 %v2490
    %v2492 = vpop.f32.mrf.mxu0
    %v2493 = vadd.f32 %v2272, %v2492
    %v2494 = vpop.f32.mrf.mxu0
    %2495 = vmatprep.mubr.f32.mxu0 0.0
    %v2496 = vand.u32 %v54, 4294901760
    %2497 = vmatmul.mubr.f32.gmra.mxu0 %v2496
    %v2498 = vpop.f32.mrf.mxu0
    %v2499 = vadd.f32 %v2280, %v2498
    %v2500 = vpop.f32.mrf.mxu0
    %2501 = vmatprep.mubr.f32.mxu0 0.0
    %v2502 = vand.u32 %v55, 4294901760
    %2503 = vmatmul.mubr.f32.gmra.mxu0 %v2502
    %v2504 = vpop.f32.mrf.mxu0
    %v2505 = vadd.f32 %v2288, %v2504
    %v2506 = vpop.f32.mrf.mxu0
    %2507 = vmatprep.mubr.f32.mxu0 0.0
    %v2508 = vand.u32 %v56, 4294901760
    %2509 = vmatmul.mubr.f32.gmra.mxu0 %v2508
    %v2510 = vpop.f32.mrf.mxu0
    %v2511 = vadd.f32 %v2296, %v2510
    %v2512 = vpop.f32.mrf.mxu0
    %2513 = vmatprep.mubr.f32.mxu0 0.0
    %v2514 = vand.u32 %v57, 4294901760
    %2515 = vmatmul.mubr.f32.gmra.mxu0 %v2514
    %v2516 = vpop.f32.mrf.mxu0
    %v2517 = vadd.f32 %v2304, %v2516
    %v2518 = vpop.f32.mrf.mxu0
    %2519 = vmatprep.mubr.f32.mxu0 0.0
    %v2520 = vand.u32 %v58, 4294901760
    %2521 = vmatmul.mubr.f32.gmra.mxu0 %v2520
    %v2522 = vpop.f32.mrf.mxu0
    %v2523 = vadd.f32 %v2312, %v2522
    %v2524 = vpop.f32.mrf.mxu0
    %2525 = vmatprep.mubr.f32.mxu0 0.0
    %v2526 = vand.u32 %v59, 4294901760
    %2527 = vmatmul.mubr.f32.gmra.mxu0 %v2526
    %v2528 = vpop.f32.mrf.mxu0
    %v2529 = vadd.f32 %v2320, %v2528
    %v2530 = vpop.f32.mrf.mxu0
    %2531 = vdwg.mxu0
    %2532 = vmatprep.subr.mxu0 0.0
    %v2533 = vand.u32 %v1342, 4294901760
    %2534 = vmatpush1.msra.mxu0 %v2533
    %2535 = vmatprep.subr.mxu0 0.0
    %v2536 = vand.u32 %v1341, 4294901760
    %2537 = vmatpush1.msra.mxu0 %v2536
    %2538 = vmatprep.subr.mxu0 0.0
    %v2539 = vand.u32 %v1340, 4294901760
    %2540 = vmatpush1.msra.mxu0 %v2539
    %2541 = vmatprep.subr.mxu0 0.0
    %v2542 = vand.u32 %v1339, 4294901760
    %2543 = vmatpush1.msra.mxu0 %v2542
    %2544 = vmatprep.subr.mxu0 0.0
    %v2545 = vand.u32 %v1338, 4294901760
    %2546 = vmatpush1.msra.mxu0 %v2545
    %2547 = vmatprep.subr.mxu0 0.0
    %v2548 = vand.u32 %v1337, 4294901760
    %2549 = vmatpush1.msra.mxu0 %v2548
    %2550 = vmatprep.subr.mxu0 0.0
    %v2551 = vand.u32 %v1336, 4294901760
    %2552 = vmatpush1.msra.mxu0 %v2551
    %2553 = vmatprep.subr.mxu0 0.0
    %v2554 = vand.u32 %v1335, 4294901760
    %2555 = vmatpush1.msra.mxu0 %v2554
    %2556 = vmatprep.subr.mxu0 0.0
    %v2557 = vand.u32 %v1334, 4294901760
    %2558 = vmatpush1.msra.mxu0 %v2557
    %2559 = vmatprep.subr.mxu0 0.0
    %v2560 = vand.u32 %v1333, 4294901760
    %2561 = vmatpush1.msra.mxu0 %v2560
    %2562 = vmatprep.subr.mxu0 0.0
    %v2563 = vand.u32 %v1332, 4294901760
    %2564 = vmatpush1.msra.mxu0 %v2563
    %2565 = vmatprep.subr.mxu0 0.0
    %v2566 = vand.u32 %v1331, 4294901760
    %2567 = vmatpush1.msra.mxu0 %v2566
    %2568 = vmatprep.subr.mxu0 0.0
    %v2569 = vand.u32 %v1330, 4294901760
    %2570 = vmatpush1.msra.mxu0 %v2569
    %2571 = vmatprep.subr.mxu0 0.0
    %v2572 = vand.u32 %v1329, 4294901760
    %2573 = vmatpush1.msra.mxu0 %v2572
    %2574 = vmatprep.subr.mxu0 0.0
    %v2575 = vand.u32 %v1328, 4294901760
    %2576 = vmatpush1.msra.mxu0 %v2575
    %2577 = vmatprep.subr.mxu0 0.0
    %v2578 = vand.u32 %v1327, 4294901760
    %2579 = vmatpush1.msra.mxu0 %v2578
    %2580 = vmatprep.subr.mxu0 0.0
    %2581 = vmatpush2.msra.mxu0 0.0
    %2582 = vmatprep.subr.mxu0 0.0
    %2583 = vmatpush2.msra.mxu0 0.0
    %2584 = vmatprep.subr.mxu0 0.0
    %2585 = vmatpush2.msra.mxu0 0.0
    %2586 = vmatprep.subr.mxu0 0.0
    %2587 = vmatpush2.msra.mxu0 0.0
    %2588 = vmatprep.subr.mxu0 0.0
    %2589 = vmatpush2.msra.mxu0 0.0
    %2590 = vmatprep.subr.mxu0 0.0
    %2591 = vmatpush2.msra.mxu0 0.0
    %2592 = vmatprep.subr.mxu0 0.0
    %2593 = vmatpush2.msra.mxu0 0.0
    %2594 = vmatprep.subr.mxu0 0.0
    %2595 = vmatpush2.msra.mxu0 0.0
    %2596 = vmatprep.subr.mxu0 0.0
    %2597 = vmatpush2.msra.mxu0 0.0
    %2598 = vmatprep.subr.mxu0 0.0
    %2599 = vmatpush2.msra.mxu0 0.0
    %2600 = vmatprep.subr.mxu0 0.0
    %2601 = vmatpush2.msra.mxu0 0.0
    %2602 = vmatprep.subr.mxu0 0.0
    %2603 = vmatpush2.msra.mxu0 0.0
    %2604 = vmatprep.subr.mxu0 0.0
    %2605 = vmatpush2.msra.mxu0 0.0
    %2606 = vmatprep.subr.mxu0 0.0
    %2607 = vmatpush2.msra.mxu0 0.0
    %2608 = vmatprep.subr.mxu0 0.0
    %2609 = vmatpush2.msra.mxu0 0.0
    %2610 = vmatprep.subr.mxu0 0.0
    %2611 = vmatpush2.msra.mxu0 0.0
    %2612 = vmatprep.mubr.f32.mxu0 0.0
    %v2613 = vand.u32 %v44, 4294901760
    %2614 = vmatmul.mubr.f32.gmra.mxu0 %v2613
    %v2615 = vpop.f32.mrf.mxu0
    %v2616 = vadd.f32 %v2439, %v2615
    %v2617 = vpop.f32.mrf.mxu0
    %2618 = vmatprep.mubr.f32.mxu0 0.0
    %v2619 = vand.u32 %v45, 4294901760
    %2620 = vmatmul.mubr.f32.gmra.mxu0 %v2619
    %v2621 = vpop.f32.mrf.mxu0
    %v2622 = vadd.f32 %v2445, %v2621
    %v2623 = vpop.f32.mrf.mxu0
    %2624 = vmatprep.mubr.f32.mxu0 0.0
    %v2625 = vand.u32 %v46, 4294901760
    %2626 = vmatmul.mubr.f32.gmra.mxu0 %v2625
    %v2627 = vpop.f32.mrf.mxu0
    %v2628 = vadd.f32 %v2451, %v2627
    %v2629 = vpop.f32.mrf.mxu0
    %2630 = vmatprep.mubr.f32.mxu0 0.0
    %v2631 = vand.u32 %v47, 4294901760
    %2632 = vmatmul.mubr.f32.gmra.mxu0 %v2631
    %v2633 = vpop.f32.mrf.mxu0
    %v2634 = vadd.f32 %v2457, %v2633
    %v2635 = vpop.f32.mrf.mxu0
    %2636 = vmatprep.mubr.f32.mxu0 0.0
    %v2637 = vand.u32 %v48, 4294901760
    %2638 = vmatmul.mubr.f32.gmra.mxu0 %v2637
    %v2639 = vpop.f32.mrf.mxu0
    %v2640 = vadd.f32 %v2463, %v2639
    %v2641 = vpop.f32.mrf.mxu0
    %2642 = vmatprep.mubr.f32.mxu0 0.0
    %v2643 = vand.u32 %v49, 4294901760
    %2644 = vmatmul.mubr.f32.gmra.mxu0 %v2643
    %v2645 = vpop.f32.mrf.mxu0
    %v2646 = vadd.f32 %v2469, %v2645
    %v2647 = vpop.f32.mrf.mxu0
    %2648 = vmatprep.mubr.f32.mxu0 0.0
    %v2649 = vand.u32 %v50, 4294901760
    %2650 = vmatmul.mubr.f32.gmra.mxu0 %v2649
    %v2651 = vpop.f32.mrf.mxu0
    %v2652 = vadd.f32 %v2475, %v2651
    %v2653 = vpop.f32.mrf.mxu0
    %2654 = vmatprep.mubr.f32.mxu0 0.0
    %v2655 = vand.u32 %v51, 4294901760
    %2656 = vmatmul.mubr.f32.gmra.mxu0 %v2655
    %v2657 = vpop.f32.mrf.mxu0
    %v2658 = vadd.f32 %v2481, %v2657
    %v2659 = vpop.f32.mrf.mxu0
    %2660 = vmatprep.mubr.f32.mxu0 0.0
    %v2661 = vand.u32 %v52, 4294901760
    %2662 = vmatmul.mubr.f32.gmra.mxu0 %v2661
    %v2663 = vpop.f32.mrf.mxu0
    %v2664 = vadd.f32 %v2487, %v2663
    %v2665 = vpop.f32.mrf.mxu0
    %2666 = vmatprep.mubr.f32.mxu0 0.0
    %v2667 = vand.u32 %v53, 4294901760
    %2668 = vmatmul.mubr.f32.gmra.mxu0 %v2667
    %v2669 = vpop.f32.mrf.mxu0
    %v2670 = vadd.f32 %v2493, %v2669
    %v2671 = vpop.f32.mrf.mxu0
    %2672 = vmatprep.mubr.f32.mxu0 0.0
    %v2673 = vand.u32 %v54, 4294901760
    %2674 = vmatmul.mubr.f32.gmra.mxu0 %v2673
    %v2675 = vpop.f32.mrf.mxu0
    %v2676 = vadd.f32 %v2499, %v2675
    %v2677 = vpop.f32.mrf.mxu0
    %2678 = vmatprep.mubr.f32.mxu0 0.0
    %v2679 = vand.u32 %v55, 4294901760
    %2680 = vmatmul.mubr.f32.gmra.mxu0 %v2679
    %v2681 = vpop.f32.mrf.mxu0
    %v2682 = vadd.f32 %v2505, %v2681
    %v2683 = vpop.f32.mrf.mxu0
    %2684 = vmatprep.mubr.f32.mxu0 0.0
    %v2685 = vand.u32 %v56, 4294901760
    %2686 = vmatmul.mubr.f32.gmra.mxu0 %v2685
    %v2687 = vpop.f32.mrf.mxu0
    %v2688 = vadd.f32 %v2511, %v2687
    %v2689 = vpop.f32.mrf.mxu0
    %2690 = vmatprep.mubr.f32.mxu0 0.0
    %v2691 = vand.u32 %v57, 4294901760
    %2692 = vmatmul.mubr.f32.gmra.mxu0 %v2691
    %v2693 = vpop.f32.mrf.mxu0
    %v2694 = vadd.f32 %v2517, %v2693
    %v2695 = vpop.f32.mrf.mxu0
    %2696 = vmatprep.mubr.f32.mxu0 0.0
    %v2697 = vand.u32 %v58, 4294901760
    %2698 = vmatmul.mubr.f32.gmra.mxu0 %v2697
    %v2699 = vpop.f32.mrf.mxu0
    %v2700 = vadd.f32 %v2523, %v2699
    %v2701 = vpop.f32.mrf.mxu0
    %2702 = vmatprep.mubr.f32.mxu0 0.0
    %v2703 = vand.u32 %v59, 4294901760
    %2704 = vmatmul.mubr.f32.gmra.mxu0 %v2703
    %v2705 = vpop.f32.mrf.mxu0
    %v2706 = vadd.f32 %v2529, %v2705
    %v2707 = vpop.f32.mrf.mxu0
    %2708 = vdwg.mxu0
    %v2709 = vmax.f32 %v2616, 0.0
    %v2710 = vmax.f32 %v2622, 0.0
    %v2711 = vmax.f32 %v2628, 0.0
    %v2712 = vmax.f32 %v2634, 0.0
    %v2713 = vmax.f32 %v2640, 0.0
    %v2714 = vmax.f32 %v2646, 0.0
    %v2715 = vmax.f32 %v2652, 0.0
    %v2716 = vmax.f32 %v2658, 0.0
    %v2717 = vmax.f32 %v2664, 0.0
    %v2718 = vmax.f32 %v2670, 0.0
    %v2719 = vmax.f32 %v2676, 0.0
    %v2720 = vmax.f32 %v2682, 0.0
    %v2721 = vmax.f32 %v2688, 0.0
    %v2722 = vmax.f32 %v2694, 0.0
    %v2723 = vmax.f32 %v2700, 0.0
    %v2724 = vmax.f32 %v2706, 0.0
    %2726 = vset.pattern.permute.xlu0 0
    %2727 = vperm.xlu0 %2726, %v93
    %v2728 = vpop.permute.xlu0 %2727
    %2730 = vmatprep.subr.mxu0 0.0
    %v2731 = vand.u32 %v2724, 4294901760
    %2732 = vmatpush1.msra.mxu0 %v2731
    %2733 = vmatprep.subr.mxu0 0.0
    %v2734 = vand.u32 %v2723, 4294901760
    %2735 = vmatpush1.msra.mxu0 %v2734
    %2736 = vmatprep.subr.mxu0 0.0
    %v2737 = vand.u32 %v2722, 4294901760
    %2738 = vmatpush1.msra.mxu0 %v2737
    %2739 = vmatprep.subr.mxu0 0.0
    %v2740 = vand.u32 %v2721, 4294901760
    %2741 = vmatpush1.msra.mxu0 %v2740
    %2742 = vmatprep.subr.mxu0 0.0
    %v2743 = vand.u32 %v2720, 4294901760
    %2744 = vmatpush1.msra.mxu0 %v2743
    %2745 = vmatprep.subr.mxu0 0.0
    %v2746 = vand.u32 %v2719, 4294901760
    %2747 = vmatpush1.msra.mxu0 %v2746
    %2748 = vmatprep.subr.mxu0 0.0
    %v2749 = vand.u32 %v2718, 4294901760
    %2750 = vmatpush1.msra.mxu0 %v2749
    %2751 = vmatprep.subr.mxu0 0.0
    %v2752 = vand.u32 %v2717, 4294901760
    %2753 = vmatpush1.msra.mxu0 %v2752
    %2754 = vmatprep.subr.mxu0 0.0
    %v2755 = vand.u32 %v2716, 4294901760
    %2756 = vmatpush1.msra.mxu0 %v2755
    %2757 = vmatprep.subr.mxu0 0.0
    %v2758 = vand.u32 %v2715, 4294901760
    %2759 = vmatpush1.msra.mxu0 %v2758
    %2760 = vmatprep.subr.mxu0 0.0
    %v2761 = vand.u32 %v2714, 4294901760
    %2762 = vmatpush1.msra.mxu0 %v2761
    %2763 = vmatprep.subr.mxu0 0.0
    %v2764 = vand.u32 %v2713, 4294901760
    %2765 = vmatpush1.msra.mxu0 %v2764
    %2766 = vmatprep.subr.mxu0 0.0
    %v2767 = vand.u32 %v2712, 4294901760
    %2768 = vmatpush1.msra.mxu0 %v2767
    %2769 = vmatprep.subr.mxu0 0.0
    %v2770 = vand.u32 %v2711, 4294901760
    %2771 = vmatpush1.msra.mxu0 %v2770
    %2772 = vmatprep.subr.mxu0 0.0
    %v2773 = vand.u32 %v2710, 4294901760
    %2774 = vmatpush1.msra.mxu0 %v2773
    %2775 = vmatprep.subr.mxu0 0.0
    %v2776 = vand.u32 %v2709, 4294901760
    %2777 = vmatpush1.msra.mxu0 %v2776
    %2778 = vmatprep.subr.mxu0 0.0
    %2779 = vmatpush2.msra.mxu0 0.0
    %2780 = vmatprep.subr.mxu0 0.0
    %2781 = vmatpush2.msra.mxu0 0.0
    %2782 = vmatprep.subr.mxu0 0.0
    %2783 = vmatpush2.msra.mxu0 0.0
    %2784 = vmatprep.subr.mxu0 0.0
    %2785 = vmatpush2.msra.mxu0 0.0
    %2786 = vmatprep.subr.mxu0 0.0
    %2787 = vmatpush2.msra.mxu0 0.0
    %2788 = vmatprep.subr.mxu0 0.0
    %2789 = vmatpush2.msra.mxu0 0.0
    %2790 = vmatprep.subr.mxu0 0.0
    %2791 = vmatpush2.msra.mxu0 0.0
    %2792 = vmatprep.subr.mxu0 0.0
    %2793 = vmatpush2.msra.mxu0 0.0
    %2794 = vmatprep.subr.mxu0 0.0
    %2795 = vmatpush2.msra.mxu0 0.0
    %2796 = vmatprep.subr.mxu0 0.0
    %2797 = vmatpush2.msra.mxu0 0.0
    %2798 = vmatprep.subr.mxu0 0.0
    %2799 = vmatpush2.msra.mxu0 0.0
    %2800 = vmatprep.subr.mxu0 0.0
    %2801 = vmatpush2.msra.mxu0 0.0
    %2802 = vmatprep.subr.mxu0 0.0
    %2803 = vmatpush2.msra.mxu0 0.0
    %2804 = vmatprep.subr.mxu0 0.0
    %2805 = vmatpush2.msra.mxu0 0.0
    %2806 = vmatprep.subr.mxu0 0.0
    %2807 = vmatpush2.msra.mxu0 0.0
    %2808 = vmatprep.subr.mxu0 0.0
    %2809 = vmatpush2.msra.mxu0 0.0
    %2810 = vmatprep.mubr.f32.mxu0 0.0
    %v2811 = vand.u32 %v60, 4294901760
    %v2812 = vsub.f32 %v60, %v2811
    %v2813 = vand.u32 %v2812, 4294901760
    %v2814 = vsub.f32 %v2812, %v2813
    %v2815 = vand.u32 %v2814, 4294901760
    %2816 = vmatmul.mubr.f32.gmra.mxu0 %v2815
    %v2817 = vpop.f32.mrf.mxu0
    %v2818 = vadd.f32 %v2728, %v2817
    %v2819 = vpop.f32.mrf.mxu0
    %2820 = vdwg.mxu0
    %2821 = vmatprep.subr.mxu0 0.0
    %v2822 = vand.u32 %v2724, 4294901760
    %v2823 = vsub.f32 %v2724, %v2822
    %v2824 = vand.u32 %v2823, 4294901760
    %v2825 = vsub.f32 %v2823, %v2824
    %v2826 = vand.u32 %v2825, 4294901760
    %2827 = vmatpush1.msra.mxu0 %v2826
    %2828 = vmatprep.subr.mxu0 0.0
    %v2829 = vand.u32 %v2723, 4294901760
    %v2830 = vsub.f32 %v2723, %v2829
    %v2831 = vand.u32 %v2830, 4294901760
    %v2832 = vsub.f32 %v2830, %v2831
    %v2833 = vand.u32 %v2832, 4294901760
    %2834 = vmatpush1.msra.mxu0 %v2833
    %2835 = vmatprep.subr.mxu0 0.0
    %v2836 = vand.u32 %v2722, 4294901760
    %v2837 = vsub.f32 %v2722, %v2836
    %v2838 = vand.u32 %v2837, 4294901760
    %v2839 = vsub.f32 %v2837, %v2838
    %v2840 = vand.u32 %v2839, 4294901760
    %2841 = vmatpush1.msra.mxu0 %v2840
    %2842 = vmatprep.subr.mxu0 0.0
    %v2843 = vand.u32 %v2721, 4294901760
    %v2844 = vsub.f32 %v2721, %v2843
    %v2845 = vand.u32 %v2844, 4294901760
    %v2846 = vsub.f32 %v2844, %v2845
    %v2847 = vand.u32 %v2846, 4294901760
    %2848 = vmatpush1.msra.mxu0 %v2847
    %2849 = vmatprep.subr.mxu0 0.0
    %v2850 = vand.u32 %v2720, 4294901760
    %v2851 = vsub.f32 %v2720, %v2850
    %v2852 = vand.u32 %v2851, 4294901760
    %v2853 = vsub.f32 %v2851, %v2852
    %v2854 = vand.u32 %v2853, 4294901760
    %2855 = vmatpush1.msra.mxu0 %v2854
    %2856 = vmatprep.subr.mxu0 0.0
    %v2857 = vand.u32 %v2719, 4294901760
    %v2858 = vsub.f32 %v2719, %v2857
    %v2859 = vand.u32 %v2858, 4294901760
    %v2860 = vsub.f32 %v2858, %v2859
    %v2861 = vand.u32 %v2860, 4294901760
    %2862 = vmatpush1.msra.mxu0 %v2861
    %2863 = vmatprep.subr.mxu0 0.0
    %v2864 = vand.u32 %v2718, 4294901760
    %v2865 = vsub.f32 %v2718, %v2864
    %v2866 = vand.u32 %v2865, 4294901760
    %v2867 = vsub.f32 %v2865, %v2866
    %v2868 = vand.u32 %v2867, 4294901760
    %2869 = vmatpush1.msra.mxu0 %v2868
    %2870 = vmatprep.subr.mxu0 0.0
    %v2871 = vand.u32 %v2717, 4294901760
    %v2872 = vsub.f32 %v2717, %v2871
    %v2873 = vand.u32 %v2872, 4294901760
    %v2874 = vsub.f32 %v2872, %v2873
    %v2875 = vand.u32 %v2874, 4294901760
    %2876 = vmatpush1.msra.mxu0 %v2875
    %2877 = vmatprep.subr.mxu0 0.0
    %v2878 = vand.u32 %v2716, 4294901760
    %v2879 = vsub.f32 %v2716, %v2878
    %v2880 = vand.u32 %v2879, 4294901760
    %v2881 = vsub.f32 %v2879, %v2880
    %v2882 = vand.u32 %v2881, 4294901760
    %2883 = vmatpush1.msra.mxu0 %v2882
    %2884 = vmatprep.subr.mxu0 0.0
    %v2885 = vand.u32 %v2715, 4294901760
    %v2886 = vsub.f32 %v2715, %v2885
    %v2887 = vand.u32 %v2886, 4294901760
    %v2888 = vsub.f32 %v2886, %v2887
    %v2889 = vand.u32 %v2888, 4294901760
    %2890 = vmatpush1.msra.mxu0 %v2889
    %2891 = vmatprep.subr.mxu0 0.0
    %v2892 = vand.u32 %v2714, 4294901760
    %v2893 = vsub.f32 %v2714, %v2892
    %v2894 = vand.u32 %v2893, 4294901760
    %v2895 = vsub.f32 %v2893, %v2894
    %v2896 = vand.u32 %v2895, 4294901760
    %2897 = vmatpush1.msra.mxu0 %v2896
    %2898 = vmatprep.subr.mxu0 0.0
    %v2899 = vand.u32 %v2713, 4294901760
    %v2900 = vsub.f32 %v2713, %v2899
    %v2901 = vand.u32 %v2900, 4294901760
    %v2902 = vsub.f32 %v2900, %v2901
    %v2903 = vand.u32 %v2902, 4294901760
    %2904 = vmatpush1.msra.mxu0 %v2903
    %2905 = vmatprep.subr.mxu0 0.0
    %v2906 = vand.u32 %v2712, 4294901760
    %v2907 = vsub.f32 %v2712, %v2906
    %v2908 = vand.u32 %v2907, 4294901760
    %v2909 = vsub.f32 %v2907, %v2908
    %v2910 = vand.u32 %v2909, 4294901760
    %2911 = vmatpush1.msra.mxu0 %v2910
    %2912 = vmatprep.subr.mxu0 0.0
    %v2913 = vand.u32 %v2711, 4294901760
    %v2914 = vsub.f32 %v2711, %v2913
    %v2915 = vand.u32 %v2914, 4294901760
    %v2916 = vsub.f32 %v2914, %v2915
    %v2917 = vand.u32 %v2916, 4294901760
    %2918 = vmatpush1.msra.mxu0 %v2917
    %2919 = vmatprep.subr.mxu0 0.0
    %v2920 = vand.u32 %v2710, 4294901760
    %v2921 = vsub.f32 %v2710, %v2920
    %v2922 = vand.u32 %v2921, 4294901760
    %v2923 = vsub.f32 %v2921, %v2922
    %v2924 = vand.u32 %v2923, 4294901760
    %2925 = vmatpush1.msra.mxu0 %v2924
    %2926 = vmatprep.subr.mxu0 0.0
    %v2927 = vand.u32 %v2709, 4294901760
    %v2928 = vsub.f32 %v2709, %v2927
    %v2929 = vand.u32 %v2928, 4294901760
    %v2930 = vsub.f32 %v2928, %v2929
    %v2931 = vand.u32 %v2930, 4294901760
    %2932 = vmatpush1.msra.mxu0 %v2931
    %2933 = vmatprep.subr.mxu0 0.0
    %2934 = vmatpush2.msra.mxu0 0.0
    %2935 = vmatprep.subr.mxu0 0.0
    %2936 = vmatpush2.msra.mxu0 0.0
    %2937 = vmatprep.subr.mxu0 0.0
    %2938 = vmatpush2.msra.mxu0 0.0
    %2939 = vmatprep.subr.mxu0 0.0
    %2940 = vmatpush2.msra.mxu0 0.0
    %2941 = vmatprep.subr.mxu0 0.0
    %2942 = vmatpush2.msra.mxu0 0.0
    %2943 = vmatprep.subr.mxu0 0.0
    %2944 = vmatpush2.msra.mxu0 0.0
    %2945 = vmatprep.subr.mxu0 0.0
    %2946 = vmatpush2.msra.mxu0 0.0
    %2947 = vmatprep.subr.mxu0 0.0
    %2948 = vmatpush2.msra.mxu0 0.0
    %2949 = vmatprep.subr.mxu0 0.0
    %2950 = vmatpush2.msra.mxu0 0.0
    %2951 = vmatprep.subr.mxu0 0.0
    %2952 = vmatpush2.msra.mxu0 0.0
    %2953 = vmatprep.subr.mxu0 0.0
    %2954 = vmatpush2.msra.mxu0 0.0
    %2955 = vmatprep.subr.mxu0 0.0
    %2956 = vmatpush2.msra.mxu0 0.0
    %2957 = vmatprep.subr.mxu0 0.0
    %2958 = vmatpush2.msra.mxu0 0.0
    %2959 = vmatprep.subr.mxu0 0.0
    %2960 = vmatpush2.msra.mxu0 0.0
    %2961 = vmatprep.subr.mxu0 0.0
    %2962 = vmatpush2.msra.mxu0 0.0
    %2963 = vmatprep.subr.mxu0 0.0
    %2964 = vmatpush2.msra.mxu0 0.0
    %2965 = vmatprep.mubr.f32.mxu0 0.0
    %v2966 = vand.u32 %v60, 4294901760
    %2967 = vmatmul.mubr.f32.gmra.mxu0 %v2966
    %v2968 = vpop.f32.mrf.mxu0
    %v2969 = vadd.f32 %v2818, %v2968
    %v2970 = vpop.f32.mrf.mxu0
    %2971 = vdwg.mxu0
    %2972 = vmatprep.subr.mxu0 0.0
    %v2973 = vand.u32 %v2724, 4294901760
    %v2974 = vsub.f32 %v2724, %v2973
    %2975 = vmatpush1.msra.mxu0 %v2974
    %2976 = vmatprep.subr.mxu0 0.0
    %v2977 = vand.u32 %v2723, 4294901760
    %v2978 = vsub.f32 %v2723, %v2977
    %2979 = vmatpush1.msra.mxu0 %v2978
    %2980 = vmatprep.subr.mxu0 0.0
    %v2981 = vand.u32 %v2722, 4294901760
    %v2982 = vsub.f32 %v2722, %v2981
    %2983 = vmatpush1.msra.mxu0 %v2982
    %2984 = vmatprep.subr.mxu0 0.0
    %v2985 = vand.u32 %v2721, 4294901760
    %v2986 = vsub.f32 %v2721, %v2985
    %2987 = vmatpush1.msra.mxu0 %v2986
    %2988 = vmatprep.subr.mxu0 0.0
    %v2989 = vand.u32 %v2720, 4294901760
    %v2990 = vsub.f32 %v2720, %v2989
    %2991 = vmatpush1.msra.mxu0 %v2990
    %2992 = vmatprep.subr.mxu0 0.0
    %v2993 = vand.u32 %v2719, 4294901760
    %v2994 = vsub.f32 %v2719, %v2993
    %2995 = vmatpush1.msra.mxu0 %v2994
    %2996 = vmatprep.subr.mxu0 0.0
    %v2997 = vand.u32 %v2718, 4294901760
    %v2998 = vsub.f32 %v2718, %v2997
    %2999 = vmatpush1.msra.mxu0 %v2998
    %3000 = vmatprep.subr.mxu0 0.0
    %v3001 = vand.u32 %v2717, 4294901760
    %v3002 = vsub.f32 %v2717, %v3001
    %3003 = vmatpush1.msra.mxu0 %v3002
    %3004 = vmatprep.subr.mxu0 0.0
    %v3005 = vand.u32 %v2716, 4294901760
    %v3006 = vsub.f32 %v2716, %v3005
    %3007 = vmatpush1.msra.mxu0 %v3006
    %3008 = vmatprep.subr.mxu0 0.0
    %v3009 = vand.u32 %v2715, 4294901760
    %v3010 = vsub.f32 %v2715, %v3009
    %3011 = vmatpush1.msra.mxu0 %v3010
    %3012 = vmatprep.subr.mxu0 0.0
    %v3013 = vand.u32 %v2714, 4294901760
    %v3014 = vsub.f32 %v2714, %v3013
    %3015 = vmatpush1.msra.mxu0 %v3014
    %3016 = vmatprep.subr.mxu0 0.0
    %v3017 = vand.u32 %v2713, 4294901760
    %v3018 = vsub.f32 %v2713, %v3017
    %3019 = vmatpush1.msra.mxu0 %v3018
    %3020 = vmatprep.subr.mxu0 0.0
    %v3021 = vand.u32 %v2712, 4294901760
    %v3022 = vsub.f32 %v2712, %v3021
    %3023 = vmatpush1.msra.mxu0 %v3022
    %3024 = vmatprep.subr.mxu0 0.0
    %v3025 = vand.u32 %v2711, 4294901760
    %v3026 = vsub.f32 %v2711, %v3025
    %3027 = vmatpush1.msra.mxu0 %v3026
    %3028 = vmatprep.subr.mxu0 0.0
    %v3029 = vand.u32 %v2710, 4294901760
    %v3030 = vsub.f32 %v2710, %v3029
    %3031 = vmatpush1.msra.mxu0 %v3030
    %3032 = vmatprep.subr.mxu0 0.0
    %v3033 = vand.u32 %v2709, 4294901760
    %v3034 = vsub.f32 %v2709, %v3033
    %3035 = vmatpush1.msra.mxu0 %v3034
    %3036 = vmatprep.subr.mxu0 0.0
    %3037 = vmatpush2.msra.mxu0 0.0
    %3038 = vmatprep.subr.mxu0 0.0
    %3039 = vmatpush2.msra.mxu0 0.0
    %3040 = vmatprep.subr.mxu0 0.0
    %3041 = vmatpush2.msra.mxu0 0.0
    %3042 = vmatprep.subr.mxu0 0.0
    %3043 = vmatpush2.msra.mxu0 0.0
    %3044 = vmatprep.subr.mxu0 0.0
    %3045 = vmatpush2.msra.mxu0 0.0
    %3046 = vmatprep.subr.mxu0 0.0
    %3047 = vmatpush2.msra.mxu0 0.0
    %3048 = vmatprep.subr.mxu0 0.0
    %3049 = vmatpush2.msra.mxu0 0.0
    %3050 = vmatprep.subr.mxu0 0.0
    %3051 = vmatpush2.msra.mxu0 0.0
    %3052 = vmatprep.subr.mxu0 0.0
    %3053 = vmatpush2.msra.mxu0 0.0
    %3054 = vmatprep.subr.mxu0 0.0
    %3055 = vmatpush2.msra.mxu0 0.0
    %3056 = vmatprep.subr.mxu0 0.0
    %3057 = vmatpush2.msra.mxu0 0.0
    %3058 = vmatprep.subr.mxu0 0.0
    %3059 = vmatpush2.msra.mxu0 0.0
    %3060 = vmatprep.subr.mxu0 0.0
    %3061 = vmatpush2.msra.mxu0 0.0
    %3062 = vmatprep.subr.mxu0 0.0
    %3063 = vmatpush2.msra.mxu0 0.0
    %3064 = vmatprep.subr.mxu0 0.0
    %3065 = vmatpush2.msra.mxu0 0.0
    %3066 = vmatprep.subr.mxu0 0.0
    %3067 = vmatpush2.msra.mxu0 0.0
    %3068 = vmatprep.mubr.f32.mxu0 0.0
    %v3069 = vand.u32 %v60, 4294901760
    %v3070 = vsub.f32 %v60, %v3069
    %3071 = vmatmul.mubr.f32.gmra.mxu0 %v3070
    %v3072 = vpop.f32.mrf.mxu0
    %v3073 = vadd.f32 %v2969, %v3072
    %v3074 = vpop.f32.mrf.mxu0
    %3075 = vdwg.mxu0
    %3076 = vmatprep.subr.mxu0 0.0
    %v3077 = vand.u32 %v2724, 4294901760
    %3078 = vmatpush1.msra.mxu0 %v3077
    %3079 = vmatprep.subr.mxu0 0.0
    %v3080 = vand.u32 %v2723, 4294901760
    %3081 = vmatpush1.msra.mxu0 %v3080
    %3082 = vmatprep.subr.mxu0 0.0
    %v3083 = vand.u32 %v2722, 4294901760
    %3084 = vmatpush1.msra.mxu0 %v3083
    %3085 = vmatprep.subr.mxu0 0.0
    %v3086 = vand.u32 %v2721, 4294901760
    %3087 = vmatpush1.msra.mxu0 %v3086
    %3088 = vmatprep.subr.mxu0 0.0
    %v3089 = vand.u32 %v2720, 4294901760
    %3090 = vmatpush1.msra.mxu0 %v3089
    %3091 = vmatprep.subr.mxu0 0.0
    %v3092 = vand.u32 %v2719, 4294901760
    %3093 = vmatpush1.msra.mxu0 %v3092
    %3094 = vmatprep.subr.mxu0 0.0
    %v3095 = vand.u32 %v2718, 4294901760
    %3096 = vmatpush1.msra.mxu0 %v3095
    %3097 = vmatprep.subr.mxu0 0.0
    %v3098 = vand.u32 %v2717, 4294901760
    %3099 = vmatpush1.msra.mxu0 %v3098
    %3100 = vmatprep.subr.mxu0 0.0
    %v3101 = vand.u32 %v2716, 4294901760
    %3102 = vmatpush1.msra.mxu0 %v3101
    %3103 = vmatprep.subr.mxu0 0.0
    %v3104 = vand.u32 %v2715, 4294901760
    %3105 = vmatpush1.msra.mxu0 %v3104
    %3106 = vmatprep.subr.mxu0 0.0
    %v3107 = vand.u32 %v2714, 4294901760
    %3108 = vmatpush1.msra.mxu0 %v3107
    %3109 = vmatprep.subr.mxu0 0.0
    %v3110 = vand.u32 %v2713, 4294901760
    %3111 = vmatpush1.msra.mxu0 %v3110
    %3112 = vmatprep.subr.mxu0 0.0
    %v3113 = vand.u32 %v2712, 4294901760
    %3114 = vmatpush1.msra.mxu0 %v3113
    %3115 = vmatprep.subr.mxu0 0.0
    %v3116 = vand.u32 %v2711, 4294901760
    %3117 = vmatpush1.msra.mxu0 %v3116
    %3118 = vmatprep.subr.mxu0 0.0
    %v3119 = vand.u32 %v2710, 4294901760
    %3120 = vmatpush1.msra.mxu0 %v3119
    %3121 = vmatprep.subr.mxu0 0.0
    %v3122 = vand.u32 %v2709, 4294901760
    %3123 = vmatpush1.msra.mxu0 %v3122
    %3124 = vmatprep.subr.mxu0 0.0
    %3125 = vmatpush2.msra.mxu0 0.0
    %3126 = vmatprep.subr.mxu0 0.0
    %3127 = vmatpush2.msra.mxu0 0.0
    %3128 = vmatprep.subr.mxu0 0.0
    %3129 = vmatpush2.msra.mxu0 0.0
    %3130 = vmatprep.subr.mxu0 0.0
    %3131 = vmatpush2.msra.mxu0 0.0
    %3132 = vmatprep.subr.mxu0 0.0
    %3133 = vmatpush2.msra.mxu0 0.0
    %3134 = vmatprep.subr.mxu0 0.0
    %3135 = vmatpush2.msra.mxu0 0.0
    %3136 = vmatprep.subr.mxu0 0.0
    %3137 = vmatpush2.msra.mxu0 0.0
    %3138 = vmatprep.subr.mxu0 0.0
    %3139 = vmatpush2.msra.mxu0 0.0
    %3140 = vmatprep.subr.mxu0 0.0
    %3141 = vmatpush2.msra.mxu0 0.0
    %3142 = vmatprep.subr.mxu0 0.0
    %3143 = vmatpush2.msra.mxu0 0.0
    %3144 = vmatprep.subr.mxu0 0.0
    %3145 = vmatpush2.msra.mxu0 0.0
    %3146 = vmatprep.subr.mxu0 0.0
    %3147 = vmatpush2.msra.mxu0 0.0
    %3148 = vmatprep.subr.mxu0 0.0
    %3149 = vmatpush2.msra.mxu0 0.0
    %3150 = vmatprep.subr.mxu0 0.0
    %3151 = vmatpush2.msra.mxu0 0.0
    %3152 = vmatprep.subr.mxu0 0.0
    %3153 = vmatpush2.msra.mxu0 0.0
    %3154 = vmatprep.subr.mxu0 0.0
    %3155 = vmatpush2.msra.mxu0 0.0
    %3156 = vmatprep.mubr.f32.mxu0 0.0
    %v3157 = vand.u32 %v60, 4294901760
    %v3158 = vsub.f32 %v60, %v3157
    %v3159 = vand.u32 %v3158, 4294901760
    %3160 = vmatmul.mubr.f32.gmra.mxu0 %v3159
    %v3161 = vpop.f32.mrf.mxu0
    %v3162 = vadd.f32 %v3073, %v3161
    %v3163 = vpop.f32.mrf.mxu0
    %3164 = vdwg.mxu0
    %3165 = vmatprep.subr.mxu0 0.0
    %v3166 = vand.u32 %v2724, 4294901760
    %v3167 = vsub.f32 %v2724, %v3166
    %v3168 = vand.u32 %v3167, 4294901760
    %3169 = vmatpush1.msra.mxu0 %v3168
    %3170 = vmatprep.subr.mxu0 0.0
    %v3171 = vand.u32 %v2723, 4294901760
    %v3172 = vsub.f32 %v2723, %v3171
    %v3173 = vand.u32 %v3172, 4294901760
    %3174 = vmatpush1.msra.mxu0 %v3173
    %3175 = vmatprep.subr.mxu0 0.0
    %v3176 = vand.u32 %v2722, 4294901760
    %v3177 = vsub.f32 %v2722, %v3176
    %v3178 = vand.u32 %v3177, 4294901760
    %3179 = vmatpush1.msra.mxu0 %v3178
    %3180 = vmatprep.subr.mxu0 0.0
    %v3181 = vand.u32 %v2721, 4294901760
    %v3182 = vsub.f32 %v2721, %v3181
    %v3183 = vand.u32 %v3182, 4294901760
    %3184 = vmatpush1.msra.mxu0 %v3183
    %3185 = vmatprep.subr.mxu0 0.0
    %v3186 = vand.u32 %v2720, 4294901760
    %v3187 = vsub.f32 %v2720, %v3186
    %v3188 = vand.u32 %v3187, 4294901760
    %3189 = vmatpush1.msra.mxu0 %v3188
    %3190 = vmatprep.subr.mxu0 0.0
    %v3191 = vand.u32 %v2719, 4294901760
    %v3192 = vsub.f32 %v2719, %v3191
    %v3193 = vand.u32 %v3192, 4294901760
    %3194 = vmatpush1.msra.mxu0 %v3193
    %3195 = vmatprep.subr.mxu0 0.0
    %v3196 = vand.u32 %v2718, 4294901760
    %v3197 = vsub.f32 %v2718, %v3196
    %v3198 = vand.u32 %v3197, 4294901760
    %3199 = vmatpush1.msra.mxu0 %v3198
    %3200 = vmatprep.subr.mxu0 0.0
    %v3201 = vand.u32 %v2717, 4294901760
    %v3202 = vsub.f32 %v2717, %v3201
    %v3203 = vand.u32 %v3202, 4294901760
    %3204 = vmatpush1.msra.mxu0 %v3203
    %3205 = vmatprep.subr.mxu0 0.0
    %v3206 = vand.u32 %v2716, 4294901760
    %v3207 = vsub.f32 %v2716, %v3206
    %v3208 = vand.u32 %v3207, 4294901760
    %3209 = vmatpush1.msra.mxu0 %v3208
    %3210 = vmatprep.subr.mxu0 0.0
    %v3211 = vand.u32 %v2715, 4294901760
    %v3212 = vsub.f32 %v2715, %v3211
    %v3213 = vand.u32 %v3212, 4294901760
    %3214 = vmatpush1.msra.mxu0 %v3213
    %3215 = vmatprep.subr.mxu0 0.0
    %v3216 = vand.u32 %v2714, 4294901760
    %v3217 = vsub.f32 %v2714, %v3216
    %v3218 = vand.u32 %v3217, 4294901760
    %3219 = vmatpush1.msra.mxu0 %v3218
    %3220 = vmatprep.subr.mxu0 0.0
    %v3221 = vand.u32 %v2713, 4294901760
    %v3222 = vsub.f32 %v2713, %v3221
    %v3223 = vand.u32 %v3222, 4294901760
    %3224 = vmatpush1.msra.mxu0 %v3223
    %3225 = vmatprep.subr.mxu0 0.0
    %v3226 = vand.u32 %v2712, 4294901760
    %v3227 = vsub.f32 %v2712, %v3226
    %v3228 = vand.u32 %v3227, 4294901760
    %3229 = vmatpush1.msra.mxu0 %v3228
    %3230 = vmatprep.subr.mxu0 0.0
    %v3231 = vand.u32 %v2711, 4294901760
    %v3232 = vsub.f32 %v2711, %v3231
    %v3233 = vand.u32 %v3232, 4294901760
    %3234 = vmatpush1.msra.mxu0 %v3233
    %3235 = vmatprep.subr.mxu0 0.0
    %v3236 = vand.u32 %v2710, 4294901760
    %v3237 = vsub.f32 %v2710, %v3236
    %v3238 = vand.u32 %v3237, 4294901760
    %3239 = vmatpush1.msra.mxu0 %v3238
    %3240 = vmatprep.subr.mxu0 0.0
    %v3241 = vand.u32 %v2709, 4294901760
    %v3242 = vsub.f32 %v2709, %v3241
    %v3243 = vand.u32 %v3242, 4294901760
    %3244 = vmatpush1.msra.mxu0 %v3243
    %3245 = vmatprep.subr.mxu0 0.0
    %3246 = vmatpush2.msra.mxu0 0.0
    %3247 = vmatprep.subr.mxu0 0.0
    %3248 = vmatpush2.msra.mxu0 0.0
    %3249 = vmatprep.subr.mxu0 0.0
    %3250 = vmatpush2.msra.mxu0 0.0
    %3251 = vmatprep.subr.mxu0 0.0
    %3252 = vmatpush2.msra.mxu0 0.0
    %3253 = vmatprep.subr.mxu0 0.0
    %3254 = vmatpush2.msra.mxu0 0.0
    %3255 = vmatprep.subr.mxu0 0.0
    %3256 = vmatpush2.msra.mxu0 0.0
    %3257 = vmatprep.subr.mxu0 0.0
    %3258 = vmatpush2.msra.mxu0 0.0
    %3259 = vmatprep.subr.mxu0 0.0
    %3260 = vmatpush2.msra.mxu0 0.0
    %3261 = vmatprep.subr.mxu0 0.0
    %3262 = vmatpush2.msra.mxu0 0.0
    %3263 = vmatprep.subr.mxu0 0.0
    %3264 = vmatpush2.msra.mxu0 0.0
    %3265 = vmatprep.subr.mxu0 0.0
    %3266 = vmatpush2.msra.mxu0 0.0
    %3267 = vmatprep.subr.mxu0 0.0
    %3268 = vmatpush2.msra.mxu0 0.0
    %3269 = vmatprep.subr.mxu0 0.0
    %3270 = vmatpush2.msra.mxu0 0.0
    %3271 = vmatprep.subr.mxu0 0.0
    %3272 = vmatpush2.msra.mxu0 0.0
    %3273 = vmatprep.subr.mxu0 0.0
    %3274 = vmatpush2.msra.mxu0 0.0
    %3275 = vmatprep.subr.mxu0 0.0
    %3276 = vmatpush2.msra.mxu0 0.0
    %3277 = vmatprep.mubr.f32.mxu0 0.0
    %v3278 = vand.u32 %v60, 4294901760
    %3279 = vmatmul.mubr.f32.gmra.mxu0 %v3278
    %v3280 = vpop.f32.mrf.mxu0
    %v3281 = vadd.f32 %v3162, %v3280
    %v3282 = vpop.f32.mrf.mxu0
    %3283 = vdwg.mxu0
    %3284 = vmatprep.subr.mxu0 0.0
    %v3285 = vand.u32 %v2724, 4294901760
    %3286 = vmatpush1.msra.mxu0 %v3285
    %3287 = vmatprep.subr.mxu0 0.0
    %v3288 = vand.u32 %v2723, 4294901760
    %3289 = vmatpush1.msra.mxu0 %v3288
    %3290 = vmatprep.subr.mxu0 0.0
    %v3291 = vand.u32 %v2722, 4294901760
    %3292 = vmatpush1.msra.mxu0 %v3291
    %3293 = vmatprep.subr.mxu0 0.0
    %v3294 = vand.u32 %v2721, 4294901760
    %3295 = vmatpush1.msra.mxu0 %v3294
    %3296 = vmatprep.subr.mxu0 0.0
    %v3297 = vand.u32 %v2720, 4294901760
    %3298 = vmatpush1.msra.mxu0 %v3297
    %3299 = vmatprep.subr.mxu0 0.0
    %v3300 = vand.u32 %v2719, 4294901760
    %3301 = vmatpush1.msra.mxu0 %v3300
    %3302 = vmatprep.subr.mxu0 0.0
    %v3303 = vand.u32 %v2718, 4294901760
    %3304 = vmatpush1.msra.mxu0 %v3303
    %3305 = vmatprep.subr.mxu0 0.0
    %v3306 = vand.u32 %v2717, 4294901760
    %3307 = vmatpush1.msra.mxu0 %v3306
    %3308 = vmatprep.subr.mxu0 0.0
    %v3309 = vand.u32 %v2716, 4294901760
    %3310 = vmatpush1.msra.mxu0 %v3309
    %3311 = vmatprep.subr.mxu0 0.0
    %v3312 = vand.u32 %v2715, 4294901760
    %3313 = vmatpush1.msra.mxu0 %v3312
    %3314 = vmatprep.subr.mxu0 0.0
    %v3315 = vand.u32 %v2714, 4294901760
    %3316 = vmatpush1.msra.mxu0 %v3315
    %3317 = vmatprep.subr.mxu0 0.0
    %v3318 = vand.u32 %v2713, 4294901760
    %3319 = vmatpush1.msra.mxu0 %v3318
    %3320 = vmatprep.subr.mxu0 0.0
    %v3321 = vand.u32 %v2712, 4294901760
    %3322 = vmatpush1.msra.mxu0 %v3321
    %3323 = vmatprep.subr.mxu0 0.0
    %v3324 = vand.u32 %v2711, 4294901760
    %3325 = vmatpush1.msra.mxu0 %v3324
    %3326 = vmatprep.subr.mxu0 0.0
    %v3327 = vand.u32 %v2710, 4294901760
    %3328 = vmatpush1.msra.mxu0 %v3327
    %3329 = vmatprep.subr.mxu0 0.0
    %v3330 = vand.u32 %v2709, 4294901760
    %3331 = vmatpush1.msra.mxu0 %v3330
    %3332 = vmatprep.subr.mxu0 0.0
    %3333 = vmatpush2.msra.mxu0 0.0
    %3334 = vmatprep.subr.mxu0 0.0
    %3335 = vmatpush2.msra.mxu0 0.0
    %3336 = vmatprep.subr.mxu0 0.0
    %3337 = vmatpush2.msra.mxu0 0.0
    %3338 = vmatprep.subr.mxu0 0.0
    %3339 = vmatpush2.msra.mxu0 0.0
    %3340 = vmatprep.subr.mxu0 0.0
    %3341 = vmatpush2.msra.mxu0 0.0
    %3342 = vmatprep.subr.mxu0 0.0
    %3343 = vmatpush2.msra.mxu0 0.0
    %3344 = vmatprep.subr.mxu0 0.0
    %3345 = vmatpush2.msra.mxu0 0.0
    %3346 = vmatprep.subr.mxu0 0.0
    %3347 = vmatpush2.msra.mxu0 0.0
    %3348 = vmatprep.subr.mxu0 0.0
    %3349 = vmatpush2.msra.mxu0 0.0
    %3350 = vmatprep.subr.mxu0 0.0
    %3351 = vmatpush2.msra.mxu0 0.0
    %3352 = vmatprep.subr.mxu0 0.0
    %3353 = vmatpush2.msra.mxu0 0.0
    %3354 = vmatprep.subr.mxu0 0.0
    %3355 = vmatpush2.msra.mxu0 0.0
    %3356 = vmatprep.subr.mxu0 0.0
    %3357 = vmatpush2.msra.mxu0 0.0
    %3358 = vmatprep.subr.mxu0 0.0
    %3359 = vmatpush2.msra.mxu0 0.0
    %3360 = vmatprep.subr.mxu0 0.0
    %3361 = vmatpush2.msra.mxu0 0.0
    %3362 = vmatprep.subr.mxu0 0.0
    %3363 = vmatpush2.msra.mxu0 0.0
    %3364 = vmatprep.mubr.f32.mxu0 0.0
    %v3365 = vand.u32 %v60, 4294901760
    %3366 = vmatmul.mubr.f32.gmra.mxu0 %v3365
    %v3367 = vpop.f32.mrf.mxu0
    %v3368 = vadd.f32 %v3281, %v3367
    %v3369 = vpop.f32.mrf.mxu0
    %3370 = vdwg.mxu0
    %v3371 = vrot.slane %v3368, 4
    %v3372 = vmax.f32 %v3368, %v3371
    %v3373 = vrot.slane %v3372, 2
    %v3374 = vmax.f32 %v3372, %v3373
    %v3375 = vrot.slane %v3374, 1
    %v3376 = vmax.f32 %v3374, %v3375
    %v3377 = vsub.f32 %v3368, %v3376
    %v3378 = vmul.f32 %v3377, 1.442695
    %v3379 = vpow.pop %v3378
    %v3380 = vrot.slane %v3379, 4
    %v3381 = vadd.f32 %v3379, %v3380
    %v3382 = vrot.slane %v3381, 2
    %v3383 = vadd.f32 %v3381, %v3382
    %v3384 = vrot.slane %v3383, 1
    %v3385 = vadd.f32 %v3383, %v3384
    %v3386 = vlog2.pop %v3385
    %v3387 = vmul.f32 %v3386, 0.6931472
    %v3388 = vsub.f32 %v3377, %v3387
    %3389 = vst [vmem:[#allocation5] sm:$0xff] %v3388
    // Predicated region
    $region14: #{tpu_custom_call.1} parent=1 // pred_check
      _
    $region15: #{tpu_custom_call.1} parent=1 // pred_check_branch
      %3391 = sbr.rel (0) target = $region17
    $region16: #{tpu_custom_call.1} parent=1 // pred_region
      %s3393 = ssub.s32 128, 128
      %3394 = vsyncadd [#allocation4], %s3393
      %s3396 = sshll.u32 [#allocation5], 4
      %s3397 = int_to_ptr.vmem [resolvable:$true] %s3396
      %3399 = dma.vmem_to_hbm [thread:$0]  %s3397, 128, %s2, [#allocation4]
    $region17: #{tpu_custom_call.1} parent=1 // pred_fallthru
      _
    // Predicated region
    $region18: #{tpu_custom_call.1} parent=1 // pred_check
      _
    $region19: #{tpu_custom_call.1} parent=1 // pred_check_branch
      %3401 = sbr.rel (0) target = $region21
    $region20: #{tpu_custom_call.1} parent=1 // pred_region
      %3402 = dma.done [#allocation4], 128
    $region21: #{tpu_custom_call.1} parent=1 // pred_fallthru
      _
    %3403 = vsyncpa [#allocation3], 1
    %3404 = vsyncpa [#allocation4], 1

</llo_original>
